<compile_context>
chip_gen: v7x
topology: tpu7x:2x2x1
jax: 0.10.0
libtpu: 0.0.40
codegen_flags: <defaults>
</compile_context>

<pallas_src>
import numpy as np
import jax
import jax.numpy as jnp
from jax.experimental import pallas as pl
from jax.experimental.pallas import tpu as pltpu


def _ntm_seq_kernel(h0_ref, c0_ref, cxf_ref,
                    wkb_ref, bkb_ref, wev_ref, bev_ref, wgru_ref, bgru_ref,
                    hseq_ref, hout_ref, cout_ref):
    blk = pl.program_id(0)

    # Grid step 0: load the initial recurrent state into the resident output
    # blocks (constant index maps -> they stay in VMEM for the whole grid and
    # act as the h / C carry between Tb-sized timestep blocks).
    @pl.when(blk == 0)
    def _init():
        hout_ref[...] = h0_ref[...]
        cout_ref[...] = c0_ref[...]

    Tb, N, L, D = cxf_ref.shape
    H = hout_ref.shape[1]
    eps = 1e-8

    # (D, 1) ones column: lane-axis (D) reductions run on the MXU instead of
    # the XLU.  Created once, shared by every timestep in the block.
    ones_d = jnp.ones((D, 1), jnp.float32)

    def reduce_d(x2d):                       # (rows, D) -> (rows, 1)
        return jnp.dot(x2d, ones_d, preferred_element_type=jnp.float32)

    def sig(z):                              # sigmoid via tanh (EUP, overflow safe)
        return 0.5 * (jnp.tanh(0.5 * z) + 1.0)

    def step(i, carry):
        h, c_prev = carry                    # (N, H), (N, L, D)
        c_xf = cxf_ref[i]                    # (N, L, D) this timestep's read memory

        # ---- k / beta projections fused into one matmul --------------------
        kb = jnp.dot(h, wkb_ref[...], preferred_element_type=jnp.float32) \
            + bkb_ref[...]                   # (N, D + 128)
        k = kb[:, 0:D]                       # (N, D)
        bp = kb[:, D:D + 1]                  # (N, 1)  == linear_b(h)
        # beta = 1 + softplus(bp)  (exact rewrite of the clamp/exp/log1p form)
        beta = 1.0 + jnp.maximum(bp, 0.0) + jnp.log(1.0 + jnp.exp(-jnp.abs(bp)))
        beta3 = beta[:, :, None]             # (N, 1, 1)

        k3 = k[:, None, :]                   # (N, 1, D)
        k_norm = jnp.maximum(jnp.sqrt(reduce_d(k * k)), eps)        # (N, 1)
        k_norm3 = k_norm[:, :, None]         # (N, 1, 1)

        def attention(c):
            # Cosine similarity: D-axis sums via MXU ones-column matmuls.
            dot = reduce_d((c * k3).reshape(N * L, D)).reshape(N, L, 1)
            cc = reduce_d((c * c).reshape(N * L, D)).reshape(N, L, 1)
            c_norm = jnp.maximum(jnp.sqrt(cc), eps)
            s = dot / (c_norm * k_norm3) * beta3                    # (N, L, 1)
            m = jnp.max(s, axis=1, keepdims=True)
            ex = jnp.exp(s - m)
            denom = jnp.sum(ex, axis=1, keepdims=True)
            return ex * (1.0 / denom)        # exact: weights sum to 1

        w_kx = attention(c_xf)               # (N, L, 1)
        r = jnp.sum(w_kx * c_xf, axis=1)     # (N, D)  read vector
        w_kc = attention(c_prev)             # (N, L, 1)

        # ---- GRUCell(r, h): one lane-dense (N, D+H) @ (D+H, 4H) matmul -----
        x = jnp.concatenate([r, h], axis=1)  # (N, D + H)
        g = jnp.dot(x, wgru_ref[...], preferred_element_type=jnp.float32) \
            + bgru_ref[...]                  # (N, 4H)
        r_g = sig(g[:, 0:H])
        z_g = sig(g[:, H:2 * H])
        n_g = jnp.tanh(g[:, 2 * H:3 * H] + r_g * g[:, 3 * H:4 * H])
        h_new = (1.0 - z_g) * n_g + z_g * h  # (N, H)

        # ---- erase / add memory update (fused e|v matmul) -------------------
        ev = jnp.dot(h_new, wev_ref[...], preferred_element_type=jnp.float32) \
            + bev_ref[...]                   # (N, 2D)
        e = sig(ev[:, 0:D])[:, None, :]      # (N, 1, D)
        v = ev[:, D:2 * D][:, None, :]       # (N, 1, D)
        # c_prev*(1 - w*e) + w*v  ==  c_prev + w*(v - c_prev*e)   (C_Erase=False)
        c_new = c_prev + w_kc * (v - c_prev * e)

        hseq_ref[i] = h_new
        return h_new, c_new

    h_fin, c_fin = jax.lax.fori_loop(0, Tb, step,
                                     (hout_ref[...], cout_ref[...]))
    hout_ref[...] = h_fin
    cout_ref[...] = c_fin


def _pick_tb(T, max_tb=8):
    tb = min(T, max_tb)
    while T % tb:
        tb -= 1
    return tb


def ntm_cell_sequence(h0, c0, c_xf_seq, packed, tb=None):
    """Run T fused NTM cell steps. Returns (h_seq (T,N,H), h_T (N,H), c_T (N,L,D))."""
    T, N, L, D = c_xf_seq.shape
    H = h0.shape[1]
    if tb is None:
        tb = _pick_tb(T)
    assert T % tb == 0, "tb must divide T"

    grid_spec = pltpu.PrefetchScalarGridSpec(
        num_scalar_prefetch=0,
        grid=(T // tb,),
        in_specs=[
            pl.BlockSpec((N, H), lambda t: (0, 0)),                # h0 (once)
            pl.BlockSpec((N, L, D), lambda t: (0, 0, 0)),          # c0 (once)
            pl.BlockSpec((tb, N, L, D), lambda t: (t, 0, 0, 0)),   # c_xf streamed
            pl.BlockSpec((H, D + 128), lambda t: (0, 0)),          # [wk | wb]
            pl.BlockSpec((1, D + 128), lambda t: (0, 0)),          # [bk | bb]
            pl.BlockSpec((H, 2 * D), lambda t: (0, 0)),            # [we | wv]
            pl.BlockSpec((1, 2 * D), lambda t: (0, 0)),            # [be | bv]
            pl.BlockSpec((D + H, 4 * H), lambda t: (0, 0)),        # packed GRU W
            pl.BlockSpec((1, 4 * H), lambda t: (0, 0)),            # packed GRU b
        ],
        out_specs=[
            pl.BlockSpec((tb, N, H), lambda t: (t, 0, 0)),         # h per step
            pl.BlockSpec((N, H), lambda t: (0, 0)),                # final h (carry)
            pl.BlockSpec((N, L, D), lambda t: (0, 0, 0)),          # final c (carry)
        ],
    )

    h_seq, h_T, c_T = pl.pallas_call(
        _ntm_seq_kernel,
        grid_spec=grid_spec,
        out_shape=(jax.ShapeDtypeStruct((T, N, H), jnp.float32),
                   jax.ShapeDtypeStruct((N, H), jnp.float32),
                   jax.ShapeDtypeStruct((N, L, D), jnp.float32)),
        input_output_aliases={0: 1, 1: 2},   # h0 -> h_T, c0 -> c_T
        compiler_params=pltpu.CompilerParams(
            dimension_semantics=("arbitrary",)),
    )(h0, c0, c_xf_seq,
      packed["w_kb"], packed["b_kb"], packed["w_ev"], packed["b_ev"],
      packed["w_gru"], packed["b_gru"])
    return h_seq, h_T, c_T


def ntm_cell_single(h_o_prev, c_prev, c_xf, packed):
    """Single-step forward (matches the PyTorch module's forward())."""
    _, h_T, c_T = ntm_cell_sequence(h_o_prev, c_prev, c_xf[None], packed)
    return h_T, c_T


# ---------------- parameter construction & packing ---------------------------
def make_params(key, H, D):
    ks = jax.random.split(key, 12)

    def u(k, shape, fan_in):
        bound = 1.0 / np.sqrt(fan_in)
        return jax.random.uniform(k, shape, jnp.float32, -bound, bound)

    return {
        # linear_k / linear_b / linear_e / linear_v  (stored as (in, out))
        "wk": u(ks[0], (H, D), H), "bk": u(ks[1], (1, D), H),
        "wb": u(ks[2], (1, H), H), "bb": u(ks[3], (1, 1), H),
        "we": u(ks[4], (H, D), H), "be": u(ks[5], (1, D), H),
        "wv": u(ks[6], (H, D), H), "bv": u(ks[7], (1, D), H),
        # GRUCell(input=D, hidden=H): weights as (in, 3H), gate order r,z,n
        "wih": u(ks[8], (D, 3 * H), H), "bih": u(ks[9], (1, 3 * H), H),
        "whh": u(ks[10], (H, 3 * H), H), "bhh": u(ks[11], (1, 3 * H), H),
    }


def pack_params(p):
    H, D = p["wk"].shape
    LANE = 128

    # linear_k and linear_b fused: column D of w_kb holds linear_b's weights.
    w_kb = jnp.zeros((H, D + LANE), jnp.float32)
    w_kb = w_kb.at[:, 0:D].set(p["wk"])
    w_kb = w_kb.at[:, D].set(p["wb"][0])
    b_kb = jnp.zeros((1, D + LANE), jnp.float32)
    b_kb = b_kb.at[:, 0:D].set(p["bk"])
    b_kb = b_kb.at[0, D].set(p["bb"][0, 0])

    # linear_e | linear_v fused.
    w_ev = jnp.concatenate([p["we"], p["wv"]], axis=1)            # (H, 2D)
    b_ev = jnp.concatenate([p["be"], p["bv"]], axis=1)            # (1, 2D)

    # GRU gates packed lane-dense for x = [r, h]:
    #   cols [0,H): reset  [H,2H): update  [2H,3H): i_n  [3H,4H): h_n
    wih, whh = p["wih"], p["whh"]
    bih, bhh = p["bih"][0], p["bhh"][0]

    def ig(g): return wih[:, g * H:(g + 1) * H]
    def hg(g): return whh[:, g * H:(g + 1) * H]

    zD = jnp.zeros((D, H), jnp.float32)
    zH = jnp.zeros((H, H), jnp.float32)
    w_gru = jnp.concatenate([
        jnp.concatenate([ig(0), hg(0)], axis=0),   # reset gate
        jnp.concatenate([ig(1), hg(1)], axis=0),   # update gate
        jnp.concatenate([ig(2), zH], axis=0),      # i_n (input part of n)
        jnp.concatenate([zD, hg(2)], axis=0),      # h_n (hidden part of n)
    ], axis=1)                                                    # (D+H, 4H)
    b_gru = jnp.concatenate([
        (bih[0:H] + bhh[0:H])[None, :],
        (bih[H:2 * H] + bhh[H:2 * H])[None, :],
        bih[2 * H:3 * H][None, :],
        bhh[2 * H:3 * H][None, :],
    ], axis=1)                                                    # (1, 4H)

    return {"w_kb": w_kb, "b_kb": b_kb, "w_ev": w_ev, "b_ev": b_ev,
            "w_gru": w_gru, "b_gru": b_gru}


# ---------------- float64 NumPy reference (mirrors the PyTorch forward) ------
def _np_sigmoid(x):
    return 1.0 / (1.0 + np.exp(-x))


def _np_softmax(x, axis):
    m = np.max(x, axis=axis, keepdims=True)
    e = np.exp(x - m)
    return e / np.sum(e, axis=axis, keepdims=True)


def ntm_reference_step(h, c_prev, c_xf, p):
    k = h @ p["wk"] + p["bk"]
    bp = np.sum(h * p["wb"], axis=1, keepdims=True) + p["bb"][0, 0]
    bpos = np.maximum(bp, 0.0)
    bneg = np.minimum(bp, 0.0)
    beta = (np.log1p(np.exp(bneg)) + bpos + np.log1p(np.exp(-bpos))
            + (1.0 - np.log(2.0)))
    eps = 1e-8
    k3 = k[:, None, :]
    k_norm = np.maximum(np.sqrt(np.sum(k * k, axis=-1, keepdims=True)), eps)  # (N,1)

    def cos_sim(c):   # F.cosine_similarity: per-norm eps clamp
        c_norm = np.maximum(np.sqrt(np.sum(c * c, axis=-1)), eps)             # (N,L)
        return np.sum(c * k3, axis=-1) / (c_norm * k_norm)

    w_kx = _np_softmax(cos_sim(c_xf) * beta, axis=1)
    r = np.einsum("nl,nld->nd", w_kx, c_xf)
    w_kc = _np_softmax(cos_sim(c_prev) * beta, axis=1)

    gi = r @ p["wih"] + p["bih"]
    gh = h @ p["whh"] + p["bhh"]
    H = h.shape[1]
    r_g = _np_sigmoid(gi[:, :H] + gh[:, :H])
    z_g = _np_sigmoid(gi[:, H:2 * H] + gh[:, H:2 * H])
    n_g = np.tanh(gi[:, 2 * H:] + r_g * gh[:, 2 * H:])
    h_o = (1.0 - z_g) * n_g + z_g * h

    e = _np_sigmoid(h_o @ p["we"] + p["be"])
    v = h_o @ p["wv"] + p["bv"]
    c_new = (c_prev * (1.0 - w_kc[:, :, None] * e[:, None, :])
             + w_kc[:, :, None] * v[:, None, :])
    return h_o, c_new


if __name__ == "__main__":
    # config: batch=8, dim_h_o=32, dim_C2_1=16, dim_C2_2=128, sequence T=16
    N, H, L, D, T = 8, 32, 16, 128, 16
    key = jax.random.PRNGKey(0)
    k1, k2, k3, k4 = jax.random.split(key, 4)

    h0 = jax.random.normal(k1, (N, H), jnp.float32)
    c0 = jax.random.normal(k2, (N, L, D), jnp.float32)
    c_xf_seq = jax.random.normal(k3, (T, N, L, D), jnp.float32)
    params = make_params(k4, H, D)
    packed = pack_params(params)

    # float64 NumPy reference, unrolled step by step.
    p64 = {name: np.asarray(w, np.float64) for name, w in params.items()}
    h_ref = np.asarray(h0, np.float64)
    c_ref = np.asarray(c0, np.float64)
    cxf64 = np.asarray(c_xf_seq, np.float64)
    h_seq_ref = []
    for t in range(T):
        h_ref, c_ref = ntm_reference_step(h_ref, c_ref, cxf64[t], p64)
        h_seq_ref.append(h_ref)
    h_seq_ref = np.stack(h_seq_ref)

    # Fused-sequence Pallas kernel (Tb = 8 timesteps per grid step).
    h_seq, h_T, c_T = ntm_cell_sequence(h0, c0, c_xf_seq, packed)
    jax.block_until_ready((h_seq, h_T, c_T))

    np.testing.assert_allclose(np.asarray(h_seq), h_seq_ref, rtol=2e-2, atol=2e-2)
    np.testing.assert_allclose(np.asarray(h_T), h_seq_ref[-1], rtol=2e-2, atol=2e-2)
    np.testing.assert_allclose(np.asarray(c_T), c_ref, rtol=2e-2, atol=2e-2)

    # Single-step parity with the module's forward().
    h1, c1 = ntm_cell_single(h0, c0, c_xf_seq[0], packed)
    jax.block_until_ready((h1, c1))
    h1_ref, c1_ref = ntm_reference_step(np.asarray(h0, np.float64),
                                        np.asarray(c0, np.float64),
                                        cxf64[0], p64)
    np.testing.assert_allclose(np.asarray(h1), h1_ref, rtol=2e-2, atol=2e-2)
    np.testing.assert_allclose(np.asarray(c1), c1_ref, rtol=2e-2, atol=2e-2)

    print("KERNEL_OK")
</pallas_src>

<mosaic_0001>
module attributes {stable_mosaic.version = 11 : i64} {
  func.func @_ntm_seq_kernel(%arg0: i32, %arg1: memref<8x32xf32, #tpu.memory_space<vmem>>, %arg2: memref<8x16x128xf32, #tpu.memory_space<vmem>>, %arg3: memref<8x8x16x128xf32, #tpu.memory_space<vmem>>, %arg4: memref<32x256xf32, #tpu.memory_space<vmem>>, %arg5: memref<1x256xf32, #tpu.memory_space<vmem>>, %arg6: memref<32x256xf32, #tpu.memory_space<vmem>>, %arg7: memref<1x256xf32, #tpu.memory_space<vmem>>, %arg8: memref<160x128xf32, #tpu.memory_space<vmem>>, %arg9: memref<1x128xf32, #tpu.memory_space<vmem>>, %arg10: memref<8x8x32xf32, #tpu.memory_space<vmem>>, %arg11: memref<8x32xf32, #tpu.memory_space<vmem>>, %arg12: memref<8x16x128xf32, #tpu.memory_space<vmem>>) attributes {dimension_semantics = [#tpu.dimension_semantics<arbitrary>], iteration_bounds = array<i64: 2>, scalar_prefetch = 0 : i64, scratch_operands = 0 : i64, tpu.core_type = #tpu.core_type<tc>, window_params = [{pipeline_mode = #tpu.pipeline_mode<synchronous>, transform_indices = @transform_0, window_bounds = array<i64: 8, 32>}, {pipeline_mode = #tpu.pipeline_mode<synchronous>, transform_indices = @transform_1, window_bounds = array<i64: 8, 16, 128>}, {transform_indices = @transform_2, window_bounds = array<i64: 8, 8, 16, 128>}, {pipeline_mode = #tpu.pipeline_mode<synchronous>, transform_indices = @transform_3, window_bounds = array<i64: 32, 256>}, {pipeline_mode = #tpu.pipeline_mode<synchronous>, transform_indices = @transform_4, window_bounds = array<i64: 1, 256>}, {pipeline_mode = #tpu.pipeline_mode<synchronous>, transform_indices = @transform_5, window_bounds = array<i64: 32, 256>}, {pipeline_mode = #tpu.pipeline_mode<synchronous>, transform_indices = @transform_6, window_bounds = array<i64: 1, 256>}, {pipeline_mode = #tpu.pipeline_mode<synchronous>, transform_indices = @transform_7, window_bounds = array<i64: 160, 128>}, {pipeline_mode = #tpu.pipeline_mode<synchronous>, transform_indices = @transform_8, window_bounds = array<i64: 1, 128>}, {transform_indices = @transform_9, window_bounds = array<i64: 8, 8, 32>}, {pipeline_mode = #tpu.pipeline_mode<synchronous>, transform_indices = @transform_10, window_bounds = array<i64: 8, 32>}, {pipeline_mode = #tpu.pipeline_mode<synchronous>, transform_indices = @transform_11, window_bounds = array<i64: 8, 16, 128>}]} {
    %c0_i32 = arith.constant 0 : i32
    %0 = arith.cmpi eq, %arg0, %c0_i32 : i32
    %1 = arith.extui %0 : i1 to i32
    %c0_i32_0 = arith.constant 0 : i32
    %2 = arith.cmpi ne, %1, %c0_i32_0 : i32
    scf.if %2 {
      %c0_12 = arith.constant 0 : index
      %c0_13 = arith.constant 0 : index
      %10 = vector.load %arg1[%c0_12, %c0_13] : memref<8x32xf32, #tpu.memory_space<vmem>>, vector<8x32xf32>
      %c0_14 = arith.constant 0 : index
      %c0_15 = arith.constant 0 : index
      %11 = vector.load %arg11[%c0_14, %c0_15] : memref<8x32xf32, #tpu.memory_space<vmem>>, vector<8x32xf32>
      tpu.vector_store %arg11[%c0_14, %c0_15], %10 {strides = array<i32>} : memref<8x32xf32, #tpu.memory_space<vmem>>, vector<8x32xf32>,
      %c0_16 = arith.constant 0 : index
      %c0_17 = arith.constant 0 : index
      %c0_18 = arith.constant 0 : index
      %12 = vector.load %arg2[%c0_16, %c0_17, %c0_18] : memref<8x16x128xf32, #tpu.memory_space<vmem>>, vector<8x16x128xf32>
      %c0_19 = arith.constant 0 : index
      %c0_20 = arith.constant 0 : index
      %c0_21 = arith.constant 0 : index
      %13 = vector.load %arg12[%c0_19, %c0_20, %c0_21] : memref<8x16x128xf32, #tpu.memory_space<vmem>>, vector<8x16x128xf32>
      tpu.vector_store %arg12[%c0_19, %c0_20, %c0_21], %12 {strides = array<i32>} : memref<8x16x128xf32, #tpu.memory_space<vmem>>, vector<8x16x128xf32>,
    } else {
    }
    %cst = arith.constant 1.000000e+00 : f32
    %3 = vector.broadcast %cst : f32 to vector<128x1xf32>
    %c0 = arith.constant 0 : index
    %c0_1 = arith.constant 0 : index
    %4 = vector.load %arg11[%c0, %c0_1] : memref<8x32xf32, #tpu.memory_space<vmem>>, vector<8x32xf32>
    %c0_2 = arith.constant 0 : index
    %c0_3 = arith.constant 0 : index
    %c0_4 = arith.constant 0 : index
    %5 = vector.load %arg12[%c0_2, %c0_3, %c0_4] : memref<8x16x128xf32, #tpu.memory_space<vmem>>, vector<8x16x128xf32>
    %c0_i32_5 = arith.constant 0 : i32
    %c8_i32 = arith.constant 8 : i32
    %6 = arith.addi %c0_i32_5, %c8_i32 : i32
    %c1_i32 = arith.constant 1 : i32
    %7:2 = scf.for %arg13 = %c0_i32_5 to %6 step %c1_i32 iter_args(%arg14 = %4, %arg15 = %5) -> (vector<8x32xf32>, vector<8x16x128xf32>)  : i32 {
      %10 = arith.index_cast %arg13 : i32 to index
      %c0_12 = arith.constant 0 : index
      %c0_13 = arith.constant 0 : index
      %c0_14 = arith.constant 0 : index
      %11 = vector.load %arg3[%10, %c0_12, %c0_13, %c0_14] : memref<8x8x16x128xf32, #tpu.memory_space<vmem>>, vector<1x8x16x128xf32>
      %12 = vector.shape_cast %11 : vector<1x8x16x128xf32> to vector<8x16x128xf32>
      %c0_15 = arith.constant 0 : index
      %c0_16 = arith.constant 0 : index
      %13 = vector.load %arg4[%c0_15, %c0_16] : memref<32x256xf32, #tpu.memory_space<vmem>>, vector<32x256xf32>
      %cst_17 = arith.constant dense<0.000000e+00> : vector<8x256xf32>
      %14 = tpu.matmul %arg14, %13, %cst_17 {dimension_numbers = #tpu.dot_dimension_numbers<[1], [0], [0], [1], [0, 0, 1, 1], [], []>} : vector<8x32xf32>, vector<32x256xf32>, vector<8x256xf32> -> vector<8x256xf32>
      %c0_18 = arith.constant 0 : index
      %c0_19 = arith.constant 0 : index
      %15 = vector.load %arg5[%c0_18, %c0_19] : memref<1x256xf32, #tpu.memory_space<vmem>>, vector<1x256xf32>
      %16 = vector.broadcast %15 : vector<1x256xf32> to vector<8x256xf32>
      %17 = arith.addf %14, %16 : vector<8x256xf32>
      %18 = vector.extract_strided_slice %17 {offsets = [0, 0], sizes = [8, 128], strides = [1, 1]} : vector<8x256xf32> to vector<8x128xf32>
      %19 = vector.extract_strided_slice %17 {offsets = [0, 128], sizes = [8, 1], strides = [1, 1]} : vector<8x256xf32> to vector<8x1xf32>
      %cst_20 = arith.constant 0.000000e+00 : f32
      %20 = vector.broadcast %cst_20 : f32 to vector<8x1xf32>
      %21 = arith.maximumf %19, %20 : vector<8x1xf32>
      %cst_21 = arith.constant 1.000000e+00 : f32
      %22 = vector.broadcast %cst_21 : f32 to vector<8x1xf32>
      %23 = arith.addf %22, %21 : vector<8x1xf32>
      %24 = math.absf %19 : vector<8x1xf32>
      %cst_22 = arith.constant 0.000000e+00 : f32
      %25 = vector.broadcast %cst_22 : f32 to vector<8x1xf32>
      %26 = arith.subf %25, %24 : vector<8x1xf32>
      %27 = math.exp %26 : vector<8x1xf32>
      %cst_23 = arith.constant 1.000000e+00 : f32
      %28 = vector.broadcast %cst_23 : f32 to vector<8x1xf32>
      %29 = arith.addf %28, %27 : vector<8x1xf32>
      %30 = math.log %29 : vector<8x1xf32>
      %31 = arith.addf %23, %30 : vector<8x1xf32>
      %32 = vector.shape_cast %31 : vector<8x1xf32> to vector<8x1x1xf32>
      %33 = vector.shape_cast %18 : vector<8x128xf32> to vector<8x1x128xf32>
      %34 = arith.mulf %18, %18 : vector<8x128xf32>
      %cst_24 = arith.constant dense<0.000000e+00> : vector<8x1xf32>
      %35 = tpu.matmul %34, %3, %cst_24 {dimension_numbers = #tpu.dot_dimension_numbers<[1], [0], [0], [1], [0, 0, 1, 1], [], []>} : vector<8x128xf32>, vector<128x1xf32>, vector<8x1xf32> -> vector<8x1xf32>
      %36 = math.sqrt %35 : vector<8x1xf32>
      %cst_25 = arith.constant 9.99999993E-9 : f32
      %37 = vector.broadcast %cst_25 : f32 to vector<8x1xf32>
      %38 = arith.maximumf %36, %37 : vector<8x1xf32>
      %39 = vector.shape_cast %38 : vector<8x1xf32> to vector<8x1x1xf32>
      %40 = vector.broadcast %33 : vector<8x1x128xf32> to vector<8x16x128xf32>
      %41 = arith.mulf %12, %40 : vector<8x16x128xf32>
      %42 = vector.shape_cast %41 : vector<8x16x128xf32> to vector<128x128xf32>
      %cst_26 = arith.constant dense<0.000000e+00> : vector<128x1xf32>
      %43 = tpu.matmul %42, %3, %cst_26 {dimension_numbers = #tpu.dot_dimension_numbers<[1], [0], [0], [1], [0, 0, 1, 1], [], []>} : vector<128x128xf32>, vector<128x1xf32>, vector<128x1xf32> -> vector<128x1xf32>
      %44 = vector.shape_cast %43 : vector<128x1xf32> to vector<8x16x1xf32>
      %45 = arith.mulf %12, %12 : vector<8x16x128xf32>
      %46 = vector.shape_cast %45 : vector<8x16x128xf32> to vector<128x128xf32>
      %cst_27 = arith.constant dense<0.000000e+00> : vector<128x1xf32>
      %47 = tpu.matmul %46, %3, %cst_27 {dimension_numbers = #tpu.dot_dimension_numbers<[1], [0], [0], [1], [0, 0, 1, 1], [], []>} : vector<128x128xf32>, vector<128x1xf32>, vector<128x1xf32> -> vector<128x1xf32>
      %48 = vector.shape_cast %47 : vector<128x1xf32> to vector<8x16x1xf32>
      %49 = math.sqrt %48 : vector<8x16x1xf32>
      %cst_28 = arith.constant 9.99999993E-9 : f32
      %50 = vector.broadcast %cst_28 : f32 to vector<8x16x1xf32>
      %51 = arith.maximumf %49, %50 : vector<8x16x1xf32>
      %52 = vector.broadcast %39 : vector<8x1x1xf32> to vector<8x16x1xf32>
      %53 = arith.mulf %51, %52 : vector<8x16x1xf32>
      %54 = arith.divf %44, %53 : vector<8x16x1xf32>
      %55 = vector.broadcast %32 : vector<8x1x1xf32> to vector<8x16x1xf32>
      %56 = arith.mulf %54, %55 : vector<8x16x1xf32>
      %cst_29 = arith.constant dense<0xFF800000> : vector<8x1xf32>
      %57 = vector.multi_reduction <maximumf>, %56, %cst_29 [1] : vector<8x16x1xf32> to vector<8x1xf32>
      %58 = vector.shape_cast %57 : vector<8x1xf32> to vector<8x1x1xf32>
      %59 = vector.broadcast %58 : vector<8x1x1xf32> to vector<8x16x1xf32>
      %60 = arith.subf %56, %59 : vector<8x16x1xf32>
      %61 = math.exp %60 : vector<8x16x1xf32>
      %cst_30 = arith.constant dense<0.000000e+00> : vector<8x1xf32>
      %62 = vector.multi_reduction <add>, %61, %cst_30 [1] : vector<8x16x1xf32> to vector<8x1xf32>
      %63 = vector.shape_cast %62 : vector<8x1xf32> to vector<8x1x1xf32>
      %cst_31 = arith.constant 1.000000e+00 : f32
      %64 = vector.broadcast %cst_31 : f32 to vector<8x1x1xf32>
      %65 = arith.divf %64, %63 : vector<8x1x1xf32>
      %66 = vector.broadcast %65 : vector<8x1x1xf32> to vector<8x16x1xf32>
      %67 = arith.mulf %61, %66 : vector<8x16x1xf32>
      %68 = vector.broadcast %67 : vector<8x16x1xf32> to vector<8x16x128xf32>
      %69 = arith.mulf %68, %12 : vector<8x16x128xf32>
      %cst_32 = arith.constant dense<0.000000e+00> : vector<8x128xf32>
      %70 = vector.multi_reduction <add>, %69, %cst_32 [1] : vector<8x16x128xf32> to vector<8x128xf32>
      %71 = vector.broadcast %33 : vector<8x1x128xf32> to vector<8x16x128xf32>
      %72 = arith.mulf %arg15, %71 : vector<8x16x128xf32>
      %73 = vector.shape_cast %72 : vector<8x16x128xf32> to vector<128x128xf32>
      %cst_33 = arith.constant dense<0.000000e+00> : vector<128x1xf32>
      %74 = tpu.matmul %73, %3, %cst_33 {dimension_numbers = #tpu.dot_dimension_numbers<[1], [0], [0], [1], [0, 0, 1, 1], [], []>} : vector<128x128xf32>, vector<128x1xf32>, vector<128x1xf32> -> vector<128x1xf32>
      %75 = vector.shape_cast %74 : vector<128x1xf32> to vector<8x16x1xf32>
      %76 = arith.mulf %arg15, %arg15 : vector<8x16x128xf32>
      %77 = vector.shape_cast %76 : vector<8x16x128xf32> to vector<128x128xf32>
      %cst_34 = arith.constant dense<0.000000e+00> : vector<128x1xf32>
      %78 = tpu.matmul %77, %3, %cst_34 {dimension_numbers = #tpu.dot_dimension_numbers<[1], [0], [0], [1], [0, 0, 1, 1], [], []>} : vector<128x128xf32>, vector<128x1xf32>, vector<128x1xf32> -> vector<128x1xf32>
      %79 = vector.shape_cast %78 : vector<128x1xf32> to vector<8x16x1xf32>
      %80 = math.sqrt %79 : vector<8x16x1xf32>
      %cst_35 = arith.constant 9.99999993E-9 : f32
      %81 = vector.broadcast %cst_35 : f32 to vector<8x16x1xf32>
      %82 = arith.maximumf %80, %81 : vector<8x16x1xf32>
      %83 = vector.broadcast %39 : vector<8x1x1xf32> to vector<8x16x1xf32>
      %84 = arith.mulf %82, %83 : vector<8x16x1xf32>
      %85 = arith.divf %75, %84 : vector<8x16x1xf32>
      %86 = vector.broadcast %32 : vector<8x1x1xf32> to vector<8x16x1xf32>
      %87 = arith.mulf %85, %86 : vector<8x16x1xf32>
      %cst_36 = arith.constant dense<0xFF800000> : vector<8x1xf32>
      %88 = vector.multi_reduction <maximumf>, %87, %cst_36 [1] : vector<8x16x1xf32> to vector<8x1xf32>
      %89 = vector.shape_cast %88 : vector<8x1xf32> to vector<8x1x1xf32>
      %90 = vector.broadcast %89 : vector<8x1x1xf32> to vector<8x16x1xf32>
      %91 = arith.subf %87, %90 : vector<8x16x1xf32>
      %92 = math.exp %91 : vector<8x16x1xf32>
      %cst_37 = arith.constant dense<0.000000e+00> : vector<8x1xf32>
      %93 = vector.multi_reduction <add>, %92, %cst_37 [1] : vector<8x16x1xf32> to vector<8x1xf32>
      %94 = vector.shape_cast %93 : vector<8x1xf32> to vector<8x1x1xf32>
      %cst_38 = arith.constant 1.000000e+00 : f32
      %95 = vector.broadcast %cst_38 : f32 to vector<8x1x1xf32>
      %96 = arith.divf %95, %94 : vector<8x1x1xf32>
      %97 = vector.broadcast %96 : vector<8x1x1xf32> to vector<8x16x1xf32>
      %98 = arith.mulf %92, %97 : vector<8x16x1xf32>
      %99 = tpu.concatenate %70, %arg14 in 1 : vector<8x128xf32>, vector<8x32xf32> -> vector<8x160xf32>
      %c0_39 = arith.constant 0 : index
      %c0_40 = arith.constant 0 : index
      %100 = vector.load %arg8[%c0_39, %c0_40] : memref<160x128xf32, #tpu.memory_space<vmem>>, vector<160x128xf32>
      %cst_41 = arith.constant dense<0.000000e+00> : vector<8x128xf32>
      %101 = tpu.matmul %99, %100, %cst_41 {dimension_numbers = #tpu.dot_dimension_numbers<[1], [0], [0], [1], [0, 0, 1, 1], [], []>} : vector<8x160xf32>, vector<160x128xf32>, vector<8x128xf32> -> vector<8x128xf32>
      %c0_42 = arith.constant 0 : index
      %c0_43 = arith.constant 0 : index
      %102 = vector.load %arg9[%c0_42, %c0_43] : memref<1x128xf32, #tpu.memory_space<vmem>>, vector<1x128xf32>
      %103 = vector.broadcast %102 : vector<1x128xf32> to vector<8x128xf32>
      %104 = arith.addf %101, %103 : vector<8x128xf32>
      %105 = vector.extract_strided_slice %104 {offsets = [0, 0], sizes = [8, 32], strides = [1, 1]} : vector<8x128xf32> to vector<8x32xf32>
      %cst_44 = arith.constant 5.000000e-01 : f32
      %106 = vector.broadcast %cst_44 : f32 to vector<8x32xf32>
      %107 = arith.mulf %106, %105 : vector<8x32xf32>
      %108 = math.tanh %107 : vector<8x32xf32>
      %cst_45 = arith.constant 1.000000e+00 : f32
      %109 = vector.broadcast %cst_45 : f32 to vector<8x32xf32>
      %110 = arith.addf %108, %109 : vector<8x32xf32>
      %cst_46 = arith.constant 5.000000e-01 : f32
      %111 = vector.broadcast %cst_46 : f32 to vector<8x32xf32>
      %112 = arith.mulf %111, %110 : vector<8x32xf32>
      %113 = vector.extract_strided_slice %104 {offsets = [0, 32], sizes = [8, 32], strides = [1, 1]} : vector<8x128xf32> to vector<8x32xf32>
      %cst_47 = arith.constant 5.000000e-01 : f32
      %114 = vector.broadcast %cst_47 : f32 to vector<8x32xf32>
      %115 = arith.mulf %114, %113 : vector<8x32xf32>
      %116 = math.tanh %115 : vector<8x32xf32>
      %cst_48 = arith.constant 1.000000e+00 : f32
      %117 = vector.broadcast %cst_48 : f32 to vector<8x32xf32>
      %118 = arith.addf %116, %117 : vector<8x32xf32>
      %cst_49 = arith.constant 5.000000e-01 : f32
      %119 = vector.broadcast %cst_49 : f32 to vector<8x32xf32>
      %120 = arith.mulf %119, %118 : vector<8x32xf32>
      %121 = vector.extract_strided_slice %104 {offsets = [0, 64], sizes = [8, 32], strides = [1, 1]} : vector<8x128xf32> to vector<8x32xf32>
      %122 = vector.extract_strided_slice %104 {offsets = [0, 96], sizes = [8, 32], strides = [1, 1]} : vector<8x128xf32> to vector<8x32xf32>
      %123 = arith.mulf %112, %122 : vector<8x32xf32>
      %124 = arith.addf %121, %123 : vector<8x32xf32>
      %125 = math.tanh %124 : vector<8x32xf32>
      %cst_50 = arith.constant 1.000000e+00 : f32
      %126 = vector.broadcast %cst_50 : f32 to vector<8x32xf32>
      %127 = arith.subf %126, %120 : vector<8x32xf32>
      %128 = arith.mulf %127, %125 : vector<8x32xf32>
      %129 = arith.mulf %120, %arg14 : vector<8x32xf32>
      %130 = arith.addf %128, %129 : vector<8x32xf32>
      %c0_51 = arith.constant 0 : index
      %c0_52 = arith.constant 0 : index
      %131 = vector.load %arg6[%c0_51, %c0_52] : memref<32x256xf32, #tpu.memory_space<vmem>>, vector<32x256xf32>
      %cst_53 = arith.constant dense<0.000000e+00> : vector<8x256xf32>
      %132 = tpu.matmul %130, %131, %cst_53 {dimension_numbers = #tpu.dot_dimension_numbers<[1], [0], [0], [1], [0, 0, 1, 1], [], []>} : vector<8x32xf32>, vector<32x256xf32>, vector<8x256xf32> -> vector<8x256xf32>
      %c0_54 = arith.constant 0 : index
      %c0_55 = arith.constant 0 : index
      %133 = vector.load %arg7[%c0_54, %c0_55] : memref<1x256xf32, #tpu.memory_space<vmem>>, vector<1x256xf32>
      %134 = vector.broadcast %133 : vector<1x256xf32> to vector<8x256xf32>
      %135 = arith.addf %132, %134 : vector<8x256xf32>
      %136 = vector.extract_strided_slice %135 {offsets = [0, 0], sizes = [8, 128], strides = [1, 1]} : vector<8x256xf32> to vector<8x128xf32>
      %cst_56 = arith.constant 5.000000e-01 : f32
      %137 = vector.broadcast %cst_56 : f32 to vector<8x128xf32>
      %138 = arith.mulf %137, %136 : vector<8x128xf32>
      %139 = math.tanh %138 : vector<8x128xf32>
      %cst_57 = arith.constant 1.000000e+00 : f32
      %140 = vector.broadcast %cst_57 : f32 to vector<8x128xf32>
      %141 = arith.addf %139, %140 : vector<8x128xf32>
      %cst_58 = arith.constant 5.000000e-01 : f32
      %142 = vector.broadcast %cst_58 : f32 to vector<8x128xf32>
      %143 = arith.mulf %142, %141 : vector<8x128xf32>
      %144 = vector.shape_cast %143 : vector<8x128xf32> to vector<8x1x128xf32>
      %145 = vector.extract_strided_slice %135 {offsets = [0, 128], sizes = [8, 128], strides = [1, 1]} : vector<8x256xf32> to vector<8x128xf32>
      %146 = vector.shape_cast %145 : vector<8x128xf32> to vector<8x1x128xf32>
      %147 = vector.broadcast %144 : vector<8x1x128xf32> to vector<8x16x128xf32>
      %148 = arith.mulf %arg15, %147 : vector<8x16x128xf32>
      %149 = vector.broadcast %146 : vector<8x1x128xf32> to vector<8x16x128xf32>
      %150 = arith.subf %149, %148 : vector<8x16x128xf32>
      %151 = vector.broadcast %98 : vector<8x16x1xf32> to vector<8x16x128xf32>
      %152 = arith.mulf %151, %150 : vector<8x16x128xf32>
      %153 = arith.addf %arg15, %152 : vector<8x16x128xf32>
      %154 = arith.index_cast %arg13 : i32 to index
      %c0_59 = arith.constant 0 : index
      %c0_60 = arith.constant 0 : index
      %155 = vector.load %arg10[%154, %c0_59, %c0_60] : memref<8x8x32xf32, #tpu.memory_space<vmem>>, vector<1x8x32xf32>
      %156 = vector.shape_cast %155 : vector<1x8x32xf32> to vector<8x32xf32>
      %157 = vector.shape_cast %130 : vector<8x32xf32> to vector<1x8x32xf32>
      tpu.vector_store %arg10[%154, %c0_59, %c0_60], %157 {strides = array<i32>} : memref<8x8x32xf32, #tpu.memory_space<vmem>>, vector<1x8x32xf32>,
      scf.yield %130, %153 : vector<8x32xf32>, vector<8x16x128xf32>
    }
    %c8_i32_6 = arith.constant 8 : i32
    %c0_7 = arith.constant 0 : index
    %c0_8 = arith.constant 0 : index
    %8 = vector.load %arg11[%c0_7, %c0_8] : memref<8x32xf32, #tpu.memory_space<vmem>>, vector<8x32xf32>
    tpu.vector_store %arg11[%c0_7, %c0_8], %7#0 {strides = array<i32>} : memref<8x32xf32, #tpu.memory_space<vmem>>, vector<8x32xf32>,
    %c0_9 = arith.constant 0 : index
    %c0_10 = arith.constant 0 : index
    %c0_11 = arith.constant 0 : index
    %9 = vector.load %arg12[%c0_9, %c0_10, %c0_11] : memref<8x16x128xf32, #tpu.memory_space<vmem>>, vector<8x16x128xf32>
    tpu.vector_store %arg12[%c0_9, %c0_10, %c0_11], %7#1 {strides = array<i32>} : memref<8x16x128xf32, #tpu.memory_space<vmem>>, vector<8x16x128xf32>,
    return
  }
  func.func @transform_0(%arg0: i32) -> (i32, i32) {
    %c0_i32 = arith.constant 0 : i32
    %c0_i32_0 = arith.constant 0 : i32
    %c0_i32_1 = arith.constant 0 : i32
    return %c0_i32, %c0_i32_0 : i32, i32
  }
  func.func @transform_1(%arg0: i32) -> (i32, i32, i32) {
    %c0_i32 = arith.constant 0 : i32
    %c0_i32_0 = arith.constant 0 : i32
    %c0_i32_1 = arith.constant 0 : i32
    %c0_i32_2 = arith.constant 0 : i32
    return %c0_i32, %c0_i32_0, %c0_i32_1 : i32, i32, i32
  }
  func.func @transform_2(%arg0: i32) -> (i32, i32, i32, i32) {
    %c0_i32 = arith.constant 0 : i32
    %c0_i32_0 = arith.constant 0 : i32
    %c0_i32_1 = arith.constant 0 : i32
    %c0_i32_2 = arith.constant 0 : i32
    return %arg0, %c0_i32, %c0_i32_0, %c0_i32_1 : i32, i32, i32, i32
  }
  func.func @transform_3(%arg0: i32) -> (i32, i32) {
    %c0_i32 = arith.constant 0 : i32
    %c0_i32_0 = arith.constant 0 : i32
    %c0_i32_1 = arith.constant 0 : i32
    return %c0_i32, %c0_i32_0 : i32, i32
  }
  func.func @transform_4(%arg0: i32) -> (i32, i32) {
    %c0_i32 = arith.constant 0 : i32
    %c0_i32_0 = arith.constant 0 : i32
    %c0_i32_1 = arith.constant 0 : i32
    return %c0_i32, %c0_i32_0 : i32, i32
  }
  func.func @transform_5(%arg0: i32) -> (i32, i32) {
    %c0_i32 = arith.constant 0 : i32
    %c0_i32_0 = arith.constant 0 : i32
    %c0_i32_1 = arith.constant 0 : i32
    return %c0_i32, %c0_i32_0 : i32, i32
  }
  func.func @transform_6(%arg0: i32) -> (i32, i32) {
    %c0_i32 = arith.constant 0 : i32
    %c0_i32_0 = arith.constant 0 : i32
    %c0_i32_1 = arith.constant 0 : i32
    return %c0_i32, %c0_i32_0 : i32, i32
  }
  func.func @transform_7(%arg0: i32) -> (i32, i32) {
    %c0_i32 = arith.constant 0 : i32
    %c0_i32_0 = arith.constant 0 : i32
    %c0_i32_1 = arith.constant 0 : i32
    return %c0_i32, %c0_i32_0 : i32, i32
  }
  func.func @transform_8(%arg0: i32) -> (i32, i32) {
    %c0_i32 = arith.constant 0 : i32
    %c0_i32_0 = arith.constant 0 : i32
    %c0_i32_1 = arith.constant 0 : i32
    return %c0_i32, %c0_i32_0 : i32, i32
  }
  func.func @transform_9(%arg0: i32) -> (i32, i32, i32) {
    %c0_i32 = arith.constant 0 : i32
    %c0_i32_0 = arith.constant 0 : i32
    %c0_i32_1 = arith.constant 0 : i32
    return %arg0, %c0_i32, %c0_i32_0 : i32, i32, i32
  }
  func.func @transform_10(%arg0: i32) -> (i32, i32) {
    %c0_i32 = arith.constant 0 : i32
    %c0_i32_0 = arith.constant 0 : i32
    %c0_i32_1 = arith.constant 0 : i32
    return %c0_i32, %c0_i32_0 : i32, i32
  }
  func.func @transform_11(%arg0: i32) -> (i32, i32, i32) {
    %c0_i32 = arith.constant 0 : i32
    %c0_i32_0 = arith.constant 0 : i32
    %c0_i32_1 = arith.constant 0 : i32
    %c0_i32_2 = arith.constant 0 : i32
    return %c0_i32, %c0_i32_0, %c0_i32_1 : i32, i32, i32
  }
}

</mosaic_0001>

<llo_original>
// kernel: tpu_custom_call.1
$region0: #{tpu_custom_call.1}
  #allocation0 [shape = 'u32[]', space=smem, size = 0x4, offset = 0x4, fixed_abs, tag = 'smem constant byte address 0x4 - core index']
  #allocation1 [shape = 'u32[144,128]{1,0:T(1,128)}', space=vmem, size = 0x12000, scoped, tag = 'internal scratch']
  %s0 = inlined_call_operand.hbm [shape: f32[8,32], index: 0, kind: input, shape index: {}, may-alias: {0,10}]
  %s1 = inlined_call_operand.hbm [shape: f32[8,16,128], index: 1, kind: input, shape index: {}, may-alias: {1,11}]
  %s2 = inlined_call_operand.hbm [shape: f32[16,8,16,128], index: 2, kind: input, shape index: {}]
  %s3 = inlined_call_operand.vmem [shape: f32[32,256], index: 3, kind: input, shape index: {}]
  %s4 = inlined_call_operand.vmem [shape: f32[1,256], index: 4, kind: input, shape index: {}]
  %s5 = inlined_call_operand.hbm [shape: f32[32,256], index: 5, kind: input, shape index: {}]
  %s6 = inlined_call_operand.vmem [shape: f32[1,256], index: 6, kind: input, shape index: {}]
  %s7 = inlined_call_operand.vmem [shape: f32[160,128], index: 7, kind: input, shape index: {}]
  %s8 = inlined_call_operand.vmem [shape: f32[1,128], index: 8, kind: input, shape index: {}]
  %s9 = inlined_call_operand.hbm [shape: f32[16,8,32], index: 9, kind: output, shape index: {0}]
  %s10 = inlined_call_operand.hbm [shape: f32[8,32], index: 10, kind: output, shape index: {1}, may-alias: {0,10}]
  %s11 = inlined_call_operand.hbm [shape: f32[8,16,128], index: 11, kind: output, shape index: {2}, may-alias: {1,11}]
  %12 = xla_tuple %s9, %s10, %s11
  %s13 = sld [smem:[#allocation0]]
  $region112: #{tpu_custom_call.1} parent=0
    _
  %s15 = ssub.s32 1, %s13
  %s16 = scalar_select 0, %s15, %s13
  $region1: #{tpu_custom_call.1} parent=0
    #allocation2 [shape = 'u8[4096]{0}', space=vmem, size = 0x1000, scoped, tag = 'input window, operand 0, single buffered']
    #allocation3 [shape = 's32[2]{0}', space=sflag, size = 0x8, scoped, tag = 'scoped memory for tpu_custom_call.1']
    #allocation4 [shape = 's32[2]{0}', space=sflag, size = 0x8, scoped, tag = 'scoped memory for tpu_custom_call.1']
    #allocation5 [shape = 'u8[65536]{0}', space=vmem, size = 0x10000, scoped, tag = 'input window, operand 1, single buffered']
    #allocation6 [shape = 's32[1]{0}', space=sflag, size = 0x4, scoped, tag = 'scoped memory for tpu_custom_call.1']
    #allocation7 [shape = 'u8[1048576]{0}', space=vmem, size = 0x100000, scoped, tag = 'input window, operand 2']
    #allocation8 [shape = 'u8[32768]{0}', space=vmem, size = 0x8000, scoped, tag = 'input window, operand 5, single buffered']
    #allocation9 [shape = 'u8[65536]{0}', space=vmem, size = 0x10000, scoped, tag = 'output window, operand 0']
    #allocation10 [shape = 'u8[4096]{0}', space=vmem, size = 0x1000, scoped, tag = 'output window, operand 1, single buffered']
    #allocation11 [shape = 's32[1]{0}', space=sflag, size = 0x4, scoped, tag = 'scoped memory for tpu_custom_call.1']
    #allocation12 [shape = 'u8[65536]{0}', space=vmem, size = 0x10000, scoped, tag = 'output window, operand 2, single buffered']
    %17 = vsyncpa [#allocation3], 0
    %18 = vsyncpa [#allocation6], 0
    %19 = vsyncpa [#allocation4], 0
    %s20 = scalar_lea.sflag [#allocation4], 1
    %21 = vsyncpa %s20, 0
    %22 = vsyncpa [#allocation11], 0
    loop: start=0, step=1, limit=4
    $region2: #{tpu_custom_call.1} parent=1 // loop_pre_header
      _
    $region3: #{tpu_custom_call.1} parent=1 // loop_header
      %s24 = sphi 0, %s28
      %p25 = scmp.ge.s32.totalorder %s24, 4
      %s32 = sphi 0, %s32
      %s34 = sphi 0, %s32
      %s35 = sphi 0, %s34
      %s49 = sphi 0, %s35
      %s53 = sphi 0, %s53
      %s55 = sphi 0, %s53
      %s56 = sphi 0, %s55
      %s70 = sphi 0, %s56
      %s76 = sphi 0, %s78
      %s79 = sphi 0, %s76
      %s80 = sphi 0, %s79
      %s96 = sphi 0, %s80
      %s100 = sphi 0, %s100
      %s102 = sphi 0, %s100
      %s103 = sphi 0, %s102
      %s117 = sphi 0, %s103
      %s121 = sphi 0, %s121
      %s123 = sphi 0, %s121
      %s124 = sphi 0, %s123
      %s138 = sphi 0, %s124
      %s142 = sphi 0, %s142
      %s144 = sphi 0, %s142
      %s145 = sphi 0, %s144
      %s159 = sphi 0, %s145
      %s163 = sphi 0, %s163
      %s165 = sphi 0, %s163
      %s166 = sphi 0, %s165
      %s180 = sphi 0, %s166
      %s184 = sphi 0, %s184
      %s186 = sphi 0, %s184
      %s187 = sphi 0, %s186
      %s201 = sphi 0, %s187
      %s205 = sphi 0, %s205
      %s207 = sphi 0, %s205
      %s208 = sphi 0, %s207
      %s222 = sphi 0, %s208
      %s228 = sphi 0, %s230
      %s231 = sphi 0, %s228
      %s232 = sphi 0, %s231
      %s248 = sphi 0, %s232
      %s252 = sphi 0, %s252
      %s254 = sphi 0, %s252
      %s255 = sphi 0, %s254
      %s269 = sphi 0, %s255
      %s273 = sphi 0, %s273
      %s275 = sphi 0, %s273
      %s276 = sphi 0, %s275
      %s290 = sphi 0, %s276
    $region4: #{tpu_custom_call.1} parent=1 // loop_header_branch
      %27 = sbr.rel (%p25) target = $region8
    $region5: #{tpu_custom_call.1} parent=1 // loop_body
      %s29 = ssub.s32 %s24, 1
      %s30 = ssub.s32 %s24, 2
      %s31 = sadd.s32 %s24, 1
      %s33 = sadd.s32 %s32, 1
      %p36 = scmp.eq.s32.totalorder %s24, 1
      %p37 = scmp.ne.s32.totalorder %s32, %s34
      %p38 = scmp.eq.s32.totalorder %s24, 0
      %p39 = por %p37, %p38
      %p40 = scmp.ne.s32.totalorder %s32, %s34
      %p41 = scmp.eq.s32.totalorder %s29, 1
      %p42 = por %p40, %p41
      %p43 = scmp.ne.s32.totalorder %s34, %s35
      %p44 = scmp.eq.s32.totalorder %s29, 0
      %p45 = por %p43, %p44
      %p46 = scmp.ne.s32.totalorder %s34, %s35
      %p47 = scmp.eq.s32.totalorder %s30, 1
      %p48 = por %p46, %p47
      %p50 = scmp.ne.s32.totalorder %s35, %s49
      %p51 = scmp.eq.s32.totalorder %s30, 0
      %p52 = por %p50, %p51
      %s54 = sadd.s32 %s53, 1
      %p57 = scmp.eq.s32.totalorder %s24, 1
      %p58 = scmp.ne.s32.totalorder %s53, %s55
      %p59 = scmp.eq.s32.totalorder %s24, 0
      %p60 = por %p58, %p59
      %p61 = scmp.ne.s32.totalorder %s53, %s55
      %p62 = scmp.eq.s32.totalorder %s29, 1
      %p63 = por %p61, %p62
      %p64 = scmp.ne.s32.totalorder %s55, %s56
      %p65 = scmp.eq.s32.totalorder %s29, 0
      %p66 = por %p64, %p65
      %p67 = scmp.ne.s32.totalorder %s55, %s56
      %p68 = scmp.eq.s32.totalorder %s30, 1
      %p69 = por %p67, %p68
      %p71 = scmp.ne.s32.totalorder %s56, %s70
      %p72 = scmp.eq.s32.totalorder %s30, 0
      %p73 = por %p71, %p72
      %s74 = ssub.s32 %s24, %s31
      %p75 = scmp.eq.s32.totalorder %s74, 0
      %s77 = sadd.s32 %s76, 1
      %s78 = scalar_select %p75, %s76, %s77
      %p81 = pneg %p75
      %p82 = scmp.eq.s32.totalorder %s24, 1
      %p83 = por %p81, %p82
      %p84 = scmp.ne.s32.totalorder %s76, %s79
      %p85 = scmp.eq.s32.totalorder %s24, 0
      %p86 = por %p84, %p85
      %p87 = scmp.ne.s32.totalorder %s76, %s79
      %p88 = scmp.eq.s32.totalorder %s29, 1
      %p89 = por %p87, %p88
      %p90 = scmp.ne.s32.totalorder %s79, %s80
      %p91 = scmp.eq.s32.totalorder %s29, 0
      %p92 = por %p90, %p91
      %p93 = scmp.ne.s32.totalorder %s79, %s80
      %p94 = scmp.eq.s32.totalorder %s30, 1
      %p95 = por %p93, %p94
      %p97 = scmp.ne.s32.totalorder %s80, %s96
      %p98 = scmp.eq.s32.totalorder %s30, 0
      %p99 = por %p97, %p98
      %s101 = sadd.s32 %s100, 1
      %p104 = scmp.eq.s32.totalorder %s24, 1
      %p105 = scmp.ne.s32.totalorder %s100, %s102
      %p106 = scmp.eq.s32.totalorder %s24, 0
      %p107 = por %p105, %p106
      %p108 = scmp.ne.s32.totalorder %s100, %s102
      %p109 = scmp.eq.s32.totalorder %s29, 1
      %p110 = por %p108, %p109
      %p111 = scmp.ne.s32.totalorder %s102, %s103
      %p112 = scmp.eq.s32.totalorder %s29, 0
      %p113 = por %p111, %p112
      %p114 = scmp.ne.s32.totalorder %s102, %s103
      %p115 = scmp.eq.s32.totalorder %s30, 1
      %p116 = por %p114, %p115
      %p118 = scmp.ne.s32.totalorder %s103, %s117
      %p119 = scmp.eq.s32.totalorder %s30, 0
      %p120 = por %p118, %p119
      %s122 = sadd.s32 %s121, 1
      %p125 = scmp.eq.s32.totalorder %s24, 1
      %p126 = scmp.ne.s32.totalorder %s121, %s123
      %p127 = scmp.eq.s32.totalorder %s24, 0
      %p128 = por %p126, %p127
      %p129 = scmp.ne.s32.totalorder %s121, %s123
      %p130 = scmp.eq.s32.totalorder %s29, 1
      %p131 = por %p129, %p130
      %p132 = scmp.ne.s32.totalorder %s123, %s124
      %p133 = scmp.eq.s32.totalorder %s29, 0
      %p134 = por %p132, %p133
      %p135 = scmp.ne.s32.totalorder %s123, %s124
      %p136 = scmp.eq.s32.totalorder %s30, 1
      %p137 = por %p135, %p136
      %p139 = scmp.ne.s32.totalorder %s124, %s138
      %p140 = scmp.eq.s32.totalorder %s30, 0
      %p141 = por %p139, %p140
      %s143 = sadd.s32 %s142, 1
      %p146 = scmp.eq.s32.totalorder %s24, 1
      %p147 = scmp.ne.s32.totalorder %s142, %s144
      %p148 = scmp.eq.s32.totalorder %s24, 0
      %p149 = por %p147, %p148
      %p150 = scmp.ne.s32.totalorder %s142, %s144
      %p151 = scmp.eq.s32.totalorder %s29, 1
      %p152 = por %p150, %p151
      %p153 = scmp.ne.s32.totalorder %s144, %s145
      %p154 = scmp.eq.s32.totalorder %s29, 0
      %p155 = por %p153, %p154
      %p156 = scmp.ne.s32.totalorder %s144, %s145
      %p157 = scmp.eq.s32.totalorder %s30, 1
      %p158 = por %p156, %p157
      %p160 = scmp.ne.s32.totalorder %s145, %s159
      %p161 = scmp.eq.s32.totalorder %s30, 0
      %p162 = por %p160, %p161
      %s164 = sadd.s32 %s163, 1
      %p167 = scmp.eq.s32.totalorder %s24, 1
      %p168 = scmp.ne.s32.totalorder %s163, %s165
      %p169 = scmp.eq.s32.totalorder %s24, 0
      %p170 = por %p168, %p169
      %p171 = scmp.ne.s32.totalorder %s163, %s165
      %p172 = scmp.eq.s32.totalorder %s29, 1
      %p173 = por %p171, %p172
      %p174 = scmp.ne.s32.totalorder %s165, %s166
      %p175 = scmp.eq.s32.totalorder %s29, 0
      %p176 = por %p174, %p175
      %p177 = scmp.ne.s32.totalorder %s165, %s166
      %p178 = scmp.eq.s32.totalorder %s30, 1
      %p179 = por %p177, %p178
      %p181 = scmp.ne.s32.totalorder %s166, %s180
      %p182 = scmp.eq.s32.totalorder %s30, 0
      %p183 = por %p181, %p182
      %s185 = sadd.s32 %s184, 1
      %p188 = scmp.eq.s32.totalorder %s24, 1
      %p189 = scmp.ne.s32.totalorder %s184, %s186
      %p190 = scmp.eq.s32.totalorder %s24, 0
      %p191 = por %p189, %p190
      %p192 = scmp.ne.s32.totalorder %s184, %s186
      %p193 = scmp.eq.s32.totalorder %s29, 1
      %p194 = por %p192, %p193
      %p195 = scmp.ne.s32.totalorder %s186, %s187
      %p196 = scmp.eq.s32.totalorder %s29, 0
      %p197 = por %p195, %p196
      %p198 = scmp.ne.s32.totalorder %s186, %s187
      %p199 = scmp.eq.s32.totalorder %s30, 1
      %p200 = por %p198, %p199
      %p202 = scmp.ne.s32.totalorder %s187, %s201
      %p203 = scmp.eq.s32.totalorder %s30, 0
      %p204 = por %p202, %p203
      %s206 = sadd.s32 %s205, 1
      %p209 = scmp.eq.s32.totalorder %s24, 1
      %p210 = scmp.ne.s32.totalorder %s205, %s207
      %p211 = scmp.eq.s32.totalorder %s24, 0
      %p212 = por %p210, %p211
      %p213 = scmp.ne.s32.totalorder %s205, %s207
      %p214 = scmp.eq.s32.totalorder %s29, 1
      %p215 = por %p213, %p214
      %p216 = scmp.ne.s32.totalorder %s207, %s208
      %p217 = scmp.eq.s32.totalorder %s29, 0
      %p218 = por %p216, %p217
      %p219 = scmp.ne.s32.totalorder %s207, %s208
      %p220 = scmp.eq.s32.totalorder %s30, 1
      %p221 = por %p219, %p220
      %p223 = scmp.ne.s32.totalorder %s208, %s222
      %p224 = scmp.eq.s32.totalorder %s30, 0
      %p225 = por %p223, %p224
      %s226 = ssub.s32 %s24, %s31
      %p227 = scmp.eq.s32.totalorder %s226, 0
      %s229 = sadd.s32 %s228, 1
      %s230 = scalar_select %p227, %s228, %s229
      %p233 = pneg %p227
      %p234 = scmp.eq.s32.totalorder %s24, 1
      %p235 = por %p233, %p234
      %p236 = scmp.ne.s32.totalorder %s228, %s231
      %p237 = scmp.eq.s32.totalorder %s24, 0
      %p238 = por %p236, %p237
      %p239 = scmp.ne.s32.totalorder %s228, %s231
      %p240 = scmp.eq.s32.totalorder %s29, 1
      %p241 = por %p239, %p240
      %p242 = scmp.ne.s32.totalorder %s231, %s232
      %p243 = scmp.eq.s32.totalorder %s29, 0
      %p244 = por %p242, %p243
      %p245 = scmp.ne.s32.totalorder %s231, %s232
      %p246 = scmp.eq.s32.totalorder %s30, 1
      %p247 = por %p245, %p246
      %p249 = scmp.ne.s32.totalorder %s232, %s248
      %p250 = scmp.eq.s32.totalorder %s30, 0
      %p251 = por %p249, %p250
      %s253 = sadd.s32 %s252, 1
      %p256 = scmp.eq.s32.totalorder %s24, 1
      %p257 = scmp.ne.s32.totalorder %s252, %s254
      %p258 = scmp.eq.s32.totalorder %s24, 0
      %p259 = por %p257, %p258
      %p260 = scmp.ne.s32.totalorder %s252, %s254
      %p261 = scmp.eq.s32.totalorder %s29, 1
      %p262 = por %p260, %p261
      %p263 = scmp.ne.s32.totalorder %s254, %s255
      %p264 = scmp.eq.s32.totalorder %s29, 0
      %p265 = por %p263, %p264
      %p266 = scmp.ne.s32.totalorder %s254, %s255
      %p267 = scmp.eq.s32.totalorder %s30, 1
      %p268 = por %p266, %p267
      %p270 = scmp.ne.s32.totalorder %s255, %s269
      %p271 = scmp.eq.s32.totalorder %s30, 0
      %p272 = por %p270, %p271
      %s274 = sadd.s32 %s273, 1
      %p277 = scmp.eq.s32.totalorder %s24, 1
      %p278 = scmp.ne.s32.totalorder %s273, %s275
      %p279 = scmp.eq.s32.totalorder %s24, 0
      %p280 = por %p278, %p279
      %p281 = scmp.ne.s32.totalorder %s273, %s275
      %p282 = scmp.eq.s32.totalorder %s29, 1
      %p283 = por %p281, %p282
      %p284 = scmp.ne.s32.totalorder %s275, %s276
      %p285 = scmp.eq.s32.totalorder %s29, 0
      %p286 = por %p284, %p285
      %p287 = scmp.ne.s32.totalorder %s275, %s276
      %p288 = scmp.eq.s32.totalorder %s30, 1
      %p289 = por %p287, %p288
      %p291 = scmp.ne.s32.totalorder %s276, %s290
      %p292 = scmp.eq.s32.totalorder %s30, 0
      %p293 = por %p291, %p292
      %p294 = scmp.le.s32.totalorder 1, %s24
      %p295 = scmp.lt.s32.totalorder %s24, 3
      %p296 = pnand %p294, %p295
      %p297 = pneg %p296
      // Predicated region
      $region9: #{tpu_custom_call.1} parent=5 // pred_check
        _
      $region10: #{tpu_custom_call.1} parent=5 // pred_check_branch
        %299 = sbr.rel (%p296) target = $region12
      $region11: #{tpu_custom_call.1} parent=5 // pred_region
        %s300 = ssub.s32 %s24, 1
        // Predicated region
        $region13: #{tpu_custom_call.1} parent=11 // pred_check
          %p301 = pneg %p45
        $region14: #{tpu_custom_call.1} parent=11 // pred_check_branch
          %303 = sbr.rel (%p301) target = $region16
        $region15: #{tpu_custom_call.1} parent=11 // pred_region
          %s305 = ssub.s32 128, 128
          %306 = vsyncadd [#allocation3], %s305
          %s308 = sshll.u32 [#allocation2], 4
          %s309 = int_to_ptr.vmem [resolvable:$true] %s308
          %311 = dma.hbm_to_vmem [thread:$0]  %s0, 128, %s309, [#allocation3]
        $region16: #{tpu_custom_call.1} parent=11 // pred_fallthru
          _
        // Predicated region
        $region17: #{tpu_custom_call.1} parent=11 // pred_check
          %p312 = pneg %p66
        $region18: #{tpu_custom_call.1} parent=11 // pred_check_branch
          %314 = sbr.rel (%p312) target = $region20
        $region19: #{tpu_custom_call.1} parent=11 // pred_region
          %s316 = ssub.s32 2048, 2048
          %317 = vsyncadd [#allocation6], %s316
          %s318 = sshll.u32 [#allocation5], 4
          %s319 = int_to_ptr.vmem [resolvable:$true] %s318
          %324 = dma.hbm_to_vmem [thread:$0]  %s1, 2048, %s319, [#allocation6], 128, 128, 8
        $region20: #{tpu_custom_call.1} parent=11 // pred_fallthru
          _
        // Predicated region
        $region21: #{tpu_custom_call.1} parent=11 // pred_check
          %p325 = pneg %p113
        $region22: #{tpu_custom_call.1} parent=11 // pred_check_branch
          %327 = sbr.rel (%p325) target = $region24
        $region23: #{tpu_custom_call.1} parent=11 // pred_region
          _
        $region24: #{tpu_custom_call.1} parent=11 // pred_fallthru
          _
        // Predicated region
        $region25: #{tpu_custom_call.1} parent=11 // pred_check
          %p328 = pneg %p134
        $region26: #{tpu_custom_call.1} parent=11 // pred_check_branch
          %330 = sbr.rel (%p328) target = $region28
        $region27: #{tpu_custom_call.1} parent=11 // pred_region
          _
        $region28: #{tpu_custom_call.1} parent=11 // pred_fallthru
          _
        // Predicated region
        $region29: #{tpu_custom_call.1} parent=11 // pred_check
          %p331 = pneg %p155
        $region30: #{tpu_custom_call.1} parent=11 // pred_check_branch
          %333 = sbr.rel (%p331) target = $region32
        $region31: #{tpu_custom_call.1} parent=11 // pred_region
          %s335 = ssub.s32 1024, 1024
          %336 = vsyncadd [#allocation6], %s335
          %s337 = sshll.u32 [#allocation8], 4
          %s338 = int_to_ptr.vmem [resolvable:$true] %s337
          %343 = dma.hbm_to_vmem [thread:$0]  %s5, 1024, %s338, [#allocation6], 256, 256, 16
        $region32: #{tpu_custom_call.1} parent=11 // pred_fallthru
          _
        // Predicated region
        $region33: #{tpu_custom_call.1} parent=11 // pred_check
          %p344 = pneg %p176
        $region34: #{tpu_custom_call.1} parent=11 // pred_check_branch
          %346 = sbr.rel (%p344) target = $region36
        $region35: #{tpu_custom_call.1} parent=11 // pred_region
          _
        $region36: #{tpu_custom_call.1} parent=11 // pred_fallthru
          _
        // Predicated region
        $region37: #{tpu_custom_call.1} parent=11 // pred_check
          %p347 = pneg %p197
        $region38: #{tpu_custom_call.1} parent=11 // pred_check_branch
          %349 = sbr.rel (%p347) target = $region40
        $region39: #{tpu_custom_call.1} parent=11 // pred_region
          _
        $region40: #{tpu_custom_call.1} parent=11 // pred_fallthru
          _
        // Predicated region
        $region41: #{tpu_custom_call.1} parent=11 // pred_check
          %p350 = pneg %p218
        $region42: #{tpu_custom_call.1} parent=11 // pred_check_branch
          %352 = sbr.rel (%p350) target = $region44
        $region43: #{tpu_custom_call.1} parent=11 // pred_region
          _
        $region44: #{tpu_custom_call.1} parent=11 // pred_fallthru
          _
      $region12: #{tpu_custom_call.1} parent=5 // pred_fallthru
        _
      %p353 = scmp.lt.s32.totalorder %s24, 2
      // Predicated region
      $region45: #{tpu_custom_call.1} parent=5 // pred_check
        %p354 = pneg %p353
      $region46: #{tpu_custom_call.1} parent=5 // pred_check_branch
        %356 = sbr.rel (%p354) target = $region48
      $region47: #{tpu_custom_call.1} parent=5 // pred_region
        // Predicated region
        $region49: #{tpu_custom_call.1} parent=47 // pred_check
          %p357 = pneg %p86
        $region50: #{tpu_custom_call.1} parent=47 // pred_check_branch
          %359 = sbr.rel (%p357) target = $region52
        $region51: #{tpu_custom_call.1} parent=47 // pred_region
          %s360 = sand.u32 %s24, 1
          %s361 = scalar_lea.sflag [#allocation3], %s360
          %s362 = sand.u32 %s76, 1
          %s363 = smul.addr %s362, 1024
          %s364 = scalar_lea.vmem [#allocation7], %s363
          %s365 = smul.u32 8, %s24
          %s367 = ssub.s32 16384, 16384
          %368 = vsyncadd %s361, %s367
          %s369 = smul.addr %s365, 16
          %s370 = smul.addr %s369, 128
          %s371 = scalar_lea.hbm %s2, %s370
          %s372 = sshll.u32 %s364, 4
          %s373 = int_to_ptr.vmem [resolvable:$true] %s372
          %378 = dma.hbm_to_vmem [thread:$0]  %s371, 16384, %s373, %s361, 128, 128, 8
        $region52: #{tpu_custom_call.1} parent=47 // pred_fallthru
          _
      $region48: #{tpu_custom_call.1} parent=5 // pred_fallthru
        _
      %p379 = scmp.le.s32.totalorder 1, %s24
      %p380 = scmp.lt.s32.totalorder %s24, 3
      %p381 = pnand %p379, %p380
      %p382 = pneg %p381
      // Predicated region
      $region53: #{tpu_custom_call.1} parent=5 // pred_check
        _
      $region54: #{tpu_custom_call.1} parent=5 // pred_check_branch
        %384 = sbr.rel (%p381) target = $region56
      $region55: #{tpu_custom_call.1} parent=5 // pred_region
        %s385 = ssub.s32 %s24, 1
        // Predicated region
        $region57: #{tpu_custom_call.1} parent=55 // pred_check
          %p386 = pneg %p45
        $region58: #{tpu_custom_call.1} parent=55 // pred_check_branch
          %388 = sbr.rel (%p386) target = $region60
        $region59: #{tpu_custom_call.1} parent=55 // pred_region
          %389 = dma.done [#allocation3], 128
        $region60: #{tpu_custom_call.1} parent=55 // pred_fallthru
          _
        // Predicated region
        $region61: #{tpu_custom_call.1} parent=55 // pred_check
          %p390 = pneg %p66
        $region62: #{tpu_custom_call.1} parent=55 // pred_check_branch
          %392 = sbr.rel (%p390) target = $region64
        $region63: #{tpu_custom_call.1} parent=55 // pred_region
          %393 = dma.done [#allocation6], 2048
        $region64: #{tpu_custom_call.1} parent=55 // pred_fallthru
          _
        %s394 = sand.u32 %s29, 1
        %s395 = scalar_lea.sflag [#allocation3], %s394
        %s396 = sand.u32 %s79, 1
        %s397 = smul.addr %s396, 1024
        %s398 = scalar_lea.vmem [#allocation7], %s397
        // Predicated region
        $region65: #{tpu_custom_call.1} parent=55 // pred_check
          %p399 = pneg %p92
        $region66: #{tpu_custom_call.1} parent=55 // pred_check_branch
          %401 = sbr.rel (%p399) target = $region68
        $region67: #{tpu_custom_call.1} parent=55 // pred_region
          %402 = dma.done %s395, 16384
        $region68: #{tpu_custom_call.1} parent=55 // pred_fallthru
          _
        // Predicated region
        $region69: #{tpu_custom_call.1} parent=55 // pred_check
          %p403 = pneg %p155
        $region70: #{tpu_custom_call.1} parent=55 // pred_check_branch
          %405 = sbr.rel (%p403) target = $region72
        $region71: #{tpu_custom_call.1} parent=55 // pred_region
          %406 = dma.done [#allocation6], 1024
        $region72: #{tpu_custom_call.1} parent=55 // pred_fallthru
          _
        %p407 = pneg %p45
        %p408 = pneg %p42
        %p409 = pneg %p66
        %p410 = pneg %p63
        %s411 = sand.u32 %s29, 1
        %s412 = scalar_lea.sflag [#allocation3], %s411
        %s413 = sand.u32 %s79, 1
        %s414 = smul.addr %s413, 1024
        %s415 = scalar_lea.vmem [#allocation7], %s414
        %p416 = pneg %p92
        %p417 = pneg %p89
        %p418 = pneg %p113
        %p419 = pneg %p110
        %p420 = pneg %p134
        %p421 = pneg %p131
        %p422 = pneg %p155
        %p423 = pneg %p152
        %p424 = pneg %p176
        %p425 = pneg %p173
        %p426 = pneg %p197
        %p427 = pneg %p194
        %p428 = pneg %p218
        %p429 = pneg %p215
        %p430 = pneg %p244
        %p431 = pneg %p241
        %s432 = sand.u32 %s231, 1
        %s433 = scalar_lea.sflag [#allocation4], %s432
        %s434 = sand.u32 %s231, 1
        %s435 = smul.addr %s434, 64
        %s436 = scalar_lea.vmem [#allocation9], %s435
        %p437 = pneg %p265
        %p438 = pneg %p262
        %p439 = pneg %p286
        %p440 = pneg %p283
        %s441 = smul.u32 8, %s29
        %s442 = smul.u32 8, %s29
        %p443 = scmp.eq.s32.totalorder %s29, 0
        // Predicated region
        $region73: #{tpu_custom_call.1} parent=55 // pred_check
          %p444 = pneg %p443
        $region74: #{tpu_custom_call.1} parent=55 // pred_check_branch
          %446 = sbr.rel (%p444) target = $region76
        $region75: #{tpu_custom_call.1} parent=55 // pred_region
          %v447 = vld [vmem:[#allocation2] sm:$0xff]
          %vm448 = vcmask 261120
          %449 = vst.msk [vmem:[#allocation10] sm:$0xff] %vm448, %v447
          %v450 = vld [vmem:[#allocation5] sm:$0xff]
          %v451 = vld [vmem:[#allocation5 + $0x8] sm:$0xff]
          %v452 = vld [vmem:[#allocation5 + $0x10] sm:$0xff]
          %v453 = vld [vmem:[#allocation5 + $0x18] sm:$0xff]
          %v454 = vld [vmem:[#allocation5 + $0x20] sm:$0xff]
          %v455 = vld [vmem:[#allocation5 + $0x28] sm:$0xff]
          %v456 = vld [vmem:[#allocation5 + $0x30] sm:$0xff]
          %v457 = vld [vmem:[#allocation5 + $0x38] sm:$0xff]
          %v458 = vld [vmem:[#allocation5 + $0x40] sm:$0xff]
          %v459 = vld [vmem:[#allocation5 + $0x48] sm:$0xff]
          %v460 = vld [vmem:[#allocation5 + $0x50] sm:$0xff]
          %v461 = vld [vmem:[#allocation5 + $0x58] sm:$0xff]
          %v462 = vld [vmem:[#allocation5 + $0x60] sm:$0xff]
          %v463 = vld [vmem:[#allocation5 + $0x68] sm:$0xff]
          %v464 = vld [vmem:[#allocation5 + $0x70] sm:$0xff]
          %v465 = vld [vmem:[#allocation5 + $0x78] sm:$0xff]
          %466 = vst [vmem:[#allocation12] sm:$0xff] %v450
          %467 = vst [vmem:[#allocation12 + $0x8] sm:$0xff] %v451
          %468 = vst [vmem:[#allocation12 + $0x10] sm:$0xff] %v452
          %469 = vst [vmem:[#allocation12 + $0x18] sm:$0xff] %v453
          %470 = vst [vmem:[#allocation12 + $0x20] sm:$0xff] %v454
          %471 = vst [vmem:[#allocation12 + $0x28] sm:$0xff] %v455
          %472 = vst [vmem:[#allocation12 + $0x30] sm:$0xff] %v456
          %473 = vst [vmem:[#allocation12 + $0x38] sm:$0xff] %v457
          %474 = vst [vmem:[#allocation12 + $0x40] sm:$0xff] %v458
          %475 = vst [vmem:[#allocation12 + $0x48] sm:$0xff] %v459
          %476 = vst [vmem:[#allocation12 + $0x50] sm:$0xff] %v460
          %477 = vst [vmem:[#allocation12 + $0x58] sm:$0xff] %v461
          %478 = vst [vmem:[#allocation12 + $0x60] sm:$0xff] %v462
          %479 = vst [vmem:[#allocation12 + $0x68] sm:$0xff] %v463
          %480 = vst [vmem:[#allocation12 + $0x70] sm:$0xff] %v464
          %481 = vst [vmem:[#allocation12 + $0x78] sm:$0xff] %v465
        $region76: #{tpu_custom_call.1} parent=55 // pred_fallthru
          _
        %v482 = vld [vmem:[#allocation10] sm:$0xff]
        %v483 = vld [vmem:[#allocation12] sm:$0xff]
        %v484 = vld [vmem:[#allocation12 + $0x8] sm:$0xff]
        %v485 = vld [vmem:[#allocation12 + $0x10] sm:$0xff]
        %v486 = vld [vmem:[#allocation12 + $0x18] sm:$0xff]
        %v487 = vld [vmem:[#allocation12 + $0x20] sm:$0xff]
        %v488 = vld [vmem:[#allocation12 + $0x28] sm:$0xff]
        %v489 = vld [vmem:[#allocation12 + $0x30] sm:$0xff]
        %v490 = vld [vmem:[#allocation12 + $0x38] sm:$0xff]
        %v491 = vld [vmem:[#allocation12 + $0x40] sm:$0xff]
        %v492 = vld [vmem:[#allocation12 + $0x48] sm:$0xff]
        %v493 = vld [vmem:[#allocation12 + $0x50] sm:$0xff]
        %v494 = vld [vmem:[#allocation12 + $0x58] sm:$0xff]
        %v495 = vld [vmem:[#allocation12 + $0x60] sm:$0xff]
        %v496 = vld [vmem:[#allocation12 + $0x68] sm:$0xff]
        %v497 = vld [vmem:[#allocation12 + $0x70] sm:$0xff]
        %v498 = vld [vmem:[#allocation12 + $0x78] sm:$0xff]
        loop: start=0, step=1, limit=8
        $region77: #{tpu_custom_call.1} parent=55 // loop_pre_header
          _
        $region78: #{tpu_custom_call.1} parent=55 // loop_header
          %s500 = sphi 0, %s504
          %p501 = scmp.ge.s32.totalorder %s500, 8
          %v505 = vphi %v482, %v2791
          %v506 = vphi %v483, %v3177
          %v507 = vphi %v484, %v3178
          %v508 = vphi %v485, %v3179
          %v509 = vphi %v486, %v3180
          %v510 = vphi %v487, %v3181
          %v511 = vphi %v488, %v3182
          %v512 = vphi %v489, %v3183
          %v513 = vphi %v490, %v3184
          %v514 = vphi %v491, %v3185
          %v515 = vphi %v492, %v3186
          %v516 = vphi %v493, %v3187
          %v517 = vphi %v494, %v3188
          %v518 = vphi %v495, %v3189
          %v519 = vphi %v496, %v3190
          %v520 = vphi %v497, %v3191
          %v521 = vphi %v498, %v3192
        $region79: #{tpu_custom_call.1} parent=55 // loop_header_branch
          %503 = sbr.rel (%p501) target = $region83
        $region80: #{tpu_custom_call.1} parent=55 // loop_body
          %s522 = smul.u32 %s500, 128
          %s523 = scalar_lea.vmem %s398, %s522 [#allocation7]
          %v524 = vld [vmem:[%s523] sm:$0xff]
          %v525 = vld [vmem:[%s523 + $0x8] sm:$0xff]
          %v526 = vld [vmem:[%s523 + $0x10] sm:$0xff]
          %v527 = vld [vmem:[%s523 + $0x18] sm:$0xff]
          %v528 = vld [vmem:[%s523 + $0x20] sm:$0xff]
          %v529 = vld [vmem:[%s523 + $0x28] sm:$0xff]
          %v530 = vld [vmem:[%s523 + $0x30] sm:$0xff]
          %v531 = vld [vmem:[%s523 + $0x38] sm:$0xff]
          %v532 = vld [vmem:[%s523 + $0x40] sm:$0xff]
          %v533 = vld [vmem:[%s523 + $0x48] sm:$0xff]
          %v534 = vld [vmem:[%s523 + $0x50] sm:$0xff]
          %v535 = vld [vmem:[%s523 + $0x58] sm:$0xff]
          %v536 = vld [vmem:[%s523 + $0x60] sm:$0xff]
          %v537 = vld [vmem:[%s523 + $0x68] sm:$0xff]
          %v538 = vld [vmem:[%s523 + $0x70] sm:$0xff]
          %v539 = vld [vmem:[%s523 + $0x78] sm:$0xff]
          %v540 = vld [vmem:[%s3] sm:$0xff]
          %v541 = vld [vmem:[%s3 + $0x8] sm:$0xff]
          %v542 = vld [vmem:[%s3 + $0x10] sm:$0xff]
          %v543 = vld [vmem:[%s3 + $0x18] sm:$0xff]
          %v544 = vld [vmem:[%s3 + $0x20] sm:$0xff]
          %v545 = vld [vmem:[%s3 + $0x28] sm:$0xff]
          %v546 = vld [vmem:[%s3 + $0x30] sm:$0xff]
          %v547 = vld [vmem:[%s3 + $0x38] sm:$0xff]
          %v548 = vld [vmem:[%s4] sm:$0x3]
          %v550 = vlaneseq
          %v551 = vshrl.u32 %v550, 7
          %v552 = vsub.s32 0, %v551
          %v553 = vrot.slane %v548, %v552
          %v554 = vlaneseq
          %v555 = vshrl.u32 %v554, 7
          %v556 = vsub.s32 1, %v555
          %v557 = vrot.slane %v548, %v556
          %vm560 = vcmask 261120
          %v562 = vsel %vm560, %v505, 0
          %564 = vmatprep.subr.mxu0 %v541
          %565 = vmatpush1.msra.mxu0 %v540
          %566 = vmatprep.subr.mxu0 %v543
          %567 = vmatpush1.msra.mxu0 %v542
          %568 = vmatprep.subr.mxu0 %v545
          %569 = vmatpush1.msra.mxu0 %v544
          %570 = vmatprep.subr.mxu0 %v547
          %571 = vmatpush1.msra.mxu0 %v546
          %572 = vmatprep.subr.mxu0 0.0
          %573 = vmatpush1.msra.mxu0 0.0
          %574 = vmatprep.subr.mxu0 0.0
          %575 = vmatpush1.msra.mxu0 0.0
          %576 = vmatprep.subr.mxu0 0.0
          %577 = vmatpush1.msra.mxu0 0.0
          %578 = vmatprep.subr.mxu0 0.0
          %579 = vmatpush1.msra.mxu0 0.0
          %580 = vmatprep.subr.mxu0 0.0
          %581 = vmatpush1.msra.mxu0 0.0
          %582 = vmatprep.subr.mxu0 0.0
          %583 = vmatpush1.msra.mxu0 0.0
          %584 = vmatprep.subr.mxu0 0.0
          %585 = vmatpush1.msra.mxu0 0.0
          %586 = vmatprep.subr.mxu0 0.0
          %587 = vmatpush1.msra.mxu0 0.0
          %588 = vmatprep.subr.mxu0 0.0
          %589 = vmatpush1.msra.mxu0 0.0
          %590 = vmatprep.subr.mxu0 0.0
          %591 = vmatpush1.msra.mxu0 0.0
          %592 = vmatprep.subr.mxu0 0.0
          %593 = vmatpush1.msra.mxu0 0.0
          %594 = vmatprep.subr.mxu0 0.0
          %595 = vmatpush1.msra.mxu0 0.0
          %596 = vmatprep.subr.mxu0 0.0
          %597 = vmatpush1.msra.mxu0 0.0
          %598 = vmatprep.subr.mxu0 0.0
          %599 = vmatpush1.msra.mxu0 0.0
          %600 = vmatprep.subr.mxu0 0.0
          %601 = vmatpush1.msra.mxu0 0.0
          %602 = vmatprep.subr.mxu0 0.0
          %603 = vmatpush1.msra.mxu0 0.0
          %604 = vmatprep.subr.mxu0 0.0
          %605 = vmatpush1.msra.mxu0 0.0
          %606 = vmatprep.subr.mxu0 0.0
          %607 = vmatpush1.msra.mxu0 0.0
          %608 = vmatprep.subr.mxu0 0.0
          %609 = vmatpush1.msra.mxu0 0.0
          %610 = vmatprep.subr.mxu0 0.0
          %611 = vmatpush1.msra.mxu0 0.0
          %612 = vmatprep.subr.mxu0 0.0
          %613 = vmatpush1.msra.mxu0 0.0
          %614 = vmatprep.subr.mxu0 0.0
          %615 = vmatpush1.msra.mxu0 0.0
          %616 = vmatprep.subr.mxu0 0.0
          %617 = vmatpush1.msra.mxu0 0.0
          %618 = vmatprep.subr.mxu0 0.0
          %619 = vmatpush1.msra.mxu0 0.0
          %620 = vmatprep.subr.mxu0 0.0
          %621 = vmatpush1.msra.mxu0 0.0
          %622 = vmatprep.subr.mxu0 0.0
          %623 = vmatpush1.msra.mxu0 0.0
          %624 = vmatprep.subr.mxu0 0.0
          %625 = vmatpush1.msra.mxu0 0.0
          %626 = vmatprep.subr.mxu0 0.0
          %627 = vmatpush1.msra.mxu0 0.0
          %628 = vmatprep.mubr.f32.mxu0 0.0
          %629 = vmatmul.mubr.f32.gmra.mrb[0].mxu0 %v562
          %v630 = vpop.f32.mrb[0].mxu0
          %v631 = vadd.f32 %v553, %v630
          %v632 = vpop.f32.mrb[0].mxu0
          %v633 = vadd.f32 %v557, %v632
          %634 = vdwg.mxu0
          %v635 = vmax.f32 %v633, 0.0
          %v636 = vadd.f32 %v635, 1.0
          %v637 = vand.u32 2147483647, %v633
          %v638 = vsub.f32 0.0, %v637
          %v639 = vmul.f32 %v638, 1.442695
          %v640 = vpow.pop %v639
          %v641 = vadd.f32 %v640, 1.0
          %v642 = vlog2.pop %v641
          %v643 = vmul.f32 %v642, 0.6931472
          %v644 = vadd.f32 %v636, %v643
          %v646 = vcombine.high %v644, %v644
          %v648 = vunpack.c.l.s4 1966171168
          %v649 = vunpack.c.0.s8 %v648
          %v650 = vlaneseq
          %v651 = vshrl.u32 %v650, 7
          %v652 = vsub.s32 %v649, %v651
          %v653 = vrot.slane %v644, %v652
          %v655 = vunpack.c.l.s4 1966171168
          %v656 = vunpack.c.0.s8 %v655
          %v657 = vlaneseq
          %v658 = vshrl.u32 %v657, 7
          %v659 = vsub.s32 %v656, %v658
          %v660 = vrot.slane %v646, %v659
          %v661 = vcombine.high %v653, %v653
          %v662 = vcombine.high %v660, %v660
          %v664 = vunpack.c.l.s4 1966171168
          %v665 = vunpack.c.0.s8 %v664
          %v666 = vlaneseq
          %v667 = vshrl.u32 %v666, 7
          %v668 = vsub.s32 %v665, %v667
          %v669 = vrot.slane %v653, %v668
          %v671 = vunpack.c.l.s4 1966171168
          %v672 = vunpack.c.0.s8 %v671
          %v673 = vlaneseq
          %v674 = vshrl.u32 %v673, 7
          %v675 = vsub.s32 %v672, %v674
          %v676 = vrot.slane %v660, %v675
          %v678 = vunpack.c.l.s4 1966171168
          %v679 = vunpack.c.0.s8 %v678
          %v680 = vlaneseq
          %v681 = vshrl.u32 %v680, 7
          %v682 = vsub.s32 %v679, %v681
          %v683 = vrot.slane %v661, %v682
          %v685 = vunpack.c.l.s4 1966171168
          %v686 = vunpack.c.0.s8 %v685
          %v687 = vlaneseq
          %v688 = vshrl.u32 %v687, 7
          %v689 = vsub.s32 %v686, %v688
          %v690 = vrot.slane %v662, %v689
          %v691 = vcombine.high %v669, %v669
          %v692 = vcombine.high %v676, %v676
          %v693 = vcombine.high %v683, %v683
          %v694 = vcombine.high %v690, %v690
          %v696 = vcombine.high %v631, %v631
          %v698 = vunpack.c.l.s4 1966171168
          %v699 = vunpack.c.0.s8 %v698
          %v700 = vlaneseq
          %v701 = vshrl.u32 %v700, 7
          %v702 = vsub.s32 %v699, %v701
          %v703 = vrot.slane %v631, %v702
          %v705 = vunpack.c.l.s4 1966171168
          %v706 = vunpack.c.0.s8 %v705
          %v707 = vlaneseq
          %v708 = vshrl.u32 %v707, 7
          %v709 = vsub.s32 %v706, %v708
          %v710 = vrot.slane %v696, %v709
          %v711 = vcombine.high %v703, %v703
          %v712 = vcombine.high %v710, %v710
          %v714 = vunpack.c.l.s4 1966171168
          %v715 = vunpack.c.0.s8 %v714
          %v716 = vlaneseq
          %v717 = vshrl.u32 %v716, 7
          %v718 = vsub.s32 %v715, %v717
          %v719 = vrot.slane %v703, %v718
          %v721 = vunpack.c.l.s4 1966171168
          %v722 = vunpack.c.0.s8 %v721
          %v723 = vlaneseq
          %v724 = vshrl.u32 %v723, 7
          %v725 = vsub.s32 %v722, %v724
          %v726 = vrot.slane %v710, %v725
          %v728 = vunpack.c.l.s4 1966171168
          %v729 = vunpack.c.0.s8 %v728
          %v730 = vlaneseq
          %v731 = vshrl.u32 %v730, 7
          %v732 = vsub.s32 %v729, %v731
          %v733 = vrot.slane %v711, %v732
          %v735 = vunpack.c.l.s4 1966171168
          %v736 = vunpack.c.0.s8 %v735
          %v737 = vlaneseq
          %v738 = vshrl.u32 %v737, 7
          %v739 = vsub.s32 %v736, %v738
          %v740 = vrot.slane %v712, %v739
          %v741 = vcombine.high %v719, %v719
          %v742 = vcombine.high %v726, %v726
          %v743 = vcombine.high %v733, %v733
          %v744 = vcombine.high %v740, %v740
          %v745 = vmul.f32 %v631, %v631
          %746 = vmatprep.subr.mxu0 0.0
          %747 = vmatpush1.msra.mxu0 1.0
          %748 = vmatprep.subr.mxu0 0.0
          %749 = vmatpush1.msra.mxu0 1.0
          %750 = vmatprep.subr.mxu0 0.0
          %751 = vmatpush1.msra.mxu0 1.0
          %752 = vmatprep.subr.mxu0 0.0
          %753 = vmatpush1.msra.mxu0 1.0
          %754 = vmatprep.subr.mxu0 0.0
          %755 = vmatpush1.msra.mxu0 1.0
          %756 = vmatprep.subr.mxu0 0.0
          %757 = vmatpush1.msra.mxu0 1.0
          %758 = vmatprep.subr.mxu0 0.0
          %759 = vmatpush1.msra.mxu0 1.0
          %760 = vmatprep.subr.mxu0 0.0
          %761 = vmatpush1.msra.mxu0 1.0
          %762 = vmatprep.subr.mxu0 0.0
          %763 = vmatpush1.msra.mxu0 1.0
          %764 = vmatprep.subr.mxu0 0.0
          %765 = vmatpush1.msra.mxu0 1.0
          %766 = vmatprep.subr.mxu0 0.0
          %767 = vmatpush1.msra.mxu0 1.0
          %768 = vmatprep.subr.mxu0 0.0
          %769 = vmatpush1.msra.mxu0 1.0
          %770 = vmatprep.subr.mxu0 0.0
          %771 = vmatpush1.msra.mxu0 1.0
          %772 = vmatprep.subr.mxu0 0.0
          %773 = vmatpush1.msra.mxu0 1.0
          %774 = vmatprep.subr.mxu0 0.0
          %775 = vmatpush1.msra.mxu0 1.0
          %776 = vmatprep.subr.mxu0 0.0
          %777 = vmatpush1.msra.mxu0 1.0
          %778 = vmatprep.subr.mxu0 0.0
          %779 = vmatpush1.msra.mxu0 0.0
          %780 = vmatprep.subr.mxu0 0.0
          %781 = vmatpush1.msra.mxu0 0.0
          %782 = vmatprep.subr.mxu0 0.0
          %783 = vmatpush1.msra.mxu0 0.0
          %784 = vmatprep.subr.mxu0 0.0
          %785 = vmatpush1.msra.mxu0 0.0
          %786 = vmatprep.subr.mxu0 0.0
          %787 = vmatpush1.msra.mxu0 0.0
          %788 = vmatprep.subr.mxu0 0.0
          %789 = vmatpush1.msra.mxu0 0.0
          %790 = vmatprep.subr.mxu0 0.0
          %791 = vmatpush1.msra.mxu0 0.0
          %792 = vmatprep.subr.mxu0 0.0
          %793 = vmatpush1.msra.mxu0 0.0
          %794 = vmatprep.subr.mxu0 0.0
          %795 = vmatpush1.msra.mxu0 0.0
          %796 = vmatprep.subr.mxu0 0.0
          %797 = vmatpush1.msra.mxu0 0.0
          %798 = vmatprep.subr.mxu0 0.0
          %799 = vmatpush1.msra.mxu0 0.0
          %800 = vmatprep.subr.mxu0 0.0
          %801 = vmatpush1.msra.mxu0 0.0
          %802 = vmatprep.subr.mxu0 0.0
          %803 = vmatpush1.msra.mxu0 0.0
          %804 = vmatprep.subr.mxu0 0.0
          %805 = vmatpush1.msra.mxu0 0.0
          %806 = vmatprep.subr.mxu0 0.0
          %807 = vmatpush1.msra.mxu0 0.0
          %808 = vmatprep.subr.mxu0 0.0
          %809 = vmatpush1.msra.mxu0 0.0
          %810 = vmatprep.mubr.f32.mxu0 0.0
          %811 = vmatmul.mubr.f32.gmra.mrb[0].mxu0 %v745
          %v812 = vpop.f32.mrb[0].mxu0
          %v813 = vadd.f32 0.0, %v812
          %v814 = vpop.f32.mrb[0].mxu0
          %815 = vdwg.mxu0
          %v816 = vrsqrt.pop %v813
          %v817 = vmul.f32 %v813, %v816
          %vm818 = vcmp.eq.f32.partialorder %v813, inf
          %v819 = vsel %vm818, %v813, %v817
          %vm820 = vcmp.eq.f32.partialorder %v813, 0.0
          %v821 = vand.u32 %v813, 2147483648
          %v822 = vsel %vm820, %v821, %v819
          %v823 = vmax.f32 %v822, 1e-08
          %v825 = vcombine.high %v823, %v823
          %v827 = vunpack.c.l.s4 1966171168
          %v828 = vunpack.c.0.s8 %v827
          %v829 = vlaneseq
          %v830 = vshrl.u32 %v829, 7
          %v831 = vsub.s32 %v828, %v830
          %v832 = vrot.slane %v823, %v831
          %v834 = vunpack.c.l.s4 1966171168
          %v835 = vunpack.c.0.s8 %v834
          %v836 = vlaneseq
          %v837 = vshrl.u32 %v836, 7
          %v838 = vsub.s32 %v835, %v837
          %v839 = vrot.slane %v825, %v838
          %v840 = vcombine.high %v832, %v832
          %v841 = vcombine.high %v839, %v839
          %v843 = vunpack.c.l.s4 1966171168
          %v844 = vunpack.c.0.s8 %v843
          %v845 = vlaneseq
          %v846 = vshrl.u32 %v845, 7
          %v847 = vsub.s32 %v844, %v846
          %v848 = vrot.slane %v832, %v847
          %v850 = vunpack.c.l.s4 1966171168
          %v851 = vunpack.c.0.s8 %v850
          %v852 = vlaneseq
          %v853 = vshrl.u32 %v852, 7
          %v854 = vsub.s32 %v851, %v853
          %v855 = vrot.slane %v839, %v854
          %v857 = vunpack.c.l.s4 1966171168
          %v858 = vunpack.c.0.s8 %v857
          %v859 = vlaneseq
          %v860 = vshrl.u32 %v859, 7
          %v861 = vsub.s32 %v858, %v860
          %v862 = vrot.slane %v840, %v861
          %v864 = vunpack.c.l.s4 1966171168
          %v865 = vunpack.c.0.s8 %v864
          %v866 = vlaneseq
          %v867 = vshrl.u32 %v866, 7
          %v868 = vsub.s32 %v865, %v867
          %v869 = vrot.slane %v841, %v868
          %v870 = vcombine.high %v848, %v848
          %v871 = vcombine.high %v855, %v855
          %v872 = vcombine.high %v862, %v862
          %v873 = vcombine.high %v869, %v869
          %v874 = vlaneseq
          %v875 = vshrl.u32 %v874, 7
          %v876 = vsub.s32 0, %v875
          %v877 = vrot.slane %v719, %v876
          %v878 = vlaneseq
          %v879 = vshrl.u32 %v878, 7
          %v880 = vsub.s32 0, %v879
          %v881 = vrot.slane %v733, %v880
          %v882 = vlaneseq
          %v883 = vshrl.u32 %v882, 7
          %v884 = vsub.s32 0, %v883
          %v885 = vrot.slane %v741, %v884
          %v886 = vlaneseq
          %v887 = vshrl.u32 %v886, 7
          %v888 = vsub.s32 0, %v887
          %v889 = vrot.slane %v743, %v888
          %v890 = vlaneseq
          %v891 = vshrl.u32 %v890, 7
          %v892 = vsub.s32 0, %v891
          %v893 = vrot.slane %v726, %v892
          %v894 = vlaneseq
          %v895 = vshrl.u32 %v894, 7
          %v896 = vsub.s32 0, %v895
          %v897 = vrot.slane %v740, %v896
          %v898 = vlaneseq
          %v899 = vshrl.u32 %v898, 7
          %v900 = vsub.s32 0, %v899
          %v901 = vrot.slane %v742, %v900
          %v902 = vlaneseq
          %v903 = vshrl.u32 %v902, 7
          %v904 = vsub.s32 0, %v903
          %v905 = vrot.slane %v744, %v904
          %v914 = vmul.f32 %v524, %v877
          %v915 = vmul.f32 %v525, %v877
          %v916 = vmul.f32 %v526, %v881
          %v917 = vmul.f32 %v527, %v881
          %v918 = vmul.f32 %v528, %v885
          %v919 = vmul.f32 %v529, %v885
          %v920 = vmul.f32 %v530, %v889
          %v921 = vmul.f32 %v531, %v889
          %v922 = vmul.f32 %v532, %v893
          %v923 = vmul.f32 %v533, %v893
          %v924 = vmul.f32 %v534, %v897
          %v925 = vmul.f32 %v535, %v897
          %v926 = vmul.f32 %v536, %v901
          %v927 = vmul.f32 %v537, %v901
          %v928 = vmul.f32 %v538, %v905
          %v929 = vmul.f32 %v539, %v905
          %930 = vmatprep.subr.mxu0 0.0
          %931 = vmatpush1.msra.mxu0 1.0
          %932 = vmatprep.subr.mxu0 0.0
          %933 = vmatpush1.msra.mxu0 1.0
          %934 = vmatprep.subr.mxu0 0.0
          %935 = vmatpush1.msra.mxu0 1.0
          %936 = vmatprep.subr.mxu0 0.0
          %937 = vmatpush1.msra.mxu0 1.0
          %938 = vmatprep.subr.mxu0 0.0
          %939 = vmatpush1.msra.mxu0 1.0
          %940 = vmatprep.subr.mxu0 0.0
          %941 = vmatpush1.msra.mxu0 1.0
          %942 = vmatprep.subr.mxu0 0.0
          %943 = vmatpush1.msra.mxu0 1.0
          %944 = vmatprep.subr.mxu0 0.0
          %945 = vmatpush1.msra.mxu0 1.0
          %946 = vmatprep.subr.mxu0 0.0
          %947 = vmatpush1.msra.mxu0 1.0
          %948 = vmatprep.subr.mxu0 0.0
          %949 = vmatpush1.msra.mxu0 1.0
          %950 = vmatprep.subr.mxu0 0.0
          %951 = vmatpush1.msra.mxu0 1.0
          %952 = vmatprep.subr.mxu0 0.0
          %953 = vmatpush1.msra.mxu0 1.0
          %954 = vmatprep.subr.mxu0 0.0
          %955 = vmatpush1.msra.mxu0 1.0
          %956 = vmatprep.subr.mxu0 0.0
          %957 = vmatpush1.msra.mxu0 1.0
          %958 = vmatprep.subr.mxu0 0.0
          %959 = vmatpush1.msra.mxu0 1.0
          %960 = vmatprep.subr.mxu0 0.0
          %961 = vmatpush1.msra.mxu0 1.0
          %962 = vmatprep.subr.mxu0 0.0
          %963 = vmatpush1.msra.mxu0 0.0
          %964 = vmatprep.subr.mxu0 0.0
          %965 = vmatpush1.msra.mxu0 0.0
          %966 = vmatprep.subr.mxu0 0.0
          %967 = vmatpush1.msra.mxu0 0.0
          %968 = vmatprep.subr.mxu0 0.0
          %969 = vmatpush1.msra.mxu0 0.0
          %970 = vmatprep.subr.mxu0 0.0
          %971 = vmatpush1.msra.mxu0 0.0
          %972 = vmatprep.subr.mxu0 0.0
          %973 = vmatpush1.msra.mxu0 0.0
          %974 = vmatprep.subr.mxu0 0.0
          %975 = vmatpush1.msra.mxu0 0.0
          %976 = vmatprep.subr.mxu0 0.0
          %977 = vmatpush1.msra.mxu0 0.0
          %978 = vmatprep.subr.mxu0 0.0
          %979 = vmatpush1.msra.mxu0 0.0
          %980 = vmatprep.subr.mxu0 0.0
          %981 = vmatpush1.msra.mxu0 0.0
          %982 = vmatprep.subr.mxu0 0.0
          %983 = vmatpush1.msra.mxu0 0.0
          %984 = vmatprep.subr.mxu0 0.0
          %985 = vmatpush1.msra.mxu0 0.0
          %986 = vmatprep.subr.mxu0 0.0
          %987 = vmatpush1.msra.mxu0 0.0
          %988 = vmatprep.subr.mxu0 0.0
          %989 = vmatpush1.msra.mxu0 0.0
          %990 = vmatprep.subr.mxu0 0.0
          %991 = vmatpush1.msra.mxu0 0.0
          %992 = vmatprep.subr.mxu0 0.0
          %993 = vmatpush1.msra.mxu0 0.0
          %994 = vmatprep.mubr.f32.mxu0 0.0
          %995 = vmatmul.mubr.f32.gmra.mrb[0].mxu0 %v914
          %v996 = vpop.f32.mrb[0].mxu0
          %v997 = vadd.f32 0.0, %v996
          %v998 = vpop.f32.mrb[0].mxu0
          %999 = vmatprep.mubr.f32.mxu0 0.0
          %1000 = vmatmul.mubr.f32.gmra.mrb[0].mxu0 %v915
          %v1001 = vpop.f32.mrb[0].mxu0
          %v1002 = vadd.f32 0.0, %v1001
          %v1003 = vpop.f32.mrb[0].mxu0
          %1004 = vmatprep.mubr.f32.mxu0 0.0
          %1005 = vmatmul.mubr.f32.gmra.mrb[0].mxu0 %v916
          %v1006 = vpop.f32.mrb[0].mxu0
          %v1007 = vadd.f32 0.0, %v1006
          %v1008 = vpop.f32.mrb[0].mxu0
          %1009 = vmatprep.mubr.f32.mxu0 0.0
          %1010 = vmatmul.mubr.f32.gmra.mrb[0].mxu0 %v917
          %v1011 = vpop.f32.mrb[0].mxu0
          %v1012 = vadd.f32 0.0, %v1011
          %v1013 = vpop.f32.mrb[0].mxu0
          %1014 = vmatprep.mubr.f32.mxu0 0.0
          %1015 = vmatmul.mubr.f32.gmra.mrb[0].mxu0 %v918
          %v1016 = vpop.f32.mrb[0].mxu0
          %v1017 = vadd.f32 0.0, %v1016
          %v1018 = vpop.f32.mrb[0].mxu0
          %1019 = vmatprep.mubr.f32.mxu0 0.0
          %1020 = vmatmul.mubr.f32.gmra.mrb[0].mxu0 %v919
          %v1021 = vpop.f32.mrb[0].mxu0
          %v1022 = vadd.f32 0.0, %v1021
          %v1023 = vpop.f32.mrb[0].mxu0
          %1024 = vmatprep.mubr.f32.mxu0 0.0
          %1025 = vmatmul.mubr.f32.gmra.mrb[0].mxu0 %v920
          %v1026 = vpop.f32.mrb[0].mxu0
          %v1027 = vadd.f32 0.0, %v1026
          %v1028 = vpop.f32.mrb[0].mxu0
          %1029 = vmatprep.mubr.f32.mxu0 0.0
          %1030 = vmatmul.mubr.f32.gmra.mrb[0].mxu0 %v921
          %v1031 = vpop.f32.mrb[0].mxu0
          %v1032 = vadd.f32 0.0, %v1031
          %v1033 = vpop.f32.mrb[0].mxu0
          %1034 = vmatprep.mubr.f32.mxu0 0.0
          %1035 = vmatmul.mubr.f32.gmra.mrb[0].mxu0 %v922
          %v1036 = vpop.f32.mrb[0].mxu0
          %v1037 = vadd.f32 0.0, %v1036
          %v1038 = vpop.f32.mrb[0].mxu0
          %1039 = vmatprep.mubr.f32.mxu0 0.0
          %1040 = vmatmul.mubr.f32.gmra.mrb[0].mxu0 %v923
          %v1041 = vpop.f32.mrb[0].mxu0
          %v1042 = vadd.f32 0.0, %v1041
          %v1043 = vpop.f32.mrb[0].mxu0
          %1044 = vmatprep.mubr.f32.mxu0 0.0
          %1045 = vmatmul.mubr.f32.gmra.mrb[0].mxu0 %v924
          %v1046 = vpop.f32.mrb[0].mxu0
          %v1047 = vadd.f32 0.0, %v1046
          %v1048 = vpop.f32.mrb[0].mxu0
          %1049 = vmatprep.mubr.f32.mxu0 0.0
          %1050 = vmatmul.mubr.f32.gmra.mrb[0].mxu0 %v925
          %v1051 = vpop.f32.mrb[0].mxu0
          %v1052 = vadd.f32 0.0, %v1051
          %v1053 = vpop.f32.mrb[0].mxu0
          %1054 = vmatprep.mubr.f32.mxu0 0.0
          %1055 = vmatmul.mubr.f32.gmra.mrb[0].mxu0 %v926
          %v1056 = vpop.f32.mrb[0].mxu0
          %v1057 = vadd.f32 0.0, %v1056
          %v1058 = vpop.f32.mrb[0].mxu0
          %1059 = vmatprep.mubr.f32.mxu0 0.0
          %1060 = vmatmul.mubr.f32.gmra.mrb[0].mxu0 %v927
          %v1061 = vpop.f32.mrb[0].mxu0
          %v1062 = vadd.f32 0.0, %v1061
          %v1063 = vpop.f32.mrb[0].mxu0
          %1064 = vmatprep.mubr.f32.mxu0 0.0
          %1065 = vmatmul.mubr.f32.gmra.mrb[0].mxu0 %v928
          %v1066 = vpop.f32.mrb[0].mxu0
          %v1067 = vadd.f32 0.0, %v1066
          %v1068 = vpop.f32.mrb[0].mxu0
          %1069 = vmatprep.mubr.f32.mxu0 0.0
          %1070 = vmatmul.mubr.f32.gmra.mrb[0].mxu0 %v929
          %v1071 = vpop.f32.mrb[0].mxu0
          %v1072 = vadd.f32 0.0, %v1071
          %v1073 = vpop.f32.mrb[0].mxu0
          %1074 = vdwg.mxu0
          %v1075 = vmul.f32 %v524, %v524
          %v1076 = vmul.f32 %v525, %v525
          %v1077 = vmul.f32 %v526, %v526
          %v1078 = vmul.f32 %v527, %v527
          %v1079 = vmul.f32 %v528, %v528
          %v1080 = vmul.f32 %v529, %v529
          %v1081 = vmul.f32 %v530, %v530
          %v1082 = vmul.f32 %v531, %v531
          %v1083 = vmul.f32 %v532, %v532
          %v1084 = vmul.f32 %v533, %v533
          %v1085 = vmul.f32 %v534, %v534
          %v1086 = vmul.f32 %v535, %v535
          %v1087 = vmul.f32 %v536, %v536
          %v1088 = vmul.f32 %v537, %v537
          %v1089 = vmul.f32 %v538, %v538
          %v1090 = vmul.f32 %v539, %v539
          %1091 = vmatprep.subr.mxu0 0.0
          %1092 = vmatpush1.msra.mxu0 1.0
          %1093 = vmatprep.subr.mxu0 0.0
          %1094 = vmatpush1.msra.mxu0 1.0
          %1095 = vmatprep.subr.mxu0 0.0
          %1096 = vmatpush1.msra.mxu0 1.0
          %1097 = vmatprep.subr.mxu0 0.0
          %1098 = vmatpush1.msra.mxu0 1.0
          %1099 = vmatprep.subr.mxu0 0.0
          %1100 = vmatpush1.msra.mxu0 1.0
          %1101 = vmatprep.subr.mxu0 0.0
          %1102 = vmatpush1.msra.mxu0 1.0
          %1103 = vmatprep.subr.mxu0 0.0
          %1104 = vmatpush1.msra.mxu0 1.0
          %1105 = vmatprep.subr.mxu0 0.0
          %1106 = vmatpush1.msra.mxu0 1.0
          %1107 = vmatprep.subr.mxu0 0.0
          %1108 = vmatpush1.msra.mxu0 1.0
          %1109 = vmatprep.subr.mxu0 0.0
          %1110 = vmatpush1.msra.mxu0 1.0
          %1111 = vmatprep.subr.mxu0 0.0
          %1112 = vmatpush1.msra.mxu0 1.0
          %1113 = vmatprep.subr.mxu0 0.0
          %1114 = vmatpush1.msra.mxu0 1.0
          %1115 = vmatprep.subr.mxu0 0.0
          %1116 = vmatpush1.msra.mxu0 1.0
          %1117 = vmatprep.subr.mxu0 0.0
          %1118 = vmatpush1.msra.mxu0 1.0
          %1119 = vmatprep.subr.mxu0 0.0
          %1120 = vmatpush1.msra.mxu0 1.0
          %1121 = vmatprep.subr.mxu0 0.0
          %1122 = vmatpush1.msra.mxu0 1.0
          %1123 = vmatprep.subr.mxu0 0.0
          %1124 = vmatpush1.msra.mxu0 0.0
          %1125 = vmatprep.subr.mxu0 0.0
          %1126 = vmatpush1.msra.mxu0 0.0
          %1127 = vmatprep.subr.mxu0 0.0
          %1128 = vmatpush1.msra.mxu0 0.0
          %1129 = vmatprep.subr.mxu0 0.0
          %1130 = vmatpush1.msra.mxu0 0.0
          %1131 = vmatprep.subr.mxu0 0.0
          %1132 = vmatpush1.msra.mxu0 0.0
          %1133 = vmatprep.subr.mxu0 0.0
          %1134 = vmatpush1.msra.mxu0 0.0
          %1135 = vmatprep.subr.mxu0 0.0
          %1136 = vmatpush1.msra.mxu0 0.0
          %1137 = vmatprep.subr.mxu0 0.0
          %1138 = vmatpush1.msra.mxu0 0.0
          %1139 = vmatprep.subr.mxu0 0.0
          %1140 = vmatpush1.msra.mxu0 0.0
          %1141 = vmatprep.subr.mxu0 0.0
          %1142 = vmatpush1.msra.mxu0 0.0
          %1143 = vmatprep.subr.mxu0 0.0
          %1144 = vmatpush1.msra.mxu0 0.0
          %1145 = vmatprep.subr.mxu0 0.0
          %1146 = vmatpush1.msra.mxu0 0.0
          %1147 = vmatprep.subr.mxu0 0.0
          %1148 = vmatpush1.msra.mxu0 0.0
          %1149 = vmatprep.subr.mxu0 0.0
          %1150 = vmatpush1.msra.mxu0 0.0
          %1151 = vmatprep.subr.mxu0 0.0
          %1152 = vmatpush1.msra.mxu0 0.0
          %1153 = vmatprep.subr.mxu0 0.0
          %1154 = vmatpush1.msra.mxu0 0.0
          %1155 = vmatprep.mubr.f32.mxu0 0.0
          %1156 = vmatmul.mubr.f32.gmra.mrb[0].mxu0 %v1075
          %v1157 = vpop.f32.mrb[0].mxu0
          %v1158 = vadd.f32 0.0, %v1157
          %v1159 = vpop.f32.mrb[0].mxu0
          %1160 = vmatprep.mubr.f32.mxu0 0.0
          %1161 = vmatmul.mubr.f32.gmra.mrb[0].mxu0 %v1076
          %v1162 = vpop.f32.mrb[0].mxu0
          %v1163 = vadd.f32 0.0, %v1162
          %v1164 = vpop.f32.mrb[0].mxu0
          %1165 = vmatprep.mubr.f32.mxu0 0.0
          %1166 = vmatmul.mubr.f32.gmra.mrb[0].mxu0 %v1077
          %v1167 = vpop.f32.mrb[0].mxu0
          %v1168 = vadd.f32 0.0, %v1167
          %v1169 = vpop.f32.mrb[0].mxu0
          %1170 = vmatprep.mubr.f32.mxu0 0.0
          %1171 = vmatmul.mubr.f32.gmra.mrb[0].mxu0 %v1078
          %v1172 = vpop.f32.mrb[0].mxu0
          %v1173 = vadd.f32 0.0, %v1172
          %v1174 = vpop.f32.mrb[0].mxu0
          %1175 = vmatprep.mubr.f32.mxu0 0.0
          %1176 = vmatmul.mubr.f32.gmra.mrb[0].mxu0 %v1079
          %v1177 = vpop.f32.mrb[0].mxu0
          %v1178 = vadd.f32 0.0, %v1177
          %v1179 = vpop.f32.mrb[0].mxu0
          %1180 = vmatprep.mubr.f32.mxu0 0.0
          %1181 = vmatmul.mubr.f32.gmra.mrb[0].mxu0 %v1080
          %v1182 = vpop.f32.mrb[0].mxu0
          %v1183 = vadd.f32 0.0, %v1182
          %v1184 = vpop.f32.mrb[0].mxu0
          %1185 = vmatprep.mubr.f32.mxu0 0.0
          %1186 = vmatmul.mubr.f32.gmra.mrb[0].mxu0 %v1081
          %v1187 = vpop.f32.mrb[0].mxu0
          %v1188 = vadd.f32 0.0, %v1187
          %v1189 = vpop.f32.mrb[0].mxu0
          %1190 = vmatprep.mubr.f32.mxu0 0.0
          %1191 = vmatmul.mubr.f32.gmra.mrb[0].mxu0 %v1082
          %v1192 = vpop.f32.mrb[0].mxu0
          %v1193 = vadd.f32 0.0, %v1192
          %v1194 = vpop.f32.mrb[0].mxu0
          %1195 = vmatprep.mubr.f32.mxu0 0.0
          %1196 = vmatmul.mubr.f32.gmra.mrb[0].mxu0 %v1083
          %v1197 = vpop.f32.mrb[0].mxu0
          %v1198 = vadd.f32 0.0, %v1197
          %v1199 = vpop.f32.mrb[0].mxu0
          %1200 = vmatprep.mubr.f32.mxu0 0.0
          %1201 = vmatmul.mubr.f32.gmra.mrb[0].mxu0 %v1084
          %v1202 = vpop.f32.mrb[0].mxu0
          %v1203 = vadd.f32 0.0, %v1202
          %v1204 = vpop.f32.mrb[0].mxu0
          %1205 = vmatprep.mubr.f32.mxu0 0.0
          %1206 = vmatmul.mubr.f32.gmra.mrb[0].mxu0 %v1085
          %v1207 = vpop.f32.mrb[0].mxu0
          %v1208 = vadd.f32 0.0, %v1207
          %v1209 = vpop.f32.mrb[0].mxu0
          %1210 = vmatprep.mubr.f32.mxu0 0.0
          %1211 = vmatmul.mubr.f32.gmra.mrb[0].mxu0 %v1086
          %v1212 = vpop.f32.mrb[0].mxu0
          %v1213 = vadd.f32 0.0, %v1212
          %v1214 = vpop.f32.mrb[0].mxu0
          %1215 = vmatprep.mubr.f32.mxu0 0.0
          %1216 = vmatmul.mubr.f32.gmra.mrb[0].mxu0 %v1087
          %v1217 = vpop.f32.mrb[0].mxu0
          %v1218 = vadd.f32 0.0, %v1217
          %v1219 = vpop.f32.mrb[0].mxu0
          %1220 = vmatprep.mubr.f32.mxu0 0.0
          %1221 = vmatmul.mubr.f32.gmra.mrb[0].mxu0 %v1088
          %v1222 = vpop.f32.mrb[0].mxu0
          %v1223 = vadd.f32 0.0, %v1222
          %v1224 = vpop.f32.mrb[0].mxu0
          %1225 = vmatprep.mubr.f32.mxu0 0.0
          %1226 = vmatmul.mubr.f32.gmra.mrb[0].mxu0 %v1089
          %v1227 = vpop.f32.mrb[0].mxu0
          %v1228 = vadd.f32 0.0, %v1227
          %v1229 = vpop.f32.mrb[0].mxu0
          %1230 = vmatprep.mubr.f32.mxu0 0.0
          %1231 = vmatmul.mubr.f32.gmra.mrb[0].mxu0 %v1090
          %v1232 = vpop.f32.mrb[0].mxu0
          %v1233 = vadd.f32 0.0, %v1232
          %v1234 = vpop.f32.mrb[0].mxu0
          %1235 = vdwg.mxu0
          %v1236 = vrsqrt.pop %v1158
          %v1237 = vmul.f32 %v1158, %v1236
          %vm1238 = vcmp.eq.f32.partialorder %v1158, inf
          %v1239 = vsel %vm1238, %v1158, %v1237
          %vm1240 = vcmp.eq.f32.partialorder %v1158, 0.0
          %v1241 = vand.u32 %v1158, 2147483648
          %v1242 = vsel %vm1240, %v1241, %v1239
          %v1243 = vrsqrt.pop %v1163
          %v1244 = vmul.f32 %v1163, %v1243
          %vm1245 = vcmp.eq.f32.partialorder %v1163, inf
          %v1246 = vsel %vm1245, %v1163, %v1244
          %vm1247 = vcmp.eq.f32.partialorder %v1163, 0.0
          %v1248 = vand.u32 %v1163, 2147483648
          %v1249 = vsel %vm1247, %v1248, %v1246
          %v1250 = vrsqrt.pop %v1168
          %v1251 = vmul.f32 %v1168, %v1250
          %vm1252 = vcmp.eq.f32.partialorder %v1168, inf
          %v1253 = vsel %vm1252, %v1168, %v1251
          %vm1254 = vcmp.eq.f32.partialorder %v1168, 0.0
          %v1255 = vand.u32 %v1168, 2147483648
          %v1256 = vsel %vm1254, %v1255, %v1253
          %v1257 = vrsqrt.pop %v1173
          %v1258 = vmul.f32 %v1173, %v1257
          %vm1259 = vcmp.eq.f32.partialorder %v1173, inf
          %v1260 = vsel %vm1259, %v1173, %v1258
          %vm1261 = vcmp.eq.f32.partialorder %v1173, 0.0
          %v1262 = vand.u32 %v1173, 2147483648
          %v1263 = vsel %vm1261, %v1262, %v1260
          %v1264 = vrsqrt.pop %v1178
          %v1265 = vmul.f32 %v1178, %v1264
          %vm1266 = vcmp.eq.f32.partialorder %v1178, inf
          %v1267 = vsel %vm1266, %v1178, %v1265
          %vm1268 = vcmp.eq.f32.partialorder %v1178, 0.0
          %v1269 = vand.u32 %v1178, 2147483648
          %v1270 = vsel %vm1268, %v1269, %v1267
          %v1271 = vrsqrt.pop %v1183
          %v1272 = vmul.f32 %v1183, %v1271
          %vm1273 = vcmp.eq.f32.partialorder %v1183, inf
          %v1274 = vsel %vm1273, %v1183, %v1272
          %vm1275 = vcmp.eq.f32.partialorder %v1183, 0.0
          %v1276 = vand.u32 %v1183, 2147483648
          %v1277 = vsel %vm1275, %v1276, %v1274
          %v1278 = vrsqrt.pop %v1188
          %v1279 = vmul.f32 %v1188, %v1278
          %vm1280 = vcmp.eq.f32.partialorder %v1188, inf
          %v1281 = vsel %vm1280, %v1188, %v1279
          %vm1282 = vcmp.eq.f32.partialorder %v1188, 0.0
          %v1283 = vand.u32 %v1188, 2147483648
          %v1284 = vsel %vm1282, %v1283, %v1281
          %v1285 = vrsqrt.pop %v1193
          %v1286 = vmul.f32 %v1193, %v1285
          %vm1287 = vcmp.eq.f32.partialorder %v1193, inf
          %v1288 = vsel %vm1287, %v1193, %v1286
          %vm1289 = vcmp.eq.f32.partialorder %v1193, 0.0
          %v1290 = vand.u32 %v1193, 2147483648
          %v1291 = vsel %vm1289, %v1290, %v1288
          %v1292 = vrsqrt.pop %v1198
          %v1293 = vmul.f32 %v1198, %v1292
          %vm1294 = vcmp.eq.f32.partialorder %v1198, inf
          %v1295 = vsel %vm1294, %v1198, %v1293
          %vm1296 = vcmp.eq.f32.partialorder %v1198, 0.0
          %v1297 = vand.u32 %v1198, 2147483648
          %v1298 = vsel %vm1296, %v1297, %v1295
          %v1299 = vrsqrt.pop %v1203
          %v1300 = vmul.f32 %v1203, %v1299
          %vm1301 = vcmp.eq.f32.partialorder %v1203, inf
          %v1302 = vsel %vm1301, %v1203, %v1300
          %vm1303 = vcmp.eq.f32.partialorder %v1203, 0.0
          %v1304 = vand.u32 %v1203, 2147483648
          %v1305 = vsel %vm1303, %v1304, %v1302
          %v1306 = vrsqrt.pop %v1208
          %v1307 = vmul.f32 %v1208, %v1306
          %vm1308 = vcmp.eq.f32.partialorder %v1208, inf
          %v1309 = vsel %vm1308, %v1208, %v1307
          %vm1310 = vcmp.eq.f32.partialorder %v1208, 0.0
          %v1311 = vand.u32 %v1208, 2147483648
          %v1312 = vsel %vm1310, %v1311, %v1309
          %v1313 = vrsqrt.pop %v1213
          %v1314 = vmul.f32 %v1213, %v1313
          %vm1315 = vcmp.eq.f32.partialorder %v1213, inf
          %v1316 = vsel %vm1315, %v1213, %v1314
          %vm1317 = vcmp.eq.f32.partialorder %v1213, 0.0
          %v1318 = vand.u32 %v1213, 2147483648
          %v1319 = vsel %vm1317, %v1318, %v1316
          %v1320 = vrsqrt.pop %v1218
          %v1321 = vmul.f32 %v1218, %v1320
          %vm1322 = vcmp.eq.f32.partialorder %v1218, inf
          %v1323 = vsel %vm1322, %v1218, %v1321
          %vm1324 = vcmp.eq.f32.partialorder %v1218, 0.0
          %v1325 = vand.u32 %v1218, 2147483648
          %v1326 = vsel %vm1324, %v1325, %v1323
          %v1327 = vrsqrt.pop %v1223
          %v1328 = vmul.f32 %v1223, %v1327
          %vm1329 = vcmp.eq.f32.partialorder %v1223, inf
          %v1330 = vsel %vm1329, %v1223, %v1328
          %vm1331 = vcmp.eq.f32.partialorder %v1223, 0.0
          %v1332 = vand.u32 %v1223, 2147483648
          %v1333 = vsel %vm1331, %v1332, %v1330
          %v1334 = vrsqrt.pop %v1228
          %v1335 = vmul.f32 %v1228, %v1334
          %vm1336 = vcmp.eq.f32.partialorder %v1228, inf
          %v1337 = vsel %vm1336, %v1228, %v1335
          %vm1338 = vcmp.eq.f32.partialorder %v1228, 0.0
          %v1339 = vand.u32 %v1228, 2147483648
          %v1340 = vsel %vm1338, %v1339, %v1337
          %v1341 = vrsqrt.pop %v1233
          %v1342 = vmul.f32 %v1233, %v1341
          %vm1343 = vcmp.eq.f32.partialorder %v1233, inf
          %v1344 = vsel %vm1343, %v1233, %v1342
          %vm1345 = vcmp.eq.f32.partialorder %v1233, 0.0
          %v1346 = vand.u32 %v1233, 2147483648
          %v1347 = vsel %vm1345, %v1346, %v1344
          %v1348 = vmax.f32 %v1242, 1e-08
          %v1349 = vmax.f32 %v1249, 1e-08
          %v1350 = vmax.f32 %v1256, 1e-08
          %v1351 = vmax.f32 %v1263, 1e-08
          %v1352 = vmax.f32 %v1270, 1e-08
          %v1353 = vmax.f32 %v1277, 1e-08
          %v1354 = vmax.f32 %v1284, 1e-08
          %v1355 = vmax.f32 %v1291, 1e-08
          %v1356 = vmax.f32 %v1298, 1e-08
          %v1357 = vmax.f32 %v1305, 1e-08
          %v1358 = vmax.f32 %v1312, 1e-08
          %v1359 = vmax.f32 %v1319, 1e-08
          %v1360 = vmax.f32 %v1326, 1e-08
          %v1361 = vmax.f32 %v1333, 1e-08
          %v1362 = vmax.f32 %v1340, 1e-08
          %v1363 = vmax.f32 %v1347, 1e-08
          %v1364 = vlaneseq
          %v1365 = vshrl.u32 %v1364, 7
          %v1366 = vsub.s32 0, %v1365
          %v1367 = vrot.slane %v848, %v1366
          %v1368 = vlaneseq
          %v1369 = vshrl.u32 %v1368, 7
          %v1370 = vsub.s32 0, %v1369
          %v1371 = vrot.slane %v862, %v1370
          %v1372 = vlaneseq
          %v1373 = vshrl.u32 %v1372, 7
          %v1374 = vsub.s32 0, %v1373
          %v1375 = vrot.slane %v870, %v1374
          %v1376 = vlaneseq
          %v1377 = vshrl.u32 %v1376, 7
          %v1378 = vsub.s32 0, %v1377
          %v1379 = vrot.slane %v872, %v1378
          %v1380 = vlaneseq
          %v1381 = vshrl.u32 %v1380, 7
          %v1382 = vsub.s32 0, %v1381
          %v1383 = vrot.slane %v855, %v1382
          %v1384 = vlaneseq
          %v1385 = vshrl.u32 %v1384, 7
          %v1386 = vsub.s32 0, %v1385
          %v1387 = vrot.slane %v869, %v1386
          %v1388 = vlaneseq
          %v1389 = vshrl.u32 %v1388, 7
          %v1390 = vsub.s32 0, %v1389
          %v1391 = vrot.slane %v871, %v1390
          %v1392 = vlaneseq
          %v1393 = vshrl.u32 %v1392, 7
          %v1394 = vsub.s32 0, %v1393
          %v1395 = vrot.slane %v873, %v1394
          %v1404 = vmul.f32 %v1348, %v1367
          %v1405 = vmul.f32 %v1349, %v1367
          %v1406 = vmul.f32 %v1350, %v1371
          %v1407 = vmul.f32 %v1351, %v1371
          %v1408 = vmul.f32 %v1352, %v1375
          %v1409 = vmul.f32 %v1353, %v1375
          %v1410 = vmul.f32 %v1354, %v1379
          %v1411 = vmul.f32 %v1355, %v1379
          %v1412 = vmul.f32 %v1356, %v1383
          %v1413 = vmul.f32 %v1357, %v1383
          %v1414 = vmul.f32 %v1358, %v1387
          %v1415 = vmul.f32 %v1359, %v1387
          %v1416 = vmul.f32 %v1360, %v1391
          %v1417 = vmul.f32 %v1361, %v1391
          %v1418 = vmul.f32 %v1362, %v1395
          %v1419 = vmul.f32 %v1363, %v1395
          %v1420 = vrcp.pop %v1404
          %v1421 = vmul.f32 %v997, %v1420
          %v1422 = vrcp.pop %v1405
          %v1423 = vmul.f32 %v1002, %v1422
          %v1424 = vrcp.pop %v1406
          %v1425 = vmul.f32 %v1007, %v1424
          %v1426 = vrcp.pop %v1407
          %v1427 = vmul.f32 %v1012, %v1426
          %v1428 = vrcp.pop %v1408
          %v1429 = vmul.f32 %v1017, %v1428
          %v1430 = vrcp.pop %v1409
          %v1431 = vmul.f32 %v1022, %v1430
          %v1432 = vrcp.pop %v1410
          %v1433 = vmul.f32 %v1027, %v1432
          %v1434 = vrcp.pop %v1411
          %v1435 = vmul.f32 %v1032, %v1434
          %v1436 = vrcp.pop %v1412
          %v1437 = vmul.f32 %v1037, %v1436
          %v1438 = vrcp.pop %v1413
          %v1439 = vmul.f32 %v1042, %v1438
          %v1440 = vrcp.pop %v1414
          %v1441 = vmul.f32 %v1047, %v1440
          %v1442 = vrcp.pop %v1415
          %v1443 = vmul.f32 %v1052, %v1442
          %v1444 = vrcp.pop %v1416
          %v1445 = vmul.f32 %v1057, %v1444
          %v1446 = vrcp.pop %v1417
          %v1447 = vmul.f32 %v1062, %v1446
          %v1448 = vrcp.pop %v1418
          %v1449 = vmul.f32 %v1067, %v1448
          %v1450 = vrcp.pop %v1419
          %v1451 = vmul.f32 %v1072, %v1450
          %v1452 = vlaneseq
          %v1453 = vshrl.u32 %v1452, 7
          %v1454 = vsub.s32 0, %v1453
          %v1455 = vrot.slane %v669, %v1454
          %v1456 = vlaneseq
          %v1457 = vshrl.u32 %v1456, 7
          %v1458 = vsub.s32 0, %v1457
          %v1459 = vrot.slane %v683, %v1458
          %v1460 = vlaneseq
          %v1461 = vshrl.u32 %v1460, 7
          %v1462 = vsub.s32 0, %v1461
          %v1463 = vrot.slane %v691, %v1462
          %v1464 = vlaneseq
          %v1465 = vshrl.u32 %v1464, 7
          %v1466 = vsub.s32 0, %v1465
          %v1467 = vrot.slane %v693, %v1466
          %v1468 = vlaneseq
          %v1469 = vshrl.u32 %v1468, 7
          %v1470 = vsub.s32 0, %v1469
          %v1471 = vrot.slane %v676, %v1470
          %v1472 = vlaneseq
          %v1473 = vshrl.u32 %v1472, 7
          %v1474 = vsub.s32 0, %v1473
          %v1475 = vrot.slane %v690, %v1474
          %v1476 = vlaneseq
          %v1477 = vshrl.u32 %v1476, 7
          %v1478 = vsub.s32 0, %v1477
          %v1479 = vrot.slane %v692, %v1478
          %v1480 = vlaneseq
          %v1481 = vshrl.u32 %v1480, 7
          %v1482 = vsub.s32 0, %v1481
          %v1483 = vrot.slane %v694, %v1482
          %v1492 = vmul.f32 %v1421, %v1455
          %v1493 = vmul.f32 %v1423, %v1455
          %v1494 = vmul.f32 %v1425, %v1459
          %v1495 = vmul.f32 %v1427, %v1459
          %v1496 = vmul.f32 %v1429, %v1463
          %v1497 = vmul.f32 %v1431, %v1463
          %v1498 = vmul.f32 %v1433, %v1467
          %v1499 = vmul.f32 %v1435, %v1467
          %v1500 = vmul.f32 %v1437, %v1471
          %v1501 = vmul.f32 %v1439, %v1471
          %v1502 = vmul.f32 %v1441, %v1475
          %v1503 = vmul.f32 %v1443, %v1475
          %v1504 = vmul.f32 %v1445, %v1479
          %v1505 = vmul.f32 %v1447, %v1479
          %v1506 = vmul.f32 %v1449, %v1483
          %v1507 = vmul.f32 %v1451, %v1483
          %vm1508 = vcmask 7168
          %v1509 = vsel %vm1508, %v1492, -inf
          %v1510 = vsel %vm1508, %v1493, -inf
          %v1511 = vmax.f32 %v1509, %v1510
          %v1512 = vrot.slane %v1511, 4
          %v1513 = vmax.f32 %v1511, %v1512
          %v1514 = vrot.slane %v1513, 2
          %v1515 = vmax.f32 %v1513, %v1514
          %v1516 = vrot.slane %v1515, 1
          %v1517 = vmax.f32 %v1515, %v1516
          %v1518 = vsel %vm1508, %v1494, -inf
          %v1519 = vsel %vm1508, %v1495, -inf
          %v1520 = vmax.f32 %v1518, %v1519
          %v1521 = vrot.slane %v1520, 4
          %v1522 = vmax.f32 %v1520, %v1521
          %v1523 = vrot.slane %v1522, 2
          %v1524 = vmax.f32 %v1522, %v1523
          %v1525 = vrot.slane %v1524, 1
          %v1526 = vmax.f32 %v1524, %v1525
          %v1527 = vsel %vm1508, %v1496, -inf
          %v1528 = vsel %vm1508, %v1497, -inf
          %v1529 = vmax.f32 %v1527, %v1528
          %v1530 = vrot.slane %v1529, 4
          %v1531 = vmax.f32 %v1529, %v1530
          %v1532 = vrot.slane %v1531, 2
          %v1533 = vmax.f32 %v1531, %v1532
          %v1534 = vrot.slane %v1533, 1
          %v1535 = vmax.f32 %v1533, %v1534
          %v1536 = vsel %vm1508, %v1498, -inf
          %v1537 = vsel %vm1508, %v1499, -inf
          %v1538 = vmax.f32 %v1536, %v1537
          %v1539 = vrot.slane %v1538, 4
          %v1540 = vmax.f32 %v1538, %v1539
          %v1541 = vrot.slane %v1540, 2
          %v1542 = vmax.f32 %v1540, %v1541
          %v1543 = vrot.slane %v1542, 1
          %v1544 = vmax.f32 %v1542, %v1543
          %v1545 = vsel %vm1508, %v1500, -inf
          %v1546 = vsel %vm1508, %v1501, -inf
          %v1547 = vmax.f32 %v1545, %v1546
          %v1548 = vrot.slane %v1547, 4
          %v1549 = vmax.f32 %v1547, %v1548
          %v1550 = vrot.slane %v1549, 2
          %v1551 = vmax.f32 %v1549, %v1550
          %v1552 = vrot.slane %v1551, 1
          %v1553 = vmax.f32 %v1551, %v1552
          %v1554 = vsel %vm1508, %v1502, -inf
          %v1555 = vsel %vm1508, %v1503, -inf
          %v1556 = vmax.f32 %v1554, %v1555
          %v1557 = vrot.slane %v1556, 4
          %v1558 = vmax.f32 %v1556, %v1557
          %v1559 = vrot.slane %v1558, 2
          %v1560 = vmax.f32 %v1558, %v1559
          %v1561 = vrot.slane %v1560, 1
          %v1562 = vmax.f32 %v1560, %v1561
          %v1563 = vsel %vm1508, %v1504, -inf
          %v1564 = vsel %vm1508, %v1505, -inf
          %v1565 = vmax.f32 %v1563, %v1564
          %v1566 = vrot.slane %v1565, 4
          %v1567 = vmax.f32 %v1565, %v1566
          %v1568 = vrot.slane %v1567, 2
          %v1569 = vmax.f32 %v1567, %v1568
          %v1570 = vrot.slane %v1569, 1
          %v1571 = vmax.f32 %v1569, %v1570
          %v1572 = vsel %vm1508, %v1506, -inf
          %v1573 = vsel %vm1508, %v1507, -inf
          %v1574 = vmax.f32 %v1572, %v1573
          %v1575 = vrot.slane %v1574, 4
          %v1576 = vmax.f32 %v1574, %v1575
          %v1577 = vrot.slane %v1576, 2
          %v1578 = vmax.f32 %v1576, %v1577
          %v1579 = vrot.slane %v1578, 1
          %v1580 = vmax.f32 %v1578, %v1579
          %v1581 = vsub.f32 %v1492, %v1517
          %v1582 = vsub.f32 %v1493, %v1517
          %v1583 = vsub.f32 %v1494, %v1526
          %v1584 = vsub.f32 %v1495, %v1526
          %v1585 = vsub.f32 %v1496, %v1535
          %v1586 = vsub.f32 %v1497, %v1535
          %v1587 = vsub.f32 %v1498, %v1544
          %v1588 = vsub.f32 %v1499, %v1544
          %v1589 = vsub.f32 %v1500, %v1553
          %v1590 = vsub.f32 %v1501, %v1553
          %v1591 = vsub.f32 %v1502, %v1562
          %v1592 = vsub.f32 %v1503, %v1562
          %v1593 = vsub.f32 %v1504, %v1571
          %v1594 = vsub.f32 %v1505, %v1571
          %v1595 = vsub.f32 %v1506, %v1580
          %v1596 = vsub.f32 %v1507, %v1580
          %v1597 = vmul.f32 %v1581, 1.442695
          %v1598 = vpow.pop %v1597
          %v1599 = vmul.f32 %v1582, 1.442695
          %v1600 = vpow.pop %v1599
          %v1601 = vmul.f32 %v1583, 1.442695
          %v1602 = vpow.pop %v1601
          %v1603 = vmul.f32 %v1584, 1.442695
          %v1604 = vpow.pop %v1603
          %v1605 = vmul.f32 %v1585, 1.442695
          %v1606 = vpow.pop %v1605
          %v1607 = vmul.f32 %v1586, 1.442695
          %v1608 = vpow.pop %v1607
          %v1609 = vmul.f32 %v1587, 1.442695
          %v1610 = vpow.pop %v1609
          %v1611 = vmul.f32 %v1588, 1.442695
          %v1612 = vpow.pop %v1611
          %v1613 = vmul.f32 %v1589, 1.442695
          %v1614 = vpow.pop %v1613
          %v1615 = vmul.f32 %v1590, 1.442695
          %v1616 = vpow.pop %v1615
          %v1617 = vmul.f32 %v1591, 1.442695
          %v1618 = vpow.pop %v1617
          %v1619 = vmul.f32 %v1592, 1.442695
          %v1620 = vpow.pop %v1619
          %v1621 = vmul.f32 %v1593, 1.442695
          %v1622 = vpow.pop %v1621
          %v1623 = vmul.f32 %v1594, 1.442695
          %v1624 = vpow.pop %v1623
          %v1625 = vmul.f32 %v1595, 1.442695
          %v1626 = vpow.pop %v1625
          %v1627 = vmul.f32 %v1596, 1.442695
          %v1628 = vpow.pop %v1627
          %v1629 = vsel %vm1508, %v1598, 0.0
          %v1630 = vsel %vm1508, %v1600, 0.0
          %v1631 = vadd.f32 %v1629, %v1630
          %v1632 = vrot.slane %v1631, 4
          %v1633 = vadd.f32 %v1631, %v1632
          %v1634 = vrot.slane %v1633, 2
          %v1635 = vadd.f32 %v1633, %v1634
          %v1636 = vrot.slane %v1635, 1
          %v1637 = vadd.f32 %v1635, %v1636
          %v1638 = vsel %vm1508, %v1602, 0.0
          %v1639 = vsel %vm1508, %v1604, 0.0
          %v1640 = vadd.f32 %v1638, %v1639
          %v1641 = vrot.slane %v1640, 4
          %v1642 = vadd.f32 %v1640, %v1641
          %v1643 = vrot.slane %v1642, 2
          %v1644 = vadd.f32 %v1642, %v1643
          %v1645 = vrot.slane %v1644, 1
          %v1646 = vadd.f32 %v1644, %v1645
          %v1647 = vsel %vm1508, %v1606, 0.0
          %v1648 = vsel %vm1508, %v1608, 0.0
          %v1649 = vadd.f32 %v1647, %v1648
          %v1650 = vrot.slane %v1649, 4
          %v1651 = vadd.f32 %v1649, %v1650
          %v1652 = vrot.slane %v1651, 2
          %v1653 = vadd.f32 %v1651, %v1652
          %v1654 = vrot.slane %v1653, 1
          %v1655 = vadd.f32 %v1653, %v1654
          %v1656 = vsel %vm1508, %v1610, 0.0
          %v1657 = vsel %vm1508, %v1612, 0.0
          %v1658 = vadd.f32 %v1656, %v1657
          %v1659 = vrot.slane %v1658, 4
          %v1660 = vadd.f32 %v1658, %v1659
          %v1661 = vrot.slane %v1660, 2
          %v1662 = vadd.f32 %v1660, %v1661
          %v1663 = vrot.slane %v1662, 1
          %v1664 = vadd.f32 %v1662, %v1663
          %v1665 = vsel %vm1508, %v1614, 0.0
          %v1666 = vsel %vm1508, %v1616, 0.0
          %v1667 = vadd.f32 %v1665, %v1666
          %v1668 = vrot.slane %v1667, 4
          %v1669 = vadd.f32 %v1667, %v1668
          %v1670 = vrot.slane %v1669, 2
          %v1671 = vadd.f32 %v1669, %v1670
          %v1672 = vrot.slane %v1671, 1
          %v1673 = vadd.f32 %v1671, %v1672
          %v1674 = vsel %vm1508, %v1618, 0.0
          %v1675 = vsel %vm1508, %v1620, 0.0
          %v1676 = vadd.f32 %v1674, %v1675
          %v1677 = vrot.slane %v1676, 4
          %v1678 = vadd.f32 %v1676, %v1677
          %v1679 = vrot.slane %v1678, 2
          %v1680 = vadd.f32 %v1678, %v1679
          %v1681 = vrot.slane %v1680, 1
          %v1682 = vadd.f32 %v1680, %v1681
          %v1683 = vsel %vm1508, %v1622, 0.0
          %v1684 = vsel %vm1508, %v1624, 0.0
          %v1685 = vadd.f32 %v1683, %v1684
          %v1686 = vrot.slane %v1685, 4
          %v1687 = vadd.f32 %v1685, %v1686
          %v1688 = vrot.slane %v1687, 2
          %v1689 = vadd.f32 %v1687, %v1688
          %v1690 = vrot.slane %v1689, 1
          %v1691 = vadd.f32 %v1689, %v1690
          %v1692 = vsel %vm1508, %v1626, 0.0
          %v1693 = vsel %vm1508, %v1628, 0.0
          %v1694 = vadd.f32 %v1692, %v1693
          %v1695 = vrot.slane %v1694, 4
          %v1696 = vadd.f32 %v1694, %v1695
          %v1697 = vrot.slane %v1696, 2
          %v1698 = vadd.f32 %v1696, %v1697
          %v1699 = vrot.slane %v1698, 1
          %v1700 = vadd.f32 %v1698, %v1699
          %v1701 = vrcp.pop %v1637
          %v1702 = vmul.f32 1.0, %v1701
          %v1703 = vrcp.pop %v1646
          %v1704 = vmul.f32 1.0, %v1703
          %v1705 = vrcp.pop %v1655
          %v1706 = vmul.f32 1.0, %v1705
          %v1707 = vrcp.pop %v1664
          %v1708 = vmul.f32 1.0, %v1707
          %v1709 = vrcp.pop %v1673
          %v1710 = vmul.f32 1.0, %v1709
          %v1711 = vrcp.pop %v1682
          %v1712 = vmul.f32 1.0, %v1711
          %v1713 = vrcp.pop %v1691
          %v1714 = vmul.f32 1.0, %v1713
          %v1715 = vrcp.pop %v1700
          %v1716 = vmul.f32 1.0, %v1715
          %v1717 = vmul.f32 %v1598, %v1702
          %v1718 = vmul.f32 %v1600, %v1702
          %v1719 = vmul.f32 %v1602, %v1704
          %v1720 = vmul.f32 %v1604, %v1704
          %v1721 = vmul.f32 %v1606, %v1706
          %v1722 = vmul.f32 %v1608, %v1706
          %v1723 = vmul.f32 %v1610, %v1708
          %v1724 = vmul.f32 %v1612, %v1708
          %v1725 = vmul.f32 %v1614, %v1710
          %v1726 = vmul.f32 %v1616, %v1710
          %v1727 = vmul.f32 %v1618, %v1712
          %v1728 = vmul.f32 %v1620, %v1712
          %v1729 = vmul.f32 %v1622, %v1714
          %v1730 = vmul.f32 %v1624, %v1714
          %v1731 = vmul.f32 %v1626, %v1716
          %v1732 = vmul.f32 %v1628, %v1716
          %1734 = vset.pattern.permute.xlu0 0
          %1735 = vperm.xlu0 %1734, %v1717
          %v1736 = vpop.permute.xlu0 %1735
          %1739 = vset.pattern.permute.xlu0 0
          %1740 = vperm.xlu0 %1739, %v1718
          %v1741 = vpop.permute.xlu0 %1740
          %1744 = vset.pattern.permute.xlu0 0
          %1745 = vperm.xlu0 %1744, %v1719
          %v1746 = vpop.permute.xlu0 %1745
          %1749 = vset.pattern.permute.xlu0 0
          %1750 = vperm.xlu0 %1749, %v1720
          %v1751 = vpop.permute.xlu0 %1750
          %1754 = vset.pattern.permute.xlu0 0
          %1755 = vperm.xlu0 %1754, %v1721
          %v1756 = vpop.permute.xlu0 %1755
          %1759 = vset.pattern.permute.xlu0 0
          %1760 = vperm.xlu0 %1759, %v1722
          %v1761 = vpop.permute.xlu0 %1760
          %1764 = vset.pattern.permute.xlu0 0
          %1765 = vperm.xlu0 %1764, %v1723
          %v1766 = vpop.permute.xlu0 %1765
          %1769 = vset.pattern.permute.xlu0 0
          %1770 = vperm.xlu0 %1769, %v1724
          %v1771 = vpop.permute.xlu0 %1770
          %1774 = vset.pattern.permute.xlu0 0
          %1775 = vperm.xlu0 %1774, %v1725
          %v1776 = vpop.permute.xlu0 %1775
          %1779 = vset.pattern.permute.xlu0 0
          %1780 = vperm.xlu0 %1779, %v1726
          %v1781 = vpop.permute.xlu0 %1780
          %1784 = vset.pattern.permute.xlu0 0
          %1785 = vperm.xlu0 %1784, %v1727
          %v1786 = vpop.permute.xlu0 %1785
          %1789 = vset.pattern.permute.xlu0 0
          %1790 = vperm.xlu0 %1789, %v1728
          %v1791 = vpop.permute.xlu0 %1790
          %1794 = vset.pattern.permute.xlu0 0
          %1795 = vperm.xlu0 %1794, %v1729
          %v1796 = vpop.permute.xlu0 %1795
          %1799 = vset.pattern.permute.xlu0 0
          %1800 = vperm.xlu0 %1799, %v1730
          %v1801 = vpop.permute.xlu0 %1800
          %1804 = vset.pattern.permute.xlu0 0
          %1805 = vperm.xlu0 %1804, %v1731
          %v1806 = vpop.permute.xlu0 %1805
          %1809 = vset.pattern.permute.xlu0 0
          %1810 = vperm.xlu0 %1809, %v1732
          %v1811 = vpop.permute.xlu0 %1810
          %v1813 = vmul.f32 %v1736, %v524
          %v1814 = vmul.f32 %v1741, %v525
          %v1815 = vmul.f32 %v1746, %v526
          %v1816 = vmul.f32 %v1751, %v527
          %v1817 = vmul.f32 %v1756, %v528
          %v1818 = vmul.f32 %v1761, %v529
          %v1819 = vmul.f32 %v1766, %v530
          %v1820 = vmul.f32 %v1771, %v531
          %v1821 = vmul.f32 %v1776, %v532
          %v1822 = vmul.f32 %v1781, %v533
          %v1823 = vmul.f32 %v1786, %v534
          %v1824 = vmul.f32 %v1791, %v535
          %v1825 = vmul.f32 %v1796, %v536
          %v1826 = vmul.f32 %v1801, %v537
          %v1827 = vmul.f32 %v1806, %v538
          %v1828 = vmul.f32 %v1811, %v539
          %v1829 = vadd.f32 %v1813, %v1814
          %v1830 = vrot.slane %v1829, 4
          %v1831 = vadd.f32 %v1829, %v1830
          %v1832 = vrot.slane %v1831, 2
          %v1833 = vadd.f32 %v1831, %v1832
          %v1834 = vrot.slane %v1833, 1
          %v1835 = vadd.f32 %v1833, %v1834
          %v1836 = vadd.f32 %v1815, %v1816
          %v1837 = vrot.slane %v1836, 4
          %v1838 = vadd.f32 %v1836, %v1837
          %v1839 = vrot.slane %v1838, 2
          %v1840 = vadd.f32 %v1838, %v1839
          %v1841 = vrot.slane %v1840, 1
          %v1842 = vadd.f32 %v1840, %v1841
          %v1843 = vadd.f32 %v1817, %v1818
          %v1844 = vrot.slane %v1843, 4
          %v1845 = vadd.f32 %v1843, %v1844
          %v1846 = vrot.slane %v1845, 2
          %v1847 = vadd.f32 %v1845, %v1846
          %v1848 = vrot.slane %v1847, 1
          %v1849 = vadd.f32 %v1847, %v1848
          %v1850 = vadd.f32 %v1819, %v1820
          %v1851 = vrot.slane %v1850, 4
          %v1852 = vadd.f32 %v1850, %v1851
          %v1853 = vrot.slane %v1852, 2
          %v1854 = vadd.f32 %v1852, %v1853
          %v1855 = vrot.slane %v1854, 1
          %v1856 = vadd.f32 %v1854, %v1855
          %v1857 = vadd.f32 %v1821, %v1822
          %v1858 = vrot.slane %v1857, 4
          %v1859 = vadd.f32 %v1857, %v1858
          %v1860 = vrot.slane %v1859, 2
          %v1861 = vadd.f32 %v1859, %v1860
          %v1862 = vrot.slane %v1861, 1
          %v1863 = vadd.f32 %v1861, %v1862
          %v1864 = vadd.f32 %v1823, %v1824
          %v1865 = vrot.slane %v1864, 4
          %v1866 = vadd.f32 %v1864, %v1865
          %v1867 = vrot.slane %v1866, 2
          %v1868 = vadd.f32 %v1866, %v1867
          %v1869 = vrot.slane %v1868, 1
          %v1870 = vadd.f32 %v1868, %v1869
          %v1871 = vadd.f32 %v1825, %v1826
          %v1872 = vrot.slane %v1871, 4
          %v1873 = vadd.f32 %v1871, %v1872
          %v1874 = vrot.slane %v1873, 2
          %v1875 = vadd.f32 %v1873, %v1874
          %v1876 = vrot.slane %v1875, 1
          %v1877 = vadd.f32 %v1875, %v1876
          %v1878 = vadd.f32 %v1827, %v1828
          %v1879 = vrot.slane %v1878, 4
          %v1880 = vadd.f32 %v1878, %v1879
          %v1881 = vrot.slane %v1880, 2
          %v1882 = vadd.f32 %v1880, %v1881
          %v1883 = vrot.slane %v1882, 1
          %v1884 = vadd.f32 %v1882, %v1883
          %v1885 = vmul.f32 %v506, %v877
          %v1886 = vmul.f32 %v507, %v877
          %v1887 = vmul.f32 %v508, %v881
          %v1888 = vmul.f32 %v509, %v881
          %v1889 = vmul.f32 %v510, %v885
          %v1890 = vmul.f32 %v511, %v885
          %v1891 = vmul.f32 %v512, %v889
          %v1892 = vmul.f32 %v513, %v889
          %v1893 = vmul.f32 %v514, %v893
          %v1894 = vmul.f32 %v515, %v893
          %v1895 = vmul.f32 %v516, %v897
          %v1896 = vmul.f32 %v517, %v897
          %v1897 = vmul.f32 %v518, %v901
          %v1898 = vmul.f32 %v519, %v901
          %v1899 = vmul.f32 %v520, %v905
          %v1900 = vmul.f32 %v521, %v905
          %1901 = vmatprep.subr.mxu0 0.0
          %1902 = vmatpush1.msra.mxu0 1.0
          %1903 = vmatprep.subr.mxu0 0.0
          %1904 = vmatpush1.msra.mxu0 1.0
          %1905 = vmatprep.subr.mxu0 0.0
          %1906 = vmatpush1.msra.mxu0 1.0
          %1907 = vmatprep.subr.mxu0 0.0
          %1908 = vmatpush1.msra.mxu0 1.0
          %1909 = vmatprep.subr.mxu0 0.0
          %1910 = vmatpush1.msra.mxu0 1.0
          %1911 = vmatprep.subr.mxu0 0.0
          %1912 = vmatpush1.msra.mxu0 1.0
          %1913 = vmatprep.subr.mxu0 0.0
          %1914 = vmatpush1.msra.mxu0 1.0
          %1915 = vmatprep.subr.mxu0 0.0
          %1916 = vmatpush1.msra.mxu0 1.0
          %1917 = vmatprep.subr.mxu0 0.0
          %1918 = vmatpush1.msra.mxu0 1.0
          %1919 = vmatprep.subr.mxu0 0.0
          %1920 = vmatpush1.msra.mxu0 1.0
          %1921 = vmatprep.subr.mxu0 0.0
          %1922 = vmatpush1.msra.mxu0 1.0
          %1923 = vmatprep.subr.mxu0 0.0
          %1924 = vmatpush1.msra.mxu0 1.0
          %1925 = vmatprep.subr.mxu0 0.0
          %1926 = vmatpush1.msra.mxu0 1.0
          %1927 = vmatprep.subr.mxu0 0.0
          %1928 = vmatpush1.msra.mxu0 1.0
          %1929 = vmatprep.subr.mxu0 0.0
          %1930 = vmatpush1.msra.mxu0 1.0
          %1931 = vmatprep.subr.mxu0 0.0
          %1932 = vmatpush1.msra.mxu0 1.0
          %1933 = vmatprep.subr.mxu0 0.0
          %1934 = vmatpush1.msra.mxu0 0.0
          %1935 = vmatprep.subr.mxu0 0.0
          %1936 = vmatpush1.msra.mxu0 0.0
          %1937 = vmatprep.subr.mxu0 0.0
          %1938 = vmatpush1.msra.mxu0 0.0
          %1939 = vmatprep.subr.mxu0 0.0
          %1940 = vmatpush1.msra.mxu0 0.0
          %1941 = vmatprep.subr.mxu0 0.0
          %1942 = vmatpush1.msra.mxu0 0.0
          %1943 = vmatprep.subr.mxu0 0.0
          %1944 = vmatpush1.msra.mxu0 0.0
          %1945 = vmatprep.subr.mxu0 0.0
          %1946 = vmatpush1.msra.mxu0 0.0
          %1947 = vmatprep.subr.mxu0 0.0
          %1948 = vmatpush1.msra.mxu0 0.0
          %1949 = vmatprep.subr.mxu0 0.0
          %1950 = vmatpush1.msra.mxu0 0.0
          %1951 = vmatprep.subr.mxu0 0.0
          %1952 = vmatpush1.msra.mxu0 0.0
          %1953 = vmatprep.subr.mxu0 0.0
          %1954 = vmatpush1.msra.mxu0 0.0
          %1955 = vmatprep.subr.mxu0 0.0
          %1956 = vmatpush1.msra.mxu0 0.0
          %1957 = vmatprep.subr.mxu0 0.0
          %1958 = vmatpush1.msra.mxu0 0.0
          %1959 = vmatprep.subr.mxu0 0.0
          %1960 = vmatpush1.msra.mxu0 0.0
          %1961 = vmatprep.subr.mxu0 0.0
          %1962 = vmatpush1.msra.mxu0 0.0
          %1963 = vmatprep.subr.mxu0 0.0
          %1964 = vmatpush1.msra.mxu0 0.0
          %1965 = vmatprep.mubr.f32.mxu0 0.0
          %1966 = vmatmul.mubr.f32.gmra.mrb[0].mxu0 %v1885
          %v1967 = vpop.f32.mrb[0].mxu0
          %v1968 = vadd.f32 0.0, %v1967
          %v1969 = vpop.f32.mrb[0].mxu0
          %1970 = vmatprep.mubr.f32.mxu0 0.0
          %1971 = vmatmul.mubr.f32.gmra.mrb[0].mxu0 %v1886
          %v1972 = vpop.f32.mrb[0].mxu0
          %v1973 = vadd.f32 0.0, %v1972
          %v1974 = vpop.f32.mrb[0].mxu0
          %1975 = vmatprep.mubr.f32.mxu0 0.0
          %1976 = vmatmul.mubr.f32.gmra.mrb[0].mxu0 %v1887
          %v1977 = vpop.f32.mrb[0].mxu0
          %v1978 = vadd.f32 0.0, %v1977
          %v1979 = vpop.f32.mrb[0].mxu0
          %1980 = vmatprep.mubr.f32.mxu0 0.0
          %1981 = vmatmul.mubr.f32.gmra.mrb[0].mxu0 %v1888
          %v1982 = vpop.f32.mrb[0].mxu0
          %v1983 = vadd.f32 0.0, %v1982
          %v1984 = vpop.f32.mrb[0].mxu0
          %1985 = vmatprep.mubr.f32.mxu0 0.0
          %1986 = vmatmul.mubr.f32.gmra.mrb[0].mxu0 %v1889
          %v1987 = vpop.f32.mrb[0].mxu0
          %v1988 = vadd.f32 0.0, %v1987
          %v1989 = vpop.f32.mrb[0].mxu0
          %1990 = vmatprep.mubr.f32.mxu0 0.0
          %1991 = vmatmul.mubr.f32.gmra.mrb[0].mxu0 %v1890
          %v1992 = vpop.f32.mrb[0].mxu0
          %v1993 = vadd.f32 0.0, %v1992
          %v1994 = vpop.f32.mrb[0].mxu0
          %1995 = vmatprep.mubr.f32.mxu0 0.0
          %1996 = vmatmul.mubr.f32.gmra.mrb[0].mxu0 %v1891
          %v1997 = vpop.f32.mrb[0].mxu0
          %v1998 = vadd.f32 0.0, %v1997
          %v1999 = vpop.f32.mrb[0].mxu0
          %2000 = vmatprep.mubr.f32.mxu0 0.0
          %2001 = vmatmul.mubr.f32.gmra.mrb[0].mxu0 %v1892
          %v2002 = vpop.f32.mrb[0].mxu0
          %v2003 = vadd.f32 0.0, %v2002
          %v2004 = vpop.f32.mrb[0].mxu0
          %2005 = vmatprep.mubr.f32.mxu0 0.0
          %2006 = vmatmul.mubr.f32.gmra.mrb[0].mxu0 %v1893
          %v2007 = vpop.f32.mrb[0].mxu0
          %v2008 = vadd.f32 0.0, %v2007
          %v2009 = vpop.f32.mrb[0].mxu0
          %2010 = vmatprep.mubr.f32.mxu0 0.0
          %2011 = vmatmul.mubr.f32.gmra.mrb[0].mxu0 %v1894
          %v2012 = vpop.f32.mrb[0].mxu0
          %v2013 = vadd.f32 0.0, %v2012
          %v2014 = vpop.f32.mrb[0].mxu0
          %2015 = vmatprep.mubr.f32.mxu0 0.0
          %2016 = vmatmul.mubr.f32.gmra.mrb[0].mxu0 %v1895
          %v2017 = vpop.f32.mrb[0].mxu0
          %v2018 = vadd.f32 0.0, %v2017
          %v2019 = vpop.f32.mrb[0].mxu0
          %2020 = vmatprep.mubr.f32.mxu0 0.0
          %2021 = vmatmul.mubr.f32.gmra.mrb[0].mxu0 %v1896
          %v2022 = vpop.f32.mrb[0].mxu0
          %v2023 = vadd.f32 0.0, %v2022
          %v2024 = vpop.f32.mrb[0].mxu0
          %2025 = vmatprep.mubr.f32.mxu0 0.0
          %2026 = vmatmul.mubr.f32.gmra.mrb[0].mxu0 %v1897
          %v2027 = vpop.f32.mrb[0].mxu0
          %v2028 = vadd.f32 0.0, %v2027
          %v2029 = vpop.f32.mrb[0].mxu0
          %2030 = vmatprep.mubr.f32.mxu0 0.0
          %2031 = vmatmul.mubr.f32.gmra.mrb[0].mxu0 %v1898
          %v2032 = vpop.f32.mrb[0].mxu0
          %v2033 = vadd.f32 0.0, %v2032
          %v2034 = vpop.f32.mrb[0].mxu0
          %2035 = vmatprep.mubr.f32.mxu0 0.0
          %2036 = vmatmul.mubr.f32.gmra.mrb[0].mxu0 %v1899
          %v2037 = vpop.f32.mrb[0].mxu0
          %v2038 = vadd.f32 0.0, %v2037
          %v2039 = vpop.f32.mrb[0].mxu0
          %2040 = vmatprep.mubr.f32.mxu0 0.0
          %2041 = vmatmul.mubr.f32.gmra.mrb[0].mxu0 %v1900
          %v2042 = vpop.f32.mrb[0].mxu0
          %v2043 = vadd.f32 0.0, %v2042
          %v2044 = vpop.f32.mrb[0].mxu0
          %2045 = vdwg.mxu0
          %v2046 = vmul.f32 %v506, %v506
          %v2047 = vmul.f32 %v507, %v507
          %v2048 = vmul.f32 %v508, %v508
          %v2049 = vmul.f32 %v509, %v509
          %v2050 = vmul.f32 %v510, %v510
          %v2051 = vmul.f32 %v511, %v511
          %v2052 = vmul.f32 %v512, %v512
          %v2053 = vmul.f32 %v513, %v513
          %v2054 = vmul.f32 %v514, %v514
          %v2055 = vmul.f32 %v515, %v515
          %v2056 = vmul.f32 %v516, %v516
          %v2057 = vmul.f32 %v517, %v517
          %v2058 = vmul.f32 %v518, %v518
          %v2059 = vmul.f32 %v519, %v519
          %v2060 = vmul.f32 %v520, %v520
          %v2061 = vmul.f32 %v521, %v521
          %2062 = vmatprep.subr.mxu0 0.0
          %2063 = vmatpush1.msra.mxu0 1.0
          %2064 = vmatprep.subr.mxu0 0.0
          %2065 = vmatpush1.msra.mxu0 1.0
          %2066 = vmatprep.subr.mxu0 0.0
          %2067 = vmatpush1.msra.mxu0 1.0
          %2068 = vmatprep.subr.mxu0 0.0
          %2069 = vmatpush1.msra.mxu0 1.0
          %2070 = vmatprep.subr.mxu0 0.0
          %2071 = vmatpush1.msra.mxu0 1.0
          %2072 = vmatprep.subr.mxu0 0.0
          %2073 = vmatpush1.msra.mxu0 1.0
          %2074 = vmatprep.subr.mxu0 0.0
          %2075 = vmatpush1.msra.mxu0 1.0
          %2076 = vmatprep.subr.mxu0 0.0
          %2077 = vmatpush1.msra.mxu0 1.0
          %2078 = vmatprep.subr.mxu0 0.0
          %2079 = vmatpush1.msra.mxu0 1.0
          %2080 = vmatprep.subr.mxu0 0.0
          %2081 = vmatpush1.msra.mxu0 1.0
          %2082 = vmatprep.subr.mxu0 0.0
          %2083 = vmatpush1.msra.mxu0 1.0
          %2084 = vmatprep.subr.mxu0 0.0
          %2085 = vmatpush1.msra.mxu0 1.0
          %2086 = vmatprep.subr.mxu0 0.0
          %2087 = vmatpush1.msra.mxu0 1.0
          %2088 = vmatprep.subr.mxu0 0.0
          %2089 = vmatpush1.msra.mxu0 1.0
          %2090 = vmatprep.subr.mxu0 0.0
          %2091 = vmatpush1.msra.mxu0 1.0
          %2092 = vmatprep.subr.mxu0 0.0
          %2093 = vmatpush1.msra.mxu0 1.0
          %2094 = vmatprep.subr.mxu0 0.0
          %2095 = vmatpush1.msra.mxu0 0.0
          %2096 = vmatprep.subr.mxu0 0.0
          %2097 = vmatpush1.msra.mxu0 0.0
          %2098 = vmatprep.subr.mxu0 0.0
          %2099 = vmatpush1.msra.mxu0 0.0
          %2100 = vmatprep.subr.mxu0 0.0
          %2101 = vmatpush1.msra.mxu0 0.0
          %2102 = vmatprep.subr.mxu0 0.0
          %2103 = vmatpush1.msra.mxu0 0.0
          %2104 = vmatprep.subr.mxu0 0.0
          %2105 = vmatpush1.msra.mxu0 0.0
          %2106 = vmatprep.subr.mxu0 0.0
          %2107 = vmatpush1.msra.mxu0 0.0
          %2108 = vmatprep.subr.mxu0 0.0
          %2109 = vmatpush1.msra.mxu0 0.0
          %2110 = vmatprep.subr.mxu0 0.0
          %2111 = vmatpush1.msra.mxu0 0.0
          %2112 = vmatprep.subr.mxu0 0.0
          %2113 = vmatpush1.msra.mxu0 0.0
          %2114 = vmatprep.subr.mxu0 0.0
          %2115 = vmatpush1.msra.mxu0 0.0
          %2116 = vmatprep.subr.mxu0 0.0
          %2117 = vmatpush1.msra.mxu0 0.0
          %2118 = vmatprep.subr.mxu0 0.0
          %2119 = vmatpush1.msra.mxu0 0.0
          %2120 = vmatprep.subr.mxu0 0.0
          %2121 = vmatpush1.msra.mxu0 0.0
          %2122 = vmatprep.subr.mxu0 0.0
          %2123 = vmatpush1.msra.mxu0 0.0
          %2124 = vmatprep.subr.mxu0 0.0
          %2125 = vmatpush1.msra.mxu0 0.0
          %2126 = vmatprep.mubr.f32.mxu0 0.0
          %2127 = vmatmul.mubr.f32.gmra.mrb[0].mxu0 %v2046
          %v2128 = vpop.f32.mrb[0].mxu0
          %v2129 = vadd.f32 0.0, %v2128
          %v2130 = vpop.f32.mrb[0].mxu0
          %2131 = vmatprep.mubr.f32.mxu0 0.0
          %2132 = vmatmul.mubr.f32.gmra.mrb[0].mxu0 %v2047
          %v2133 = vpop.f32.mrb[0].mxu0
          %v2134 = vadd.f32 0.0, %v2133
          %v2135 = vpop.f32.mrb[0].mxu0
          %2136 = vmatprep.mubr.f32.mxu0 0.0
          %2137 = vmatmul.mubr.f32.gmra.mrb[0].mxu0 %v2048
          %v2138 = vpop.f32.mrb[0].mxu0
          %v2139 = vadd.f32 0.0, %v2138
          %v2140 = vpop.f32.mrb[0].mxu0
          %2141 = vmatprep.mubr.f32.mxu0 0.0
          %2142 = vmatmul.mubr.f32.gmra.mrb[0].mxu0 %v2049
          %v2143 = vpop.f32.mrb[0].mxu0
          %v2144 = vadd.f32 0.0, %v2143
          %v2145 = vpop.f32.mrb[0].mxu0
          %2146 = vmatprep.mubr.f32.mxu0 0.0
          %2147 = vmatmul.mubr.f32.gmra.mrb[0].mxu0 %v2050
          %v2148 = vpop.f32.mrb[0].mxu0
          %v2149 = vadd.f32 0.0, %v2148
          %v2150 = vpop.f32.mrb[0].mxu0
          %2151 = vmatprep.mubr.f32.mxu0 0.0
          %2152 = vmatmul.mubr.f32.gmra.mrb[0].mxu0 %v2051
          %v2153 = vpop.f32.mrb[0].mxu0
          %v2154 = vadd.f32 0.0, %v2153
          %v2155 = vpop.f32.mrb[0].mxu0
          %2156 = vmatprep.mubr.f32.mxu0 0.0
          %2157 = vmatmul.mubr.f32.gmra.mrb[0].mxu0 %v2052
          %v2158 = vpop.f32.mrb[0].mxu0
          %v2159 = vadd.f32 0.0, %v2158
          %v2160 = vpop.f32.mrb[0].mxu0
          %2161 = vmatprep.mubr.f32.mxu0 0.0
          %2162 = vmatmul.mubr.f32.gmra.mrb[0].mxu0 %v2053
          %v2163 = vpop.f32.mrb[0].mxu0
          %v2164 = vadd.f32 0.0, %v2163
          %v2165 = vpop.f32.mrb[0].mxu0
          %2166 = vmatprep.mubr.f32.mxu0 0.0
          %2167 = vmatmul.mubr.f32.gmra.mrb[0].mxu0 %v2054
          %v2168 = vpop.f32.mrb[0].mxu0
          %v2169 = vadd.f32 0.0, %v2168
          %v2170 = vpop.f32.mrb[0].mxu0
          %2171 = vmatprep.mubr.f32.mxu0 0.0
          %2172 = vmatmul.mubr.f32.gmra.mrb[0].mxu0 %v2055
          %v2173 = vpop.f32.mrb[0].mxu0
          %v2174 = vadd.f32 0.0, %v2173
          %v2175 = vpop.f32.mrb[0].mxu0
          %2176 = vmatprep.mubr.f32.mxu0 0.0
          %2177 = vmatmul.mubr.f32.gmra.mrb[0].mxu0 %v2056
          %v2178 = vpop.f32.mrb[0].mxu0
          %v2179 = vadd.f32 0.0, %v2178
          %v2180 = vpop.f32.mrb[0].mxu0
          %2181 = vmatprep.mubr.f32.mxu0 0.0
          %2182 = vmatmul.mubr.f32.gmra.mrb[0].mxu0 %v2057
          %v2183 = vpop.f32.mrb[0].mxu0
          %v2184 = vadd.f32 0.0, %v2183
          %v2185 = vpop.f32.mrb[0].mxu0
          %2186 = vmatprep.mubr.f32.mxu0 0.0
          %2187 = vmatmul.mubr.f32.gmra.mrb[0].mxu0 %v2058
          %v2188 = vpop.f32.mrb[0].mxu0
          %v2189 = vadd.f32 0.0, %v2188
          %v2190 = vpop.f32.mrb[0].mxu0
          %2191 = vmatprep.mubr.f32.mxu0 0.0
          %2192 = vmatmul.mubr.f32.gmra.mrb[0].mxu0 %v2059
          %v2193 = vpop.f32.mrb[0].mxu0
          %v2194 = vadd.f32 0.0, %v2193
          %v2195 = vpop.f32.mrb[0].mxu0
          %2196 = vmatprep.mubr.f32.mxu0 0.0
          %2197 = vmatmul.mubr.f32.gmra.mrb[0].mxu0 %v2060
          %v2198 = vpop.f32.mrb[0].mxu0
          %v2199 = vadd.f32 0.0, %v2198
          %v2200 = vpop.f32.mrb[0].mxu0
          %2201 = vmatprep.mubr.f32.mxu0 0.0
          %2202 = vmatmul.mubr.f32.gmra.mrb[0].mxu0 %v2061
          %v2203 = vpop.f32.mrb[0].mxu0
          %v2204 = vadd.f32 0.0, %v2203
          %v2205 = vpop.f32.mrb[0].mxu0
          %2206 = vdwg.mxu0
          %v2207 = vrsqrt.pop %v2129
          %v2208 = vmul.f32 %v2129, %v2207
          %vm2209 = vcmp.eq.f32.partialorder %v2129, inf
          %v2210 = vsel %vm2209, %v2129, %v2208
          %vm2211 = vcmp.eq.f32.partialorder %v2129, 0.0
          %v2212 = vand.u32 %v2129, 2147483648
          %v2213 = vsel %vm2211, %v2212, %v2210
          %v2214 = vrsqrt.pop %v2134
          %v2215 = vmul.f32 %v2134, %v2214
          %vm2216 = vcmp.eq.f32.partialorder %v2134, inf
          %v2217 = vsel %vm2216, %v2134, %v2215
          %vm2218 = vcmp.eq.f32.partialorder %v2134, 0.0
          %v2219 = vand.u32 %v2134, 2147483648
          %v2220 = vsel %vm2218, %v2219, %v2217
          %v2221 = vrsqrt.pop %v2139
          %v2222 = vmul.f32 %v2139, %v2221
          %vm2223 = vcmp.eq.f32.partialorder %v2139, inf
          %v2224 = vsel %vm2223, %v2139, %v2222
          %vm2225 = vcmp.eq.f32.partialorder %v2139, 0.0
          %v2226 = vand.u32 %v2139, 2147483648
          %v2227 = vsel %vm2225, %v2226, %v2224
          %v2228 = vrsqrt.pop %v2144
          %v2229 = vmul.f32 %v2144, %v2228
          %vm2230 = vcmp.eq.f32.partialorder %v2144, inf
          %v2231 = vsel %vm2230, %v2144, %v2229
          %vm2232 = vcmp.eq.f32.partialorder %v2144, 0.0
          %v2233 = vand.u32 %v2144, 2147483648
          %v2234 = vsel %vm2232, %v2233, %v2231
          %v2235 = vrsqrt.pop %v2149
          %v2236 = vmul.f32 %v2149, %v2235
          %vm2237 = vcmp.eq.f32.partialorder %v2149, inf
          %v2238 = vsel %vm2237, %v2149, %v2236
          %vm2239 = vcmp.eq.f32.partialorder %v2149, 0.0
          %v2240 = vand.u32 %v2149, 2147483648
          %v2241 = vsel %vm2239, %v2240, %v2238
          %v2242 = vrsqrt.pop %v2154
          %v2243 = vmul.f32 %v2154, %v2242
          %vm2244 = vcmp.eq.f32.partialorder %v2154, inf
          %v2245 = vsel %vm2244, %v2154, %v2243
          %vm2246 = vcmp.eq.f32.partialorder %v2154, 0.0
          %v2247 = vand.u32 %v2154, 2147483648
          %v2248 = vsel %vm2246, %v2247, %v2245
          %v2249 = vrsqrt.pop %v2159
          %v2250 = vmul.f32 %v2159, %v2249
          %vm2251 = vcmp.eq.f32.partialorder %v2159, inf
          %v2252 = vsel %vm2251, %v2159, %v2250
          %vm2253 = vcmp.eq.f32.partialorder %v2159, 0.0
          %v2254 = vand.u32 %v2159, 2147483648
          %v2255 = vsel %vm2253, %v2254, %v2252
          %v2256 = vrsqrt.pop %v2164
          %v2257 = vmul.f32 %v2164, %v2256
          %vm2258 = vcmp.eq.f32.partialorder %v2164, inf
          %v2259 = vsel %vm2258, %v2164, %v2257
          %vm2260 = vcmp.eq.f32.partialorder %v2164, 0.0
          %v2261 = vand.u32 %v2164, 2147483648
          %v2262 = vsel %vm2260, %v2261, %v2259
          %v2263 = vrsqrt.pop %v2169
          %v2264 = vmul.f32 %v2169, %v2263
          %vm2265 = vcmp.eq.f32.partialorder %v2169, inf
          %v2266 = vsel %vm2265, %v2169, %v2264
          %vm2267 = vcmp.eq.f32.partialorder %v2169, 0.0
          %v2268 = vand.u32 %v2169, 2147483648
          %v2269 = vsel %vm2267, %v2268, %v2266
          %v2270 = vrsqrt.pop %v2174
          %v2271 = vmul.f32 %v2174, %v2270
          %vm2272 = vcmp.eq.f32.partialorder %v2174, inf
          %v2273 = vsel %vm2272, %v2174, %v2271
          %vm2274 = vcmp.eq.f32.partialorder %v2174, 0.0
          %v2275 = vand.u32 %v2174, 2147483648
          %v2276 = vsel %vm2274, %v2275, %v2273
          %v2277 = vrsqrt.pop %v2179
          %v2278 = vmul.f32 %v2179, %v2277
          %vm2279 = vcmp.eq.f32.partialorder %v2179, inf
          %v2280 = vsel %vm2279, %v2179, %v2278
          %vm2281 = vcmp.eq.f32.partialorder %v2179, 0.0
          %v2282 = vand.u32 %v2179, 2147483648
          %v2283 = vsel %vm2281, %v2282, %v2280
          %v2284 = vrsqrt.pop %v2184
          %v2285 = vmul.f32 %v2184, %v2284
          %vm2286 = vcmp.eq.f32.partialorder %v2184, inf
          %v2287 = vsel %vm2286, %v2184, %v2285
          %vm2288 = vcmp.eq.f32.partialorder %v2184, 0.0
          %v2289 = vand.u32 %v2184, 2147483648
          %v2290 = vsel %vm2288, %v2289, %v2287
          %v2291 = vrsqrt.pop %v2189
          %v2292 = vmul.f32 %v2189, %v2291
          %vm2293 = vcmp.eq.f32.partialorder %v2189, inf
          %v2294 = vsel %vm2293, %v2189, %v2292
          %vm2295 = vcmp.eq.f32.partialorder %v2189, 0.0
          %v2296 = vand.u32 %v2189, 2147483648
          %v2297 = vsel %vm2295, %v2296, %v2294
          %v2298 = vrsqrt.pop %v2194
          %v2299 = vmul.f32 %v2194, %v2298
          %vm2300 = vcmp.eq.f32.partialorder %v2194, inf
          %v2301 = vsel %vm2300, %v2194, %v2299
          %vm2302 = vcmp.eq.f32.partialorder %v2194, 0.0
          %v2303 = vand.u32 %v2194, 2147483648
          %v2304 = vsel %vm2302, %v2303, %v2301
          %v2305 = vrsqrt.pop %v2199
          %v2306 = vmul.f32 %v2199, %v2305
          %vm2307 = vcmp.eq.f32.partialorder %v2199, inf
          %v2308 = vsel %vm2307, %v2199, %v2306
          %vm2309 = vcmp.eq.f32.partialorder %v2199, 0.0
          %v2310 = vand.u32 %v2199, 2147483648
          %v2311 = vsel %vm2309, %v2310, %v2308
          %v2312 = vrsqrt.pop %v2204
          %v2313 = vmul.f32 %v2204, %v2312
          %vm2314 = vcmp.eq.f32.partialorder %v2204, inf
          %v2315 = vsel %vm2314, %v2204, %v2313
          %vm2316 = vcmp.eq.f32.partialorder %v2204, 0.0
          %v2317 = vand.u32 %v2204, 2147483648
          %v2318 = vsel %vm2316, %v2317, %v2315
          %v2319 = vmax.f32 %v2213, 1e-08
          %v2320 = vmax.f32 %v2220, 1e-08
          %v2321 = vmax.f32 %v2227, 1e-08
          %v2322 = vmax.f32 %v2234, 1e-08
          %v2323 = vmax.f32 %v2241, 1e-08
          %v2324 = vmax.f32 %v2248, 1e-08
          %v2325 = vmax.f32 %v2255, 1e-08
          %v2326 = vmax.f32 %v2262, 1e-08
          %v2327 = vmax.f32 %v2269, 1e-08
          %v2328 = vmax.f32 %v2276, 1e-08
          %v2329 = vmax.f32 %v2283, 1e-08
          %v2330 = vmax.f32 %v2290, 1e-08
          %v2331 = vmax.f32 %v2297, 1e-08
          %v2332 = vmax.f32 %v2304, 1e-08
          %v2333 = vmax.f32 %v2311, 1e-08
          %v2334 = vmax.f32 %v2318, 1e-08
          %v2335 = vmul.f32 %v2319, %v1367
          %v2336 = vmul.f32 %v2320, %v1367
          %v2337 = vmul.f32 %v2321, %v1371
          %v2338 = vmul.f32 %v2322, %v1371
          %v2339 = vmul.f32 %v2323, %v1375
          %v2340 = vmul.f32 %v2324, %v1375
          %v2341 = vmul.f32 %v2325, %v1379
          %v2342 = vmul.f32 %v2326, %v1379
          %v2343 = vmul.f32 %v2327, %v1383
          %v2344 = vmul.f32 %v2328, %v1383
          %v2345 = vmul.f32 %v2329, %v1387
          %v2346 = vmul.f32 %v2330, %v1387
          %v2347 = vmul.f32 %v2331, %v1391
          %v2348 = vmul.f32 %v2332, %v1391
          %v2349 = vmul.f32 %v2333, %v1395
          %v2350 = vmul.f32 %v2334, %v1395
          %v2351 = vrcp.pop %v2335
          %v2352 = vmul.f32 %v1968, %v2351
          %v2353 = vrcp.pop %v2336
          %v2354 = vmul.f32 %v1973, %v2353
          %v2355 = vrcp.pop %v2337
          %v2356 = vmul.f32 %v1978, %v2355
          %v2357 = vrcp.pop %v2338
          %v2358 = vmul.f32 %v1983, %v2357
          %v2359 = vrcp.pop %v2339
          %v2360 = vmul.f32 %v1988, %v2359
          %v2361 = vrcp.pop %v2340
          %v2362 = vmul.f32 %v1993, %v2361
          %v2363 = vrcp.pop %v2341
          %v2364 = vmul.f32 %v1998, %v2363
          %v2365 = vrcp.pop %v2342
          %v2366 = vmul.f32 %v2003, %v2365
          %v2367 = vrcp.pop %v2343
          %v2368 = vmul.f32 %v2008, %v2367
          %v2369 = vrcp.pop %v2344
          %v2370 = vmul.f32 %v2013, %v2369
          %v2371 = vrcp.pop %v2345
          %v2372 = vmul.f32 %v2018, %v2371
          %v2373 = vrcp.pop %v2346
          %v2374 = vmul.f32 %v2023, %v2373
          %v2375 = vrcp.pop %v2347
          %v2376 = vmul.f32 %v2028, %v2375
          %v2377 = vrcp.pop %v2348
          %v2378 = vmul.f32 %v2033, %v2377
          %v2379 = vrcp.pop %v2349
          %v2380 = vmul.f32 %v2038, %v2379
          %v2381 = vrcp.pop %v2350
          %v2382 = vmul.f32 %v2043, %v2381
          %v2383 = vmul.f32 %v2352, %v1455
          %v2384 = vmul.f32 %v2354, %v1455
          %v2385 = vmul.f32 %v2356, %v1459
          %v2386 = vmul.f32 %v2358, %v1459
          %v2387 = vmul.f32 %v2360, %v1463
          %v2388 = vmul.f32 %v2362, %v1463
          %v2389 = vmul.f32 %v2364, %v1467
          %v2390 = vmul.f32 %v2366, %v1467
          %v2391 = vmul.f32 %v2368, %v1471
          %v2392 = vmul.f32 %v2370, %v1471
          %v2393 = vmul.f32 %v2372, %v1475
          %v2394 = vmul.f32 %v2374, %v1475
          %v2395 = vmul.f32 %v2376, %v1479
          %v2396 = vmul.f32 %v2378, %v1479
          %v2397 = vmul.f32 %v2380, %v1483
          %v2398 = vmul.f32 %v2382, %v1483
          %v2399 = vsel %vm1508, %v2383, -inf
          %v2400 = vsel %vm1508, %v2384, -inf
          %v2401 = vmax.f32 %v2399, %v2400
          %v2402 = vrot.slane %v2401, 4
          %v2403 = vmax.f32 %v2401, %v2402
          %v2404 = vrot.slane %v2403, 2
          %v2405 = vmax.f32 %v2403, %v2404
          %v2406 = vrot.slane %v2405, 1
          %v2407 = vmax.f32 %v2405, %v2406
          %v2408 = vsel %vm1508, %v2385, -inf
          %v2409 = vsel %vm1508, %v2386, -inf
          %v2410 = vmax.f32 %v2408, %v2409
          %v2411 = vrot.slane %v2410, 4
          %v2412 = vmax.f32 %v2410, %v2411
          %v2413 = vrot.slane %v2412, 2
          %v2414 = vmax.f32 %v2412, %v2413
          %v2415 = vrot.slane %v2414, 1
          %v2416 = vmax.f32 %v2414, %v2415
          %v2417 = vsel %vm1508, %v2387, -inf
          %v2418 = vsel %vm1508, %v2388, -inf
          %v2419 = vmax.f32 %v2417, %v2418
          %v2420 = vrot.slane %v2419, 4
          %v2421 = vmax.f32 %v2419, %v2420
          %v2422 = vrot.slane %v2421, 2
          %v2423 = vmax.f32 %v2421, %v2422
          %v2424 = vrot.slane %v2423, 1
          %v2425 = vmax.f32 %v2423, %v2424
          %v2426 = vsel %vm1508, %v2389, -inf
          %v2427 = vsel %vm1508, %v2390, -inf
          %v2428 = vmax.f32 %v2426, %v2427
          %v2429 = vrot.slane %v2428, 4
          %v2430 = vmax.f32 %v2428, %v2429
          %v2431 = vrot.slane %v2430, 2
          %v2432 = vmax.f32 %v2430, %v2431
          %v2433 = vrot.slane %v2432, 1
          %v2434 = vmax.f32 %v2432, %v2433
          %v2435 = vsel %vm1508, %v2391, -inf
          %v2436 = vsel %vm1508, %v2392, -inf
          %v2437 = vmax.f32 %v2435, %v2436
          %v2438 = vrot.slane %v2437, 4
          %v2439 = vmax.f32 %v2437, %v2438
          %v2440 = vrot.slane %v2439, 2
          %v2441 = vmax.f32 %v2439, %v2440
          %v2442 = vrot.slane %v2441, 1
          %v2443 = vmax.f32 %v2441, %v2442
          %v2444 = vsel %vm1508, %v2393, -inf
          %v2445 = vsel %vm1508, %v2394, -inf
          %v2446 = vmax.f32 %v2444, %v2445
          %v2447 = vrot.slane %v2446, 4
          %v2448 = vmax.f32 %v2446, %v2447
          %v2449 = vrot.slane %v2448, 2
          %v2450 = vmax.f32 %v2448, %v2449
          %v2451 = vrot.slane %v2450, 1
          %v2452 = vmax.f32 %v2450, %v2451
          %v2453 = vsel %vm1508, %v2395, -inf
          %v2454 = vsel %vm1508, %v2396, -inf
          %v2455 = vmax.f32 %v2453, %v2454
          %v2456 = vrot.slane %v2455, 4
          %v2457 = vmax.f32 %v2455, %v2456
          %v2458 = vrot.slane %v2457, 2
          %v2459 = vmax.f32 %v2457, %v2458
          %v2460 = vrot.slane %v2459, 1
          %v2461 = vmax.f32 %v2459, %v2460
          %v2462 = vsel %vm1508, %v2397, -inf
          %v2463 = vsel %vm1508, %v2398, -inf
          %v2464 = vmax.f32 %v2462, %v2463
          %v2465 = vrot.slane %v2464, 4
          %v2466 = vmax.f32 %v2464, %v2465
          %v2467 = vrot.slane %v2466, 2
          %v2468 = vmax.f32 %v2466, %v2467
          %v2469 = vrot.slane %v2468, 1
          %v2470 = vmax.f32 %v2468, %v2469
          %v2471 = vsub.f32 %v2383, %v2407
          %v2472 = vsub.f32 %v2384, %v2407
          %v2473 = vsub.f32 %v2385, %v2416
          %v2474 = vsub.f32 %v2386, %v2416
          %v2475 = vsub.f32 %v2387, %v2425
          %v2476 = vsub.f32 %v2388, %v2425
          %v2477 = vsub.f32 %v2389, %v2434
          %v2478 = vsub.f32 %v2390, %v2434
          %v2479 = vsub.f32 %v2391, %v2443
          %v2480 = vsub.f32 %v2392, %v2443
          %v2481 = vsub.f32 %v2393, %v2452
          %v2482 = vsub.f32 %v2394, %v2452
          %v2483 = vsub.f32 %v2395, %v2461
          %v2484 = vsub.f32 %v2396, %v2461
          %v2485 = vsub.f32 %v2397, %v2470
          %v2486 = vsub.f32 %v2398, %v2470
          %v2487 = vmul.f32 %v2471, 1.442695
          %v2488 = vpow.pop %v2487
          %v2489 = vmul.f32 %v2472, 1.442695
          %v2490 = vpow.pop %v2489
          %v2491 = vmul.f32 %v2473, 1.442695
          %v2492 = vpow.pop %v2491
          %v2493 = vmul.f32 %v2474, 1.442695
          %v2494 = vpow.pop %v2493
          %v2495 = vmul.f32 %v2475, 1.442695
          %v2496 = vpow.pop %v2495
          %v2497 = vmul.f32 %v2476, 1.442695
          %v2498 = vpow.pop %v2497
          %v2499 = vmul.f32 %v2477, 1.442695
          %v2500 = vpow.pop %v2499
          %v2501 = vmul.f32 %v2478, 1.442695
          %v2502 = vpow.pop %v2501
          %v2503 = vmul.f32 %v2479, 1.442695
          %v2504 = vpow.pop %v2503
          %v2505 = vmul.f32 %v2480, 1.442695
          %v2506 = vpow.pop %v2505
          %v2507 = vmul.f32 %v2481, 1.442695
          %v2508 = vpow.pop %v2507
          %v2509 = vmul.f32 %v2482, 1.442695
          %v2510 = vpow.pop %v2509
          %v2511 = vmul.f32 %v2483, 1.442695
          %v2512 = vpow.pop %v2511
          %v2513 = vmul.f32 %v2484, 1.442695
          %v2514 = vpow.pop %v2513
          %v2515 = vmul.f32 %v2485, 1.442695
          %v2516 = vpow.pop %v2515
          %v2517 = vmul.f32 %v2486, 1.442695
          %v2518 = vpow.pop %v2517
          %v2519 = vsel %vm1508, %v2488, 0.0
          %v2520 = vsel %vm1508, %v2490, 0.0
          %v2521 = vadd.f32 %v2519, %v2520
          %v2522 = vrot.slane %v2521, 4
          %v2523 = vadd.f32 %v2521, %v2522
          %v2524 = vrot.slane %v2523, 2
          %v2525 = vadd.f32 %v2523, %v2524
          %v2526 = vrot.slane %v2525, 1
          %v2527 = vadd.f32 %v2525, %v2526
          %v2528 = vsel %vm1508, %v2492, 0.0
          %v2529 = vsel %vm1508, %v2494, 0.0
          %v2530 = vadd.f32 %v2528, %v2529
          %v2531 = vrot.slane %v2530, 4
          %v2532 = vadd.f32 %v2530, %v2531
          %v2533 = vrot.slane %v2532, 2
          %v2534 = vadd.f32 %v2532, %v2533
          %v2535 = vrot.slane %v2534, 1
          %v2536 = vadd.f32 %v2534, %v2535
          %v2537 = vsel %vm1508, %v2496, 0.0
          %v2538 = vsel %vm1508, %v2498, 0.0
          %v2539 = vadd.f32 %v2537, %v2538
          %v2540 = vrot.slane %v2539, 4
          %v2541 = vadd.f32 %v2539, %v2540
          %v2542 = vrot.slane %v2541, 2
          %v2543 = vadd.f32 %v2541, %v2542
          %v2544 = vrot.slane %v2543, 1
          %v2545 = vadd.f32 %v2543, %v2544
          %v2546 = vsel %vm1508, %v2500, 0.0
          %v2547 = vsel %vm1508, %v2502, 0.0
          %v2548 = vadd.f32 %v2546, %v2547
          %v2549 = vrot.slane %v2548, 4
          %v2550 = vadd.f32 %v2548, %v2549
          %v2551 = vrot.slane %v2550, 2
          %v2552 = vadd.f32 %v2550, %v2551
          %v2553 = vrot.slane %v2552, 1
          %v2554 = vadd.f32 %v2552, %v2553
          %v2555 = vsel %vm1508, %v2504, 0.0
          %v2556 = vsel %vm1508, %v2506, 0.0
          %v2557 = vadd.f32 %v2555, %v2556
          %v2558 = vrot.slane %v2557, 4
          %v2559 = vadd.f32 %v2557, %v2558
          %v2560 = vrot.slane %v2559, 2
          %v2561 = vadd.f32 %v2559, %v2560
          %v2562 = vrot.slane %v2561, 1
          %v2563 = vadd.f32 %v2561, %v2562
          %v2564 = vsel %vm1508, %v2508, 0.0
          %v2565 = vsel %vm1508, %v2510, 0.0
          %v2566 = vadd.f32 %v2564, %v2565
          %v2567 = vrot.slane %v2566, 4
          %v2568 = vadd.f32 %v2566, %v2567
          %v2569 = vrot.slane %v2568, 2
          %v2570 = vadd.f32 %v2568, %v2569
          %v2571 = vrot.slane %v2570, 1
          %v2572 = vadd.f32 %v2570, %v2571
          %v2573 = vsel %vm1508, %v2512, 0.0
          %v2574 = vsel %vm1508, %v2514, 0.0
          %v2575 = vadd.f32 %v2573, %v2574
          %v2576 = vrot.slane %v2575, 4
          %v2577 = vadd.f32 %v2575, %v2576
          %v2578 = vrot.slane %v2577, 2
          %v2579 = vadd.f32 %v2577, %v2578
          %v2580 = vrot.slane %v2579, 1
          %v2581 = vadd.f32 %v2579, %v2580
          %v2582 = vsel %vm1508, %v2516, 0.0
          %v2583 = vsel %vm1508, %v2518, 0.0
          %v2584 = vadd.f32 %v2582, %v2583
          %v2585 = vrot.slane %v2584, 4
          %v2586 = vadd.f32 %v2584, %v2585
          %v2587 = vrot.slane %v2586, 2
          %v2588 = vadd.f32 %v2586, %v2587
          %v2589 = vrot.slane %v2588, 1
          %v2590 = vadd.f32 %v2588, %v2589
          %v2591 = vrcp.pop %v2527
          %v2592 = vmul.f32 1.0, %v2591
          %v2593 = vrcp.pop %v2536
          %v2594 = vmul.f32 1.0, %v2593
          %v2595 = vrcp.pop %v2545
          %v2596 = vmul.f32 1.0, %v2595
          %v2597 = vrcp.pop %v2554
          %v2598 = vmul.f32 1.0, %v2597
          %v2599 = vrcp.pop %v2563
          %v2600 = vmul.f32 1.0, %v2599
          %v2601 = vrcp.pop %v2572
          %v2602 = vmul.f32 1.0, %v2601
          %v2603 = vrcp.pop %v2581
          %v2604 = vmul.f32 1.0, %v2603
          %v2605 = vrcp.pop %v2590
          %v2606 = vmul.f32 1.0, %v2605
          %v2607 = vmul.f32 %v2488, %v2592
          %v2608 = vmul.f32 %v2490, %v2592
          %v2609 = vmul.f32 %v2492, %v2594
          %v2610 = vmul.f32 %v2494, %v2594
          %v2611 = vmul.f32 %v2496, %v2596
          %v2612 = vmul.f32 %v2498, %v2596
          %v2613 = vmul.f32 %v2500, %v2598
          %v2614 = vmul.f32 %v2502, %v2598
          %v2615 = vmul.f32 %v2504, %v2600
          %v2616 = vmul.f32 %v2506, %v2600
          %v2617 = vmul.f32 %v2508, %v2602
          %v2618 = vmul.f32 %v2510, %v2602
          %v2619 = vmul.f32 %v2512, %v2604
          %v2620 = vmul.f32 %v2514, %v2604
          %v2621 = vmul.f32 %v2516, %v2606
          %v2622 = vmul.f32 %v2518, %v2606
          %vm2631 = vcmask 1041409
          %v2632 = vsel %vm2631, %v1842, %v1835
          %vm2633 = vcmask 1042434
          %v2634 = vsel %vm2633, %v1849, %v2632
          %vm2635 = vcmask 1043459
          %v2636 = vsel %vm2635, %v1856, %v2634
          %vm2637 = vcmask 1044484
          %v2638 = vsel %vm2637, %v1863, %v2636
          %vm2639 = vcmask 1045509
          %v2640 = vsel %vm2639, %v1870, %v2638
          %vm2641 = vcmask 1046534
          %v2642 = vsel %vm2641, %v1877, %v2640
          %vm2643 = vcmask 1047559
          %v2644 = vsel %vm2643, %v1884, %v2642
          %v2646 = vld [vmem:[%s7] sm:$0xff]
          %v2647 = vld [vmem:[%s7 + $0x8] sm:$0xff]
          %v2648 = vld [vmem:[%s7 + $0x10] sm:$0xff]
          %v2649 = vld [vmem:[%s7 + $0x18] sm:$0xff]
          %v2650 = vld [vmem:[%s7 + $0x20] sm:$0xff]
          %v2651 = vld [vmem:[%s7 + $0x28] sm:$0xff]
          %v2652 = vld [vmem:[%s7 + $0x30] sm:$0xff]
          %v2653 = vld [vmem:[%s7 + $0x38] sm:$0xff]
          %v2654 = vld [vmem:[%s7 + $0x40] sm:$0xff]
          %v2655 = vld [vmem:[%s7 + $0x48] sm:$0xff]
          %v2656 = vld [vmem:[%s7 + $0x50] sm:$0xff]
          %v2657 = vld [vmem:[%s7 + $0x58] sm:$0xff]
          %v2658 = vld [vmem:[%s7 + $0x60] sm:$0xff]
          %v2659 = vld [vmem:[%s7 + $0x68] sm:$0xff]
          %v2660 = vld [vmem:[%s7 + $0x70] sm:$0xff]
          %v2661 = vld [vmem:[%s7 + $0x78] sm:$0xff]
          %v2662 = vld [vmem:[%s7 + $0x80] sm:$0xff]
          %v2663 = vld [vmem:[%s7 + $0x88] sm:$0xff]
          %v2664 = vld [vmem:[%s7 + $0x90] sm:$0xff]
          %v2665 = vld [vmem:[%s7 + $0x98] sm:$0xff]
          %v2666 = vld [vmem:[%s8] sm:$0x1]
          %v2668 = vlaneseq
          %v2669 = vshrl.u32 %v2668, 7
          %v2670 = vsub.s32 0, %v2669
          %v2671 = vrot.slane %v2666, %v2670
          %2673 = vmatprep.subr.mxu0 0.0
          %2674 = vmatpush1.msra.mxu0 %v2646
          %2675 = vmatprep.subr.mxu0 0.0
          %2676 = vmatpush1.msra.mxu0 %v2647
          %2677 = vmatprep.subr.mxu0 0.0
          %2678 = vmatpush1.msra.mxu0 %v2648
          %2679 = vmatprep.subr.mxu0 0.0
          %2680 = vmatpush1.msra.mxu0 %v2649
          %2681 = vmatprep.subr.mxu0 0.0
          %2682 = vmatpush1.msra.mxu0 %v2650
          %2683 = vmatprep.subr.mxu0 0.0
          %2684 = vmatpush1.msra.mxu0 %v2651
          %2685 = vmatprep.subr.mxu0 0.0
          %2686 = vmatpush1.msra.mxu0 %v2652
          %2687 = vmatprep.subr.mxu0 0.0
          %2688 = vmatpush1.msra.mxu0 %v2653
          %2689 = vmatprep.subr.mxu0 0.0
          %2690 = vmatpush1.msra.mxu0 %v2654
          %2691 = vmatprep.subr.mxu0 0.0
          %2692 = vmatpush1.msra.mxu0 %v2655
          %2693 = vmatprep.subr.mxu0 0.0
          %2694 = vmatpush1.msra.mxu0 %v2656
          %2695 = vmatprep.subr.mxu0 0.0
          %2696 = vmatpush1.msra.mxu0 %v2657
          %2697 = vmatprep.subr.mxu0 0.0
          %2698 = vmatpush1.msra.mxu0 %v2658
          %2699 = vmatprep.subr.mxu0 0.0
          %2700 = vmatpush1.msra.mxu0 %v2659
          %2701 = vmatprep.subr.mxu0 0.0
          %2702 = vmatpush1.msra.mxu0 %v2660
          %2703 = vmatprep.subr.mxu0 0.0
          %2704 = vmatpush1.msra.mxu0 %v2661
          %2705 = vmatprep.subr.mxu0 0.0
          %2706 = vmatpush1.msra.mxu0 %v2662
          %2707 = vmatprep.subr.mxu0 0.0
          %2708 = vmatpush1.msra.mxu0 %v2663
          %2709 = vmatprep.subr.mxu0 0.0
          %2710 = vmatpush1.msra.mxu0 %v2664
          %2711 = vmatprep.subr.mxu0 0.0
          %2712 = vmatpush1.msra.mxu0 %v2665
          %2713 = vmatprep.subr.mxu0 0.0
          %2714 = vmatpush1.msra.mxu0 0.0
          %2715 = vmatprep.subr.mxu0 0.0
          %2716 = vmatpush1.msra.mxu0 0.0
          %2717 = vmatprep.subr.mxu0 0.0
          %2718 = vmatpush1.msra.mxu0 0.0
          %2719 = vmatprep.subr.mxu0 0.0
          %2720 = vmatpush1.msra.mxu0 0.0
          %2721 = vmatprep.subr.mxu0 0.0
          %2722 = vmatpush1.msra.mxu0 0.0
          %2723 = vmatprep.subr.mxu0 0.0
          %2724 = vmatpush1.msra.mxu0 0.0
          %2725 = vmatprep.subr.mxu0 0.0
          %2726 = vmatpush1.msra.mxu0 0.0
          %2727 = vmatprep.subr.mxu0 0.0
          %2728 = vmatpush1.msra.mxu0 0.0
          %2729 = vmatprep.subr.mxu0 0.0
          %2730 = vmatpush1.msra.mxu0 0.0
          %2731 = vmatprep.subr.mxu0 0.0
          %2732 = vmatpush1.msra.mxu0 0.0
          %2733 = vmatprep.subr.mxu0 0.0
          %2734 = vmatpush1.msra.mxu0 0.0
          %2735 = vmatprep.subr.mxu0 0.0
          %2736 = vmatpush1.msra.mxu0 0.0
          %2737 = vmatprep.mubr.f32.mxu0 %v562
          %2738 = vmatmul.mubr.f32.gmra.mrb[0].mxu0 %v2644
          %v2739 = vpop.f32.mrb[0].mxu0
          %v2740 = vadd.f32 %v2671, %v2739
          %v2741 = vpop.f32.mrb[0].mxu0
          %2742 = vdwg.mxu0
          %v2743 = vmul.f32 %v2740, 0.5
          %v2744 = vtanh.pop %v2743
          %v2745 = vadd.f32 %v2744, 1.0
          %v2746 = vmul.f32 %v2745, 0.5
          %2748 = vrot.lane.b32.xlu0 %v2740, 32
          %v2749 = vpop.permute.xlu0 %2748
          %v2751 = vmul.f32 %v2746, %v2749
          %2753 = vrot.lane.b32.xlu0 %v2751, 64
          %v2754 = vpop.permute.xlu0 %2753
          %v2756 = vadd.f32 %v2740, %v2754
          %v2757 = vtanh.pop %v2756
          %v2758 = vsub.f32 1.0, %v2746
          %2760 = vrot.lane.b32.xlu0 %v2757, 96
          %v2761 = vpop.permute.xlu0 %2760
          %v2763 = vmul.f32 %v2758, %v2761
          %2764 = vrot.lane.b32.xlu0 %v505, 32
          %v2765 = vpop.permute.xlu0 %2764
          %v2767 = vmul.f32 %v2746, %v2765
          %v2768 = vadd.f32 %v2763, %v2767
          %v2769 = vld [vmem:[#allocation8] sm:$0xff]
          %v2770 = vld [vmem:[#allocation8 + $0x8] sm:$0xff]
          %v2771 = vld [vmem:[#allocation8 + $0x10] sm:$0xff]
          %v2772 = vld [vmem:[#allocation8 + $0x18] sm:$0xff]
          %v2773 = vld [vmem:[#allocation8 + $0x20] sm:$0xff]
          %v2774 = vld [vmem:[#allocation8 + $0x28] sm:$0xff]
          %v2775 = vld [vmem:[#allocation8 + $0x30] sm:$0xff]
          %v2776 = vld [vmem:[#allocation8 + $0x38] sm:$0xff]
          %v2777 = vld [vmem:[%s6] sm:$0x3]
          %v2779 = vlaneseq
          %v2780 = vshrl.u32 %v2779, 7
          %v2781 = vsub.s32 0, %v2780
          %v2782 = vrot.slane %v2777, %v2781
          %v2783 = vlaneseq
          %v2784 = vshrl.u32 %v2783, 7
          %v2785 = vsub.s32 1, %v2784
          %v2786 = vrot.slane %v2777, %v2785
          %2790 = vrot.lane.b32.xlu0 %v2768, 96
          %v2791 = vpop.permute.xlu0 %2790
          %v2792 = vsel %vm560, %v2791, 0
          %2794 = vmatprep.subr.mxu0 %v2770
          %2795 = vmatpush1.msra.mxu0 %v2769
          %2796 = vmatprep.subr.mxu0 %v2772
          %2797 = vmatpush1.msra.mxu0 %v2771
          %2798 = vmatprep.subr.mxu0 %v2774
          %2799 = vmatpush1.msra.mxu0 %v2773
          %2800 = vmatprep.subr.mxu0 %v2776
          %2801 = vmatpush1.msra.mxu0 %v2775
          %2802 = vmatprep.subr.mxu0 0.0
          %2803 = vmatpush1.msra.mxu0 0.0
          %2804 = vmatprep.subr.mxu0 0.0
          %2805 = vmatpush1.msra.mxu0 0.0
          %2806 = vmatprep.subr.mxu0 0.0
          %2807 = vmatpush1.msra.mxu0 0.0
          %2808 = vmatprep.subr.mxu0 0.0
          %2809 = vmatpush1.msra.mxu0 0.0
          %2810 = vmatprep.subr.mxu0 0.0
          %2811 = vmatpush1.msra.mxu0 0.0
          %2812 = vmatprep.subr.mxu0 0.0
          %2813 = vmatpush1.msra.mxu0 0.0
          %2814 = vmatprep.subr.mxu0 0.0
          %2815 = vmatpush1.msra.mxu0 0.0
          %2816 = vmatprep.subr.mxu0 0.0
          %2817 = vmatpush1.msra.mxu0 0.0
          %2818 = vmatprep.subr.mxu0 0.0
          %2819 = vmatpush1.msra.mxu0 0.0
          %2820 = vmatprep.subr.mxu0 0.0
          %2821 = vmatpush1.msra.mxu0 0.0
          %2822 = vmatprep.subr.mxu0 0.0
          %2823 = vmatpush1.msra.mxu0 0.0
          %2824 = vmatprep.subr.mxu0 0.0
          %2825 = vmatpush1.msra.mxu0 0.0
          %2826 = vmatprep.subr.mxu0 0.0
          %2827 = vmatpush1.msra.mxu0 0.0
          %2828 = vmatprep.subr.mxu0 0.0
          %2829 = vmatpush1.msra.mxu0 0.0
          %2830 = vmatprep.subr.mxu0 0.0
          %2831 = vmatpush1.msra.mxu0 0.0
          %2832 = vmatprep.subr.mxu0 0.0
          %2833 = vmatpush1.msra.mxu0 0.0
          %2834 = vmatprep.subr.mxu0 0.0
          %2835 = vmatpush1.msra.mxu0 0.0
          %2836 = vmatprep.subr.mxu0 0.0
          %2837 = vmatpush1.msra.mxu0 0.0
          %2838 = vmatprep.subr.mxu0 0.0
          %2839 = vmatpush1.msra.mxu0 0.0
          %2840 = vmatprep.subr.mxu0 0.0
          %2841 = vmatpush1.msra.mxu0 0.0
          %2842 = vmatprep.subr.mxu0 0.0
          %2843 = vmatpush1.msra.mxu0 0.0
          %2844 = vmatprep.subr.mxu0 0.0
          %2845 = vmatpush1.msra.mxu0 0.0
          %2846 = vmatprep.subr.mxu0 0.0
          %2847 = vmatpush1.msra.mxu0 0.0
          %2848 = vmatprep.subr.mxu0 0.0
          %2849 = vmatpush1.msra.mxu0 0.0
          %2850 = vmatprep.subr.mxu0 0.0
          %2851 = vmatpush1.msra.mxu0 0.0
          %2852 = vmatprep.subr.mxu0 0.0
          %2853 = vmatpush1.msra.mxu0 0.0
          %2854 = vmatprep.subr.mxu0 0.0
          %2855 = vmatpush1.msra.mxu0 0.0
          %2856 = vmatprep.subr.mxu0 0.0
          %2857 = vmatpush1.msra.mxu0 0.0
          %2858 = vmatprep.mubr.f32.mxu0 0.0
          %2859 = vmatmul.mubr.f32.gmra.mrb[0].mxu0 %v2792
          %v2860 = vpop.f32.mrb[0].mxu0
          %v2861 = vadd.f32 %v2782, %v2860
          %v2862 = vpop.f32.mrb[0].mxu0
          %v2863 = vadd.f32 %v2786, %v2862
          %2864 = vdwg.mxu0
          %v2865 = vmul.f32 %v2861, 0.5
          %v2866 = vtanh.pop %v2865
          %v2867 = vadd.f32 %v2866, 1.0
          %v2868 = vmul.f32 %v2867, 0.5
          %v2870 = vcombine.high %v2868, %v2868
          %v2872 = vunpack.c.l.s4 1966171168
          %v2873 = vunpack.c.0.s8 %v2872
          %v2874 = vlaneseq
          %v2875 = vshrl.u32 %v2874, 7
          %v2876 = vsub.s32 %v2873, %v2875
          %v2877 = vrot.slane %v2868, %v2876
          %v2879 = vunpack.c.l.s4 1966171168
          %v2880 = vunpack.c.0.s8 %v2879
          %v2881 = vlaneseq
          %v2882 = vshrl.u32 %v2881, 7
          %v2883 = vsub.s32 %v2880, %v2882
          %v2884 = vrot.slane %v2870, %v2883
          %v2885 = vcombine.high %v2877, %v2877
          %v2886 = vcombine.high %v2884, %v2884
          %v2888 = vunpack.c.l.s4 1966171168
          %v2889 = vunpack.c.0.s8 %v2888
          %v2890 = vlaneseq
          %v2891 = vshrl.u32 %v2890, 7
          %v2892 = vsub.s32 %v2889, %v2891
          %v2893 = vrot.slane %v2877, %v2892
          %v2895 = vunpack.c.l.s4 1966171168
          %v2896 = vunpack.c.0.s8 %v2895
          %v2897 = vlaneseq
          %v2898 = vshrl.u32 %v2897, 7
          %v2899 = vsub.s32 %v2896, %v2898
          %v2900 = vrot.slane %v2884, %v2899
          %v2902 = vunpack.c.l.s4 1966171168
          %v2903 = vunpack.c.0.s8 %v2902
          %v2904 = vlaneseq
          %v2905 = vshrl.u32 %v2904, 7
          %v2906 = vsub.s32 %v2903, %v2905
          %v2907 = vrot.slane %v2885, %v2906
          %v2909 = vunpack.c.l.s4 1966171168
          %v2910 = vunpack.c.0.s8 %v2909
          %v2911 = vlaneseq
          %v2912 = vshrl.u32 %v2911, 7
          %v2913 = vsub.s32 %v2910, %v2912
          %v2914 = vrot.slane %v2886, %v2913
          %v2915 = vcombine.high %v2893, %v2893
          %v2916 = vcombine.high %v2900, %v2900
          %v2917 = vcombine.high %v2907, %v2907
          %v2918 = vcombine.high %v2914, %v2914
          %v2920 = vcombine.high %v2863, %v2863
          %v2922 = vunpack.c.l.s4 1966171168
          %v2923 = vunpack.c.0.s8 %v2922
          %v2924 = vlaneseq
          %v2925 = vshrl.u32 %v2924, 7
          %v2926 = vsub.s32 %v2923, %v2925
          %v2927 = vrot.slane %v2863, %v2926
          %v2929 = vunpack.c.l.s4 1966171168
          %v2930 = vunpack.c.0.s8 %v2929
          %v2931 = vlaneseq
          %v2932 = vshrl.u32 %v2931, 7
          %v2933 = vsub.s32 %v2930, %v2932
          %v2934 = vrot.slane %v2920, %v2933
          %v2935 = vcombine.high %v2927, %v2927
          %v2936 = vcombine.high %v2934, %v2934
          %v2938 = vunpack.c.l.s4 1966171168
          %v2939 = vunpack.c.0.s8 %v2938
          %v2940 = vlaneseq
          %v2941 = vshrl.u32 %v2940, 7
          %v2942 = vsub.s32 %v2939, %v2941
          %v2943 = vrot.slane %v2927, %v2942
          %v2945 = vunpack.c.l.s4 1966171168
          %v2946 = vunpack.c.0.s8 %v2945
          %v2947 = vlaneseq
          %v2948 = vshrl.u32 %v2947, 7
          %v2949 = vsub.s32 %v2946, %v2948
          %v2950 = vrot.slane %v2934, %v2949
          %v2952 = vunpack.c.l.s4 1966171168
          %v2953 = vunpack.c.0.s8 %v2952
          %v2954 = vlaneseq
          %v2955 = vshrl.u32 %v2954, 7
          %v2956 = vsub.s32 %v2953, %v2955
          %v2957 = vrot.slane %v2935, %v2956
          %v2959 = vunpack.c.l.s4 1966171168
          %v2960 = vunpack.c.0.s8 %v2959
          %v2961 = vlaneseq
          %v2962 = vshrl.u32 %v2961, 7
          %v2963 = vsub.s32 %v2960, %v2962
          %v2964 = vrot.slane %v2936, %v2963
          %v2965 = vcombine.high %v2943, %v2943
          %v2966 = vcombine.high %v2950, %v2950
          %v2967 = vcombine.high %v2957, %v2957
          %v2968 = vcombine.high %v2964, %v2964
          %v2969 = vlaneseq
          %v2970 = vshrl.u32 %v2969, 7
          %v2971 = vsub.s32 0, %v2970
          %v2972 = vrot.slane %v2893, %v2971
          %v2973 = vlaneseq
          %v2974 = vshrl.u32 %v2973, 7
          %v2975 = vsub.s32 0, %v2974
          %v2976 = vrot.slane %v2907, %v2975
          %v2977 = vlaneseq
          %v2978 = vshrl.u32 %v2977, 7
          %v2979 = vsub.s32 0, %v2978
          %v2980 = vrot.slane %v2915, %v2979
          %v2981 = vlaneseq
          %v2982 = vshrl.u32 %v2981, 7
          %v2983 = vsub.s32 0, %v2982
          %v2984 = vrot.slane %v2917, %v2983
          %v2985 = vlaneseq
          %v2986 = vshrl.u32 %v2985, 7
          %v2987 = vsub.s32 0, %v2986
          %v2988 = vrot.slane %v2900, %v2987
          %v2989 = vlaneseq
          %v2990 = vshrl.u32 %v2989, 7
          %v2991 = vsub.s32 0, %v2990
          %v2992 = vrot.slane %v2914, %v2991
          %v2993 = vlaneseq
          %v2994 = vshrl.u32 %v2993, 7
          %v2995 = vsub.s32 0, %v2994
          %v2996 = vrot.slane %v2916, %v2995
          %v2997 = vlaneseq
          %v2998 = vshrl.u32 %v2997, 7
          %v2999 = vsub.s32 0, %v2998
          %v3000 = vrot.slane %v2918, %v2999
          %v3009 = vmul.f32 %v506, %v2972
          %v3010 = vmul.f32 %v507, %v2972
          %v3011 = vmul.f32 %v508, %v2976
          %v3012 = vmul.f32 %v509, %v2976
          %v3013 = vmul.f32 %v510, %v2980
          %v3014 = vmul.f32 %v511, %v2980
          %v3015 = vmul.f32 %v512, %v2984
          %v3016 = vmul.f32 %v513, %v2984
          %v3017 = vmul.f32 %v514, %v2988
          %v3018 = vmul.f32 %v515, %v2988
          %v3019 = vmul.f32 %v516, %v2992
          %v3020 = vmul.f32 %v517, %v2992
          %v3021 = vmul.f32 %v518, %v2996
          %v3022 = vmul.f32 %v519, %v2996
          %v3023 = vmul.f32 %v520, %v3000
          %v3024 = vmul.f32 %v521, %v3000
          %v3025 = vlaneseq
          %v3026 = vshrl.u32 %v3025, 7
          %v3027 = vsub.s32 0, %v3026
          %v3028 = vrot.slane %v2943, %v3027
          %v3029 = vlaneseq
          %v3030 = vshrl.u32 %v3029, 7
          %v3031 = vsub.s32 0, %v3030
          %v3032 = vrot.slane %v2957, %v3031
          %v3033 = vlaneseq
          %v3034 = vshrl.u32 %v3033, 7
          %v3035 = vsub.s32 0, %v3034
          %v3036 = vrot.slane %v2965, %v3035
          %v3037 = vlaneseq
          %v3038 = vshrl.u32 %v3037, 7
          %v3039 = vsub.s32 0, %v3038
          %v3040 = vrot.slane %v2967, %v3039
          %v3041 = vlaneseq
          %v3042 = vshrl.u32 %v3041, 7
          %v3043 = vsub.s32 0, %v3042
          %v3044 = vrot.slane %v2950, %v3043
          %v3045 = vlaneseq
          %v3046 = vshrl.u32 %v3045, 7
          %v3047 = vsub.s32 0, %v3046
          %v3048 = vrot.slane %v2964, %v3047
          %v3049 = vlaneseq
          %v3050 = vshrl.u32 %v3049, 7
          %v3051 = vsub.s32 0, %v3050
          %v3052 = vrot.slane %v2966, %v3051
          %v3053 = vlaneseq
          %v3054 = vshrl.u32 %v3053, 7
          %v3055 = vsub.s32 0, %v3054
          %v3056 = vrot.slane %v2968, %v3055
          %v3065 = vsub.f32 %v3028, %v3009
          %v3066 = vsub.f32 %v3028, %v3010
          %v3067 = vsub.f32 %v3032, %v3011
          %v3068 = vsub.f32 %v3032, %v3012
          %v3069 = vsub.f32 %v3036, %v3013
          %v3070 = vsub.f32 %v3036, %v3014
          %v3071 = vsub.f32 %v3040, %v3015
          %v3072 = vsub.f32 %v3040, %v3016
          %v3073 = vsub.f32 %v3044, %v3017
          %v3074 = vsub.f32 %v3044, %v3018
          %v3075 = vsub.f32 %v3048, %v3019
          %v3076 = vsub.f32 %v3048, %v3020
          %v3077 = vsub.f32 %v3052, %v3021
          %v3078 = vsub.f32 %v3052, %v3022
          %v3079 = vsub.f32 %v3056, %v3023
          %v3080 = vsub.f32 %v3056, %v3024
          %3082 = vset.pattern.permute.xlu0 0
          %3083 = vperm.xlu0 %3082, %v2607
          %v3084 = vpop.permute.xlu0 %3083
          %3087 = vset.pattern.permute.xlu0 0
          %3088 = vperm.xlu0 %3087, %v2608
          %v3089 = vpop.permute.xlu0 %3088
          %3092 = vset.pattern.permute.xlu0 0
          %3093 = vperm.xlu0 %3092, %v2609
          %v3094 = vpop.permute.xlu0 %3093
          %3097 = vset.pattern.permute.xlu0 0
          %3098 = vperm.xlu0 %3097, %v2610
          %v3099 = vpop.permute.xlu0 %3098
          %3102 = vset.pattern.permute.xlu0 0
          %3103 = vperm.xlu0 %3102, %v2611
          %v3104 = vpop.permute.xlu0 %3103
          %3107 = vset.pattern.permute.xlu0 0
          %3108 = vperm.xlu0 %3107, %v2612
          %v3109 = vpop.permute.xlu0 %3108
          %3112 = vset.pattern.permute.xlu0 0
          %3113 = vperm.xlu0 %3112, %v2613
          %v3114 = vpop.permute.xlu0 %3113
          %3117 = vset.pattern.permute.xlu0 0
          %3118 = vperm.xlu0 %3117, %v2614
          %v3119 = vpop.permute.xlu0 %3118
          %3122 = vset.pattern.permute.xlu0 0
          %3123 = vperm.xlu0 %3122, %v2615
          %v3124 = vpop.permute.xlu0 %3123
          %3127 = vset.pattern.permute.xlu0 0
          %3128 = vperm.xlu0 %3127, %v2616
          %v3129 = vpop.permute.xlu0 %3128
          %3132 = vset.pattern.permute.xlu0 0
          %3133 = vperm.xlu0 %3132, %v2617
          %v3134 = vpop.permute.xlu0 %3133
          %3137 = vset.pattern.permute.xlu0 0
          %3138 = vperm.xlu0 %3137, %v2618
          %v3139 = vpop.permute.xlu0 %3138
          %3142 = vset.pattern.permute.xlu0 0
          %3143 = vperm.xlu0 %3142, %v2619
          %v3144 = vpop.permute.xlu0 %3143
          %3147 = vset.pattern.permute.xlu0 0
          %3148 = vperm.xlu0 %3147, %v2620
          %v3149 = vpop.permute.xlu0 %3148
          %3152 = vset.pattern.permute.xlu0 0
          %3153 = vperm.xlu0 %3152, %v2621
          %v3154 = vpop.permute.xlu0 %3153
          %3157 = vset.pattern.permute.xlu0 0
          %3158 = vperm.xlu0 %3157, %v2622
          %v3159 = vpop.permute.xlu0 %3158
          %v3161 = vmul.f32 %v3084, %v3065
          %v3162 = vmul.f32 %v3089, %v3066
          %v3163 = vmul.f32 %v3094, %v3067
          %v3164 = vmul.f32 %v3099, %v3068
          %v3165 = vmul.f32 %v3104, %v3069
          %v3166 = vmul.f32 %v3109, %v3070
          %v3167 = vmul.f32 %v3114, %v3071
          %v3168 = vmul.f32 %v3119, %v3072
          %v3169 = vmul.f32 %v3124, %v3073
          %v3170 = vmul.f32 %v3129, %v3074
          %v3171 = vmul.f32 %v3134, %v3075
          %v3172 = vmul.f32 %v3139, %v3076
          %v3173 = vmul.f32 %v3144, %v3077
          %v3174 = vmul.f32 %v3149, %v3078
          %v3175 = vmul.f32 %v3154, %v3079
          %v3176 = vmul.f32 %v3159, %v3080
          %v3177 = vadd.f32 %v506, %v3161
          %v3178 = vadd.f32 %v507, %v3162
          %v3179 = vadd.f32 %v508, %v3163
          %v3180 = vadd.f32 %v509, %v3164
          %v3181 = vadd.f32 %v510, %v3165
          %v3182 = vadd.f32 %v511, %v3166
          %v3183 = vadd.f32 %v512, %v3167
          %v3184 = vadd.f32 %v513, %v3168
          %v3185 = vadd.f32 %v514, %v3169
          %v3186 = vadd.f32 %v515, %v3170
          %v3187 = vadd.f32 %v516, %v3171
          %v3188 = vadd.f32 %v517, %v3172
          %v3189 = vadd.f32 %v518, %v3173
          %v3190 = vadd.f32 %v519, %v3174
          %v3191 = vadd.f32 %v520, %v3175
          %v3192 = vadd.f32 %v521, %v3176
          %s3194 = smul.u32 %s500, 8
          %s3195 = scalar_lea.vmem %s436, %s3194 [#allocation9]
          %3196 = vst.msk [vmem:[%s3195] sm:$0xff] %vm560, %v2791
        $region81: #{tpu_custom_call.1} parent=55 // loop_footer
          %s504 = sadd.s32 1, %s500
        $region82: #{tpu_custom_call.1} parent=55 // loop_footer_branch
          %499 = sbr.rel target = $region78
        $region83: #{tpu_custom_call.1} parent=55 // loop_exit
          _
        %vm3197 = vcmask 261120
        %3198 = vst.msk [vmem:[#allocation10] sm:$0xff] %vm3197, %v505
        %3199 = vst [vmem:[#allocation12] sm:$0xff] %v506
        %3200 = vst [vmem:[#allocation12 + $0x8] sm:$0xff] %v507
        %3201 = vst [vmem:[#allocation12 + $0x10] sm:$0xff] %v508
        %3202 = vst [vmem:[#allocation12 + $0x18] sm:$0xff] %v509
        %3203 = vst [vmem:[#allocation12 + $0x20] sm:$0xff] %v510
        %3204 = vst [vmem:[#allocation12 + $0x28] sm:$0xff] %v511
        %3205 = vst [vmem:[#allocation12 + $0x30] sm:$0xff] %v512
        %3206 = vst [vmem:[#allocation12 + $0x38] sm:$0xff] %v513
        %3207 = vst [vmem:[#allocation12 + $0x40] sm:$0xff] %v514
        %3208 = vst [vmem:[#allocation12 + $0x48] sm:$0xff] %v515
        %3209 = vst [vmem:[#allocation12 + $0x50] sm:$0xff] %v516
        %3210 = vst [vmem:[#allocation12 + $0x58] sm:$0xff] %v517
        %3211 = vst [vmem:[#allocation12 + $0x60] sm:$0xff] %v518
        %3212 = vst [vmem:[#allocation12 + $0x68] sm:$0xff] %v519
        %3213 = vst [vmem:[#allocation12 + $0x70] sm:$0xff] %v520
        %3214 = vst [vmem:[#allocation12 + $0x78] sm:$0xff] %v521
        %s3215 = sand.u32 %s231, 1
        %s3216 = scalar_lea.sflag [#allocation4], %s3215
        %s3217 = sand.u32 %s231, 1
        %s3218 = smul.addr %s3217, 64
        %s3219 = scalar_lea.vmem [#allocation9], %s3218
        // Predicated region
        $region84: #{tpu_custom_call.1} parent=55 // pred_check
          %p3220 = pneg %p241
        $region85: #{tpu_custom_call.1} parent=55 // pred_check_branch
          %3222 = sbr.rel (%p3220) target = $region87
        $region86: #{tpu_custom_call.1} parent=55 // pred_region
          %s3223 = smul.u32 8, %s29
          %s3225 = ssub.s32 1024, 1024
          %3226 = vsyncadd %s3216, %s3225
          %s3227 = smul.addr %s3223, 128
          %s3228 = scalar_lea.hbm %s9, %s3227
          %s3229 = sshll.u32 %s3219, 4
          %s3230 = int_to_ptr.vmem [resolvable:$true] %s3229
          %3235 = dma.vmem_to_hbm [thread:$0]  %s3230, 1024, %s3228, %s3216, 128, 128, 8
        $region87: #{tpu_custom_call.1} parent=55 // pred_fallthru
          _
        // Predicated region
        $region88: #{tpu_custom_call.1} parent=55 // pred_check
          %p3236 = pneg %p262
        $region89: #{tpu_custom_call.1} parent=55 // pred_check_branch
          %3238 = sbr.rel (%p3236) target = $region91
        $region90: #{tpu_custom_call.1} parent=55 // pred_region
          %s3240 = ssub.s32 128, 128
          %3241 = vsyncadd [#allocation11], %s3240
          %s3243 = sshll.u32 [#allocation10], 4
          %s3244 = int_to_ptr.vmem [resolvable:$true] %s3243
          %3246 = dma.vmem_to_hbm [thread:$0]  %s3244, 128, %s10, [#allocation11]
        $region91: #{tpu_custom_call.1} parent=55 // pred_fallthru
          _
        // Predicated region
        $region92: #{tpu_custom_call.1} parent=55 // pred_check
          %p3247 = pneg %p283
        $region93: #{tpu_custom_call.1} parent=55 // pred_check_branch
          %3249 = sbr.rel (%p3247) target = $region95
        $region94: #{tpu_custom_call.1} parent=55 // pred_region
          %s3251 = ssub.s32 2048, 2048
          %3252 = vsyncadd [#allocation11], %s3251
          %s3253 = sshll.u32 [#allocation12], 4
          %s3254 = int_to_ptr.vmem [resolvable:$true] %s3253
          %3259 = dma.vmem_to_hbm [thread:$0]  %s3254, 2048, %s11, [#allocation11], 128, 128, 8
        $region95: #{tpu_custom_call.1} parent=55 // pred_fallthru
          _
        // Predicated region
        $region96: #{tpu_custom_call.1} parent=55 // pred_check
          %p3260 = pneg %p262
        $region97: #{tpu_custom_call.1} parent=55 // pred_check_branch
          %3262 = sbr.rel (%p3260) target = $region99
        $region98: #{tpu_custom_call.1} parent=55 // pred_region
          %3263 = dma.done [#allocation11], 128
        $region99: #{tpu_custom_call.1} parent=55 // pred_fallthru
          _
        // Predicated region
        $region100: #{tpu_custom_call.1} parent=55 // pred_check
          %p3264 = pneg %p283
        $region101: #{tpu_custom_call.1} parent=55 // pred_check_branch
          %3266 = sbr.rel (%p3264) target = $region103
        $region102: #{tpu_custom_call.1} parent=55 // pred_region
          %3267 = dma.done [#allocation11], 2048
        $region103: #{tpu_custom_call.1} parent=55 // pred_fallthru
          _
      $region56: #{tpu_custom_call.1} parent=5 // pred_fallthru
        _
      %p3268 = scmp.le.s32.totalorder 2, %s24
      // Predicated region
      $region104: #{tpu_custom_call.1} parent=5 // pred_check
        %p3269 = pneg %p3268
      $region105: #{tpu_custom_call.1} parent=5 // pred_check_branch
        %3271 = sbr.rel (%p3269) target = $region107
      $region106: #{tpu_custom_call.1} parent=5 // pred_region
        %s3272 = ssub.s32 %s24, 2
        // Predicated region
        $region108: #{tpu_custom_call.1} parent=106 // pred_check
          %p3273 = pneg %p247
        $region109: #{tpu_custom_call.1} parent=106 // pred_check_branch
          %3275 = sbr.rel (%p3273) target = $region111
        $region110: #{tpu_custom_call.1} parent=106 // pred_region
          %s3276 = sand.u32 %s232, 1
          %s3277 = scalar_lea.sflag [#allocation4], %s3276
          %s3278 = sand.u32 %s232, 1
          %s3279 = smul.addr %s3278, 64
          %s3280 = scalar_lea.vmem [#allocation9], %s3279
          %3281 = dma.done %s3277, 1024
        $region111: #{tpu_custom_call.1} parent=106 // pred_fallthru
          _
      $region107: #{tpu_custom_call.1} parent=5 // pred_fallthru
        _
    $region6: #{tpu_custom_call.1} parent=1 // loop_footer
      %s28 = sadd.s32 1, %s24
    $region7: #{tpu_custom_call.1} parent=1 // loop_footer_branch
      %23 = sbr.rel target = $region3
    $region8: #{tpu_custom_call.1} parent=1 // loop_exit
      _
    %3282 = vsyncpa [#allocation3], 1
    %s3283 = scalar_lea.sflag [#allocation3], 1
    %3284 = vsyncpa %s3283, 1
    %3285 = vsyncpa [#allocation6], 1
    %3286 = vsyncpa [#allocation4], 1
    %s3287 = scalar_lea.sflag [#allocation4], 1
    %3288 = vsyncpa %s3287, 1
    %3289 = vsyncpa [#allocation11], 1

</llo_original>
